<compile_context>
chip_gen: v6e
topology: v6e:2x2x1
jax: 0.10.0
libtpu: 0.0.40
codegen_flags: <defaults>
</compile_context>

<pallas_src>
import functools

import numpy as np
import jax
import jax.numpy as jnp
from jax.experimental import pallas as pl
from jax.experimental.pallas import tpu as pltpu

D_MODEL = 32
NHEAD = 4
DIM_FF = 64
HEAD_DIM = D_MODEL // NHEAD
LN_EPS = 1e-5
ATTN_SCALE = HEAD_DIM ** -0.5


# ----------------------------- in-kernel helpers ----------------------------

def _layer_norm(x, g, b):
    mu = jnp.mean(x, axis=-1, keepdims=True)
    xc = x - mu
    var = jnp.mean(xc * xc, axis=-1, keepdims=True)
    return xc * jax.lax.rsqrt(var + LN_EPS) * g + b


def _mha_all_heads(q, k, v, head_mask, lq, lk):
    """All-head attention for ONE batch element in two MXU matmuls.

    q: (lq, D), k/v: (lk, D), head_mask: (H*lk, D) 0/1 block mask with
    head_mask[h*lk + j, h*Dh + d] == 1.

    k_exp = tile(k, heads) * head_mask is block-diagonal over heads, so a
    single (lq, D) x (D, H*lk) matmul produces every head's score block, and a
    single (lq, H*lk) x (H*lk, D) matmul produces the per-head outputs already
    packed into (lq, D).  Normalization is deferred to the (lq, D) output.
    """
    H, Dh, D = NHEAD, HEAD_DIM, D_MODEL
    k_exp = jnp.broadcast_to(k[None], (H, lk, D)).reshape(H * lk, D) * head_mask
    v_bd = jnp.broadcast_to(v[None], (H, lk, D)).reshape(H * lk, D) * head_mask

    # all-head scores in one MXU pass: s[:, h*lk + j] = scale * <q_h, k_h[j]>
    s = jax.lax.dot_general(q * ATTN_SCALE, k_exp, (((1,), (1,)), ((), ())),
                            preferred_element_type=jnp.float32)     # (lq, H*lk)
    s3 = s.reshape(lq, H, lk)
    p3 = jnp.exp(s3 - jnp.max(s3, axis=-1, keepdims=True))          # unnormalized
    denom = jnp.sum(p3, axis=-1)                                     # (lq, H)

    # unnormalized per-head outputs, packed into (lq, D) by the block-diag V
    o = jnp.dot(p3.reshape(lq, H * lk), v_bd,
                preferred_element_type=jnp.float32)                  # (lq, D)

    recip = pl.reciprocal(denom, approx=True)                        # EUP slot
    recip_b = jnp.broadcast_to(recip[:, :, None], (lq, H, Dh)).reshape(lq, D)
    return o * recip_b


# ------------------------------ fused kernel --------------------------------

def _decoder_layer_kernel(
        tgt_ref, mem_ref, qpos_ref, mpos_ref, sa_mask_ref, ca_mask_ref,
        sa_wq_ref, sa_bq_ref, sa_wk_ref, sa_bk_ref, sa_wv_ref, sa_bv_ref,
        sa_wo_ref, sa_bo_ref,
        ca_wq_ref, ca_bq_ref, ca_wk_ref, ca_bk_ref, ca_wv_ref, ca_bv_ref,
        ca_wo_ref, ca_bo_ref,
        ff_w1_ref, ff_b1_ref, ff_w2_ref, ff_b2_ref,
        ln1_g_ref, ln1_b_ref, ln2_g_ref, ln2_b_ref, ln3_g_ref, ln3_b_ref,
        out_ref, *, tgt_len, mem_len):
    """One grid step == one batch element; whole decoder layer in VMEM."""
    f32 = jnp.float32

    tgt = tgt_ref[...].astype(f32)       # (Lt, D)
    mem = mem_ref[...].astype(f32)       # (Lm, D)
    qpos = qpos_ref[...].astype(f32)
    mpos = mpos_ref[...].astype(f32)
    sa_mask = sa_mask_ref[...]           # (H*Lt, D)
    ca_mask = ca_mask_ref[...]           # (H*Lm, D)

    def proj(x, w_ref, b_ref):
        return jnp.dot(x, w_ref[...], preferred_element_type=f32) + b_ref[...]

    # ----- self-attention block -----
    qk_in = tgt + qpos
    q = proj(qk_in, sa_wq_ref, sa_bq_ref)
    k = proj(qk_in, sa_wk_ref, sa_bk_ref)
    v = proj(tgt, sa_wv_ref, sa_bv_ref)
    attn = _mha_all_heads(q, k, v, sa_mask, tgt_len, tgt_len)
    x = _layer_norm(tgt + proj(attn, sa_wo_ref, sa_bo_ref),
                    ln1_g_ref[...], ln1_b_ref[...])

    # ----- cross-attention block -----
    q = proj(x + qpos, ca_wq_ref, ca_bq_ref)
    k = proj(mem + mpos, ca_wk_ref, ca_bk_ref)
    v = proj(mem, ca_wv_ref, ca_bv_ref)
    attn = _mha_all_heads(q, k, v, ca_mask, tgt_len, mem_len)
    x = _layer_norm(x + proj(attn, ca_wo_ref, ca_bo_ref),
                    ln2_g_ref[...], ln2_b_ref[...])

    # ----- feed-forward block -----
    h = jnp.maximum(proj(x, ff_w1_ref, ff_b1_ref), 0.0)
    x = _layer_norm(x + proj(h, ff_w2_ref, ff_b2_ref),
                    ln3_g_ref[...], ln3_b_ref[...])

    out_ref[...] = x.astype(out_ref.dtype)


# ------------------------------ host wrappers --------------------------------

_KP_ORDER = (
    "sa_wq", "sa_bq", "sa_wk", "sa_bk", "sa_wv", "sa_bv", "sa_wo", "sa_bo",
    "ca_wq", "ca_bq", "ca_wk", "ca_bk", "ca_wv", "ca_bv", "ca_wo", "ca_bo",
    "ff_w1", "ff_b1", "ff_w2", "ff_b2",
    "ln1_g", "ln1_b", "ln2_g", "ln2_b", "ln3_g", "ln3_b",
)


def prepare_kernel_params(p):
    """One-time weight repack: transpose to (in, out), split Q/K/V, row biases."""
    D = D_MODEL

    def row(v):
        return v.reshape(1, -1)

    sa_w, sa_b = p["self_in_w"], p["self_in_b"]      # (3D, D), (3D,)
    ca_w, ca_b = p["cross_in_w"], p["cross_in_b"]
    return {
        "sa_wq": sa_w[:D].T,         "sa_bq": row(sa_b[:D]),
        "sa_wk": sa_w[D:2 * D].T,    "sa_bk": row(sa_b[D:2 * D]),
        "sa_wv": sa_w[2 * D:].T,     "sa_bv": row(sa_b[2 * D:]),
        "sa_wo": p["self_out_w"].T,  "sa_bo": row(p["self_out_b"]),
        "ca_wq": ca_w[:D].T,         "ca_bq": row(ca_b[:D]),
        "ca_wk": ca_w[D:2 * D].T,    "ca_bk": row(ca_b[D:2 * D]),
        "ca_wv": ca_w[2 * D:].T,     "ca_bv": row(ca_b[2 * D:]),
        "ca_wo": p["cross_out_w"].T, "ca_bo": row(p["cross_out_b"]),
        "ff_w1": p["lin1_w"].T, "ff_b1": row(p["lin1_b"]),
        "ff_w2": p["lin2_w"].T, "ff_b2": row(p["lin2_b"]),
        "ln1_g": row(p["ln1_g"]), "ln1_b": row(p["ln1_b"]),
        "ln2_g": row(p["ln2_g"]), "ln2_b": row(p["ln2_b"]),
        "ln3_g": row(p["ln3_g"]), "ln3_b": row(p["ln3_b"]),
    }


def _head_block_mask(lk):
    """(H*lk, D) mask; mask[h*lk + j, h*Dh + d] = 1 (block-diag over heads)."""
    rows = np.arange(NHEAD * lk)[:, None] // lk
    cols = np.arange(D_MODEL)[None, :] // HEAD_DIM
    return (rows == cols).astype(np.float32)


@jax.jit
def decoder_layer_forward(kparams, target, memory, pos=None, query_pos=None):
    """target/query_pos: (Lt, B, D); memory/pos: (Lm, B, D) -> (Lt, B, D)."""
    Lt, B, D = target.shape
    Lm = memory.shape[0]
    if query_pos is None:
        query_pos = jnp.zeros_like(target)
    if pos is None:
        pos = jnp.zeros_like(memory)

    # Batch-major (B, L, D) so per-batch BlockSpecs are (8,128)-clean.
    tgt_b = target.transpose(1, 0, 2)
    mem_b = memory.transpose(1, 0, 2)
    qpos_b = query_pos.transpose(1, 0, 2)
    mpos_b = pos.transpose(1, 0, 2)

    sa_mask = _head_block_mask(Lt)       # built once, VMEM-resident
    ca_mask = _head_block_mask(Lm)
    weights = [kparams[k] for k in _KP_ORDER]

    tgt_spec = pl.BlockSpec((None, Lt, D), lambda b: (b, 0, 0))
    mem_spec = pl.BlockSpec((None, Lm, D), lambda b: (b, 0, 0))

    def resident(arr):                   # full array, constant index -> no re-DMA
        nd = arr.ndim
        return pl.BlockSpec(arr.shape, lambda b, _nd=nd: (0,) * _nd)

    kern = functools.partial(_decoder_layer_kernel, tgt_len=Lt, mem_len=Lm)
    out_b = pl.pallas_call(
        kern,
        grid=(B,),
        in_specs=([tgt_spec, mem_spec, tgt_spec, mem_spec,
                   resident(sa_mask), resident(ca_mask)]
                  + [resident(w) for w in weights]),
        out_specs=pl.BlockSpec((None, Lt, D), lambda b: (b, 0, 0)),
        out_shape=jax.ShapeDtypeStruct((B, Lt, D), target.dtype),
        compiler_params=pltpu.CompilerParams(
            dimension_semantics=("parallel",)),
    )(tgt_b, mem_b, qpos_b, mpos_b, sa_mask, ca_mask, *weights)

    return out_b.transpose(1, 0, 2)      # back to (Lt, B, D)


# ------------------------------ pure-JAX reference ---------------------------

def _ref_mha(query, key, value, w_in, b_in, w_out, b_out):
    Lq, B, D = query.shape
    Lk = key.shape[0]
    H, Dh = NHEAD, HEAD_DIM
    wq, wk, wv = w_in[:D], w_in[D:2 * D], w_in[2 * D:]
    bq, bk, bv = b_in[:D], b_in[D:2 * D], b_in[2 * D:]
    q = query @ wq.T + bq
    k = key @ wk.T + bk
    v = value @ wv.T + bv
    qh = q.reshape(Lq, B * H, Dh).transpose(1, 0, 2) * (Dh ** -0.5)
    kh = k.reshape(Lk, B * H, Dh).transpose(1, 0, 2)
    vh = v.reshape(Lk, B * H, Dh).transpose(1, 0, 2)
    p = jax.nn.softmax(qh @ kh.transpose(0, 2, 1), axis=-1)
    o = (p @ vh).transpose(1, 0, 2).reshape(Lq, B, D)
    return o @ w_out.T + b_out


def _ref_ln(x, g, b):
    mu = jnp.mean(x, axis=-1, keepdims=True)
    var = jnp.mean((x - mu) ** 2, axis=-1, keepdims=True)
    return (x - mu) * jax.lax.rsqrt(var + LN_EPS) * g + b


def ref_forward(p, target, memory, pos, query_pos):
    qk = target + query_pos
    t = _ref_ln(target + _ref_mha(qk, qk, target, p["self_in_w"], p["self_in_b"],
                                  p["self_out_w"], p["self_out_b"]),
                p["ln1_g"], p["ln1_b"])
    t2 = _ref_mha(t + query_pos, memory + pos, memory, p["cross_in_w"],
                  p["cross_in_b"], p["cross_out_w"], p["cross_out_b"])
    t = _ref_ln(t + t2, p["ln2_g"], p["ln2_b"])
    h = jnp.maximum(t @ p["lin1_w"].T + p["lin1_b"], 0.0)
    t2 = h @ p["lin2_w"].T + p["lin2_b"]
    return _ref_ln(t + t2, p["ln3_g"], p["ln3_b"])


# --------------------------------- main --------------------------------------

def make_params(key):
    ks = jax.random.split(key, 16)
    D, F = D_MODEL, DIM_FF
    n = jax.random.normal
    return {
        "self_in_w": 0.02 * n(ks[0], (3 * D, D), jnp.float32),
        "self_in_b": 0.01 * n(ks[1], (3 * D,), jnp.float32),
        "self_out_w": 0.02 * n(ks[2], (D, D), jnp.float32),
        "self_out_b": 0.01 * n(ks[3], (D,), jnp.float32),
        "cross_in_w": 0.02 * n(ks[4], (3 * D, D), jnp.float32),
        "cross_in_b": 0.01 * n(ks[5], (3 * D,), jnp.float32),
        "cross_out_w": 0.02 * n(ks[6], (D, D), jnp.float32),
        "cross_out_b": 0.01 * n(ks[7], (D,), jnp.float32),
        "lin1_w": 0.02 * n(ks[8], (F, D), jnp.float32),
        "lin1_b": 0.01 * n(ks[9], (F,), jnp.float32),
        "lin2_w": 0.02 * n(ks[10], (D, F), jnp.float32),
        "lin2_b": 0.01 * n(ks[11], (D,), jnp.float32),
        "ln1_g": 1.0 + 0.01 * n(ks[12], (D_MODEL,), jnp.float32),
        "ln1_b": 0.01 * n(ks[13], (D_MODEL,), jnp.float32),
        "ln2_g": jnp.ones((D_MODEL,), jnp.float32),
        "ln2_b": jnp.zeros((D_MODEL,), jnp.float32),
        "ln3_g": 1.0 + 0.01 * n(ks[14], (D_MODEL,), jnp.float32),
        "ln3_b": 0.01 * n(ks[15], (D_MODEL,), jnp.float32),
    }


if __name__ == "__main__":
    key = jax.random.PRNGKey(0)
    kp, kt, km, kq, kpo = jax.random.split(key, 5)

    TGT_LEN, MEM_LEN, BATCH = 8, 16, 2
    params = make_params(kp)
    kparams = prepare_kernel_params(params)   # one-time weight repack
    target = jax.random.normal(kt, (TGT_LEN, BATCH, D_MODEL), jnp.float32)
    memory = jax.random.normal(km, (MEM_LEN, BATCH, D_MODEL), jnp.float32)
    query_pos = jax.random.normal(kq, (TGT_LEN, BATCH, D_MODEL), jnp.float32)
    pos = jax.random.normal(kpo, (MEM_LEN, BATCH, D_MODEL), jnp.float32)

    out = decoder_layer_forward(kparams, target, memory, pos=pos, query_pos=query_pos)
    out = jax.block_until_ready(out)

    ref = ref_forward(params, target, memory, pos, query_pos)
    assert out.shape == (TGT_LEN, BATCH, D_MODEL)
    assert bool(jnp.all(jnp.isfinite(out)))
    # tolerance allows for the approximate (EUP) softmax reciprocal
    assert bool(jnp.allclose(out, ref, rtol=1e-3, atol=1e-3)), "mismatch vs reference"

    print("KERNEL_OK")
</pallas_src>

<mosaic_0001>
module attributes {stable_mosaic.version = 11 : i64} {
  func.func @_decoder_layer_kernel(%arg0: i32, %arg1: memref<1x8x32xf32, #tpu.memory_space<vmem>>, %arg2: memref<1x16x32xf32, #tpu.memory_space<vmem>>, %arg3: memref<1x8x32xf32, #tpu.memory_space<vmem>>, %arg4: memref<1x16x32xf32, #tpu.memory_space<vmem>>, %arg5: memref<32x32xf32, #tpu.memory_space<vmem>>, %arg6: memref<64x32xf32, #tpu.memory_space<vmem>>, %arg7: memref<32x32xf32, #tpu.memory_space<vmem>>, %arg8: memref<1x32xf32, #tpu.memory_space<vmem>>, %arg9: memref<32x32xf32, #tpu.memory_space<vmem>>, %arg10: memref<1x32xf32, #tpu.memory_space<vmem>>, %arg11: memref<32x32xf32, #tpu.memory_space<vmem>>, %arg12: memref<1x32xf32, #tpu.memory_space<vmem>>, %arg13: memref<32x32xf32, #tpu.memory_space<vmem>>, %arg14: memref<1x32xf32, #tpu.memory_space<vmem>>, %arg15: memref<32x32xf32, #tpu.memory_space<vmem>>, %arg16: memref<1x32xf32, #tpu.memory_space<vmem>>, %arg17: memref<32x32xf32, #tpu.memory_space<vmem>>, %arg18: memref<1x32xf32, #tpu.memory_space<vmem>>, %arg19: memref<32x32xf32, #tpu.memory_space<vmem>>, %arg20: memref<1x32xf32, #tpu.memory_space<vmem>>, %arg21: memref<32x32xf32, #tpu.memory_space<vmem>>, %arg22: memref<1x32xf32, #tpu.memory_space<vmem>>, %arg23: memref<32x64xf32, #tpu.memory_space<vmem>>, %arg24: memref<1x64xf32, #tpu.memory_space<vmem>>, %arg25: memref<64x32xf32, #tpu.memory_space<vmem>>, %arg26: memref<1x32xf32, #tpu.memory_space<vmem>>, %arg27: memref<1x32xf32, #tpu.memory_space<vmem>>, %arg28: memref<1x32xf32, #tpu.memory_space<vmem>>, %arg29: memref<1x32xf32, #tpu.memory_space<vmem>>, %arg30: memref<1x32xf32, #tpu.memory_space<vmem>>, %arg31: memref<1x32xf32, #tpu.memory_space<vmem>>, %arg32: memref<1x32xf32, #tpu.memory_space<vmem>>, %arg33: memref<1x8x32xf32, #tpu.memory_space<vmem>>) attributes {dimension_semantics = [#tpu.dimension_semantics<parallel>], iteration_bounds = array<i64: 2>, scalar_prefetch = 0 : i64, scratch_operands = 0 : i64, tpu.core_type = #tpu.core_type<tc>, window_params = [{transform_indices = @transform_0, window_bounds = array<i64: 1, 8, 32>}, {transform_indices = @transform_1, window_bounds = array<i64: 1, 16, 32>}, {transform_indices = @transform_2, window_bounds = array<i64: 1, 8, 32>}, {transform_indices = @transform_3, window_bounds = array<i64: 1, 16, 32>}, {pipeline_mode = #tpu.pipeline_mode<synchronous>, transform_indices = @transform_4, window_bounds = array<i64: 32, 32>}, {pipeline_mode = #tpu.pipeline_mode<synchronous>, transform_indices = @transform_5, window_bounds = array<i64: 64, 32>}, {pipeline_mode = #tpu.pipeline_mode<synchronous>, transform_indices = @transform_6, window_bounds = array<i64: 32, 32>}, {pipeline_mode = #tpu.pipeline_mode<synchronous>, transform_indices = @transform_7, window_bounds = array<i64: 1, 32>}, {pipeline_mode = #tpu.pipeline_mode<synchronous>, transform_indices = @transform_8, window_bounds = array<i64: 32, 32>}, {pipeline_mode = #tpu.pipeline_mode<synchronous>, transform_indices = @transform_9, window_bounds = array<i64: 1, 32>}, {pipeline_mode = #tpu.pipeline_mode<synchronous>, transform_indices = @transform_10, window_bounds = array<i64: 32, 32>}, {pipeline_mode = #tpu.pipeline_mode<synchronous>, transform_indices = @transform_11, window_bounds = array<i64: 1, 32>}, {pipeline_mode = #tpu.pipeline_mode<synchronous>, transform_indices = @transform_12, window_bounds = array<i64: 32, 32>}, {pipeline_mode = #tpu.pipeline_mode<synchronous>, transform_indices = @transform_13, window_bounds = array<i64: 1, 32>}, {pipeline_mode = #tpu.pipeline_mode<synchronous>, transform_indices = @transform_14, window_bounds = array<i64: 32, 32>}, {pipeline_mode = #tpu.pipeline_mode<synchronous>, transform_indices = @transform_15, window_bounds = array<i64: 1, 32>}, {pipeline_mode = #tpu.pipeline_mode<synchronous>, transform_indices = @transform_16, window_bounds = array<i64: 32, 32>}, {pipeline_mode = #tpu.pipeline_mode<synchronous>, transform_indices = @transform_17, window_bounds = array<i64: 1, 32>}, {pipeline_mode = #tpu.pipeline_mode<synchronous>, transform_indices = @transform_18, window_bounds = array<i64: 32, 32>}, {pipeline_mode = #tpu.pipeline_mode<synchronous>, transform_indices = @transform_19, window_bounds = array<i64: 1, 32>}, {pipeline_mode = #tpu.pipeline_mode<synchronous>, transform_indices = @transform_20, window_bounds = array<i64: 32, 32>}, {pipeline_mode = #tpu.pipeline_mode<synchronous>, transform_indices = @transform_21, window_bounds = array<i64: 1, 32>}, {pipeline_mode = #tpu.pipeline_mode<synchronous>, transform_indices = @transform_22, window_bounds = array<i64: 32, 64>}, {pipeline_mode = #tpu.pipeline_mode<synchronous>, transform_indices = @transform_23, window_bounds = array<i64: 1, 64>}, {pipeline_mode = #tpu.pipeline_mode<synchronous>, transform_indices = @transform_24, window_bounds = array<i64: 64, 32>}, {pipeline_mode = #tpu.pipeline_mode<synchronous>, transform_indices = @transform_25, window_bounds = array<i64: 1, 32>}, {pipeline_mode = #tpu.pipeline_mode<synchronous>, transform_indices = @transform_26, window_bounds = array<i64: 1, 32>}, {pipeline_mode = #tpu.pipeline_mode<synchronous>, transform_indices = @transform_27, window_bounds = array<i64: 1, 32>}, {pipeline_mode = #tpu.pipeline_mode<synchronous>, transform_indices = @transform_28, window_bounds = array<i64: 1, 32>}, {pipeline_mode = #tpu.pipeline_mode<synchronous>, transform_indices = @transform_29, window_bounds = array<i64: 1, 32>}, {pipeline_mode = #tpu.pipeline_mode<synchronous>, transform_indices = @transform_30, window_bounds = array<i64: 1, 32>}, {pipeline_mode = #tpu.pipeline_mode<synchronous>, transform_indices = @transform_31, window_bounds = array<i64: 1, 32>}, {transform_indices = @transform_32, window_bounds = array<i64: 1, 8, 32>}]} {
    %c0 = arith.constant 0 : index
    %c0_0 = arith.constant 0 : index
    %c0_1 = arith.constant 0 : index
    %0 = vector.load %arg1[%c0, %c0_0, %c0_1] : memref<1x8x32xf32, #tpu.memory_space<vmem>>, vector<1x8x32xf32>
    %1 = vector.shape_cast %0 : vector<1x8x32xf32> to vector<8x32xf32>
    %c0_2 = arith.constant 0 : index
    %c0_3 = arith.constant 0 : index
    %c0_4 = arith.constant 0 : index
    %2 = vector.load %arg2[%c0_2, %c0_3, %c0_4] : memref<1x16x32xf32, #tpu.memory_space<vmem>>, vector<1x16x32xf32>
    %3 = vector.shape_cast %2 : vector<1x16x32xf32> to vector<16x32xf32>
    %c0_5 = arith.constant 0 : index
    %c0_6 = arith.constant 0 : index
    %c0_7 = arith.constant 0 : index
    %4 = vector.load %arg3[%c0_5, %c0_6, %c0_7] : memref<1x8x32xf32, #tpu.memory_space<vmem>>, vector<1x8x32xf32>
    %5 = vector.shape_cast %4 : vector<1x8x32xf32> to vector<8x32xf32>
    %c0_8 = arith.constant 0 : index
    %c0_9 = arith.constant 0 : index
    %c0_10 = arith.constant 0 : index
    %6 = vector.load %arg4[%c0_8, %c0_9, %c0_10] : memref<1x16x32xf32, #tpu.memory_space<vmem>>, vector<1x16x32xf32>
    %7 = vector.shape_cast %6 : vector<1x16x32xf32> to vector<16x32xf32>
    %c0_11 = arith.constant 0 : index
    %c0_12 = arith.constant 0 : index
    %8 = vector.load %arg5[%c0_11, %c0_12] : memref<32x32xf32, #tpu.memory_space<vmem>>, vector<32x32xf32>
    %c0_13 = arith.constant 0 : index
    %c0_14 = arith.constant 0 : index
    %9 = vector.load %arg6[%c0_13, %c0_14] : memref<64x32xf32, #tpu.memory_space<vmem>>, vector<64x32xf32>
    %10 = arith.addf %1, %5 : vector<8x32xf32>
    %c0_15 = arith.constant 0 : index
    %c0_16 = arith.constant 0 : index
    %11 = vector.load %arg7[%c0_15, %c0_16] : memref<32x32xf32, #tpu.memory_space<vmem>>, vector<32x32xf32>
    %cst = arith.constant dense<0.000000e+00> : vector<8x32xf32>
    %12 = tpu.matmul %10, %11, %cst {dimension_numbers = #tpu.dot_dimension_numbers<[1], [0], [0], [1], [0, 0, 1, 1], [], []>} : vector<8x32xf32>, vector<32x32xf32>, vector<8x32xf32> -> vector<8x32xf32>
    %c0_17 = arith.constant 0 : index
    %c0_18 = arith.constant 0 : index
    %13 = vector.load %arg8[%c0_17, %c0_18] : memref<1x32xf32, #tpu.memory_space<vmem>>, vector<1x32xf32>
    %14 = vector.broadcast %13 : vector<1x32xf32> to vector<8x32xf32>
    %15 = arith.addf %12, %14 : vector<8x32xf32>
    %c0_19 = arith.constant 0 : index
    %c0_20 = arith.constant 0 : index
    %16 = vector.load %arg9[%c0_19, %c0_20] : memref<32x32xf32, #tpu.memory_space<vmem>>, vector<32x32xf32>
    %cst_21 = arith.constant dense<0.000000e+00> : vector<8x32xf32>
    %17 = tpu.matmul %10, %16, %cst_21 {dimension_numbers = #tpu.dot_dimension_numbers<[1], [0], [0], [1], [0, 0, 1, 1], [], []>} : vector<8x32xf32>, vector<32x32xf32>, vector<8x32xf32> -> vector<8x32xf32>
    %c0_22 = arith.constant 0 : index
    %c0_23 = arith.constant 0 : index
    %18 = vector.load %arg10[%c0_22, %c0_23] : memref<1x32xf32, #tpu.memory_space<vmem>>, vector<1x32xf32>
    %19 = vector.broadcast %18 : vector<1x32xf32> to vector<8x32xf32>
    %20 = arith.addf %17, %19 : vector<8x32xf32>
    %c0_24 = arith.constant 0 : index
    %c0_25 = arith.constant 0 : index
    %21 = vector.load %arg11[%c0_24, %c0_25] : memref<32x32xf32, #tpu.memory_space<vmem>>, vector<32x32xf32>
    %cst_26 = arith.constant dense<0.000000e+00> : vector<8x32xf32>
    %22 = tpu.matmul %1, %21, %cst_26 {dimension_numbers = #tpu.dot_dimension_numbers<[1], [0], [0], [1], [0, 0, 1, 1], [], []>} : vector<8x32xf32>, vector<32x32xf32>, vector<8x32xf32> -> vector<8x32xf32>
    %c0_27 = arith.constant 0 : index
    %c0_28 = arith.constant 0 : index
    %23 = vector.load %arg12[%c0_27, %c0_28] : memref<1x32xf32, #tpu.memory_space<vmem>>, vector<1x32xf32>
    %24 = vector.broadcast %23 : vector<1x32xf32> to vector<8x32xf32>
    %25 = arith.addf %22, %24 : vector<8x32xf32>
    %26 = vector.shape_cast %20 : vector<8x32xf32> to vector<1x8x32xf32>
    %27 = vector.shape_cast %26 : vector<1x8x32xf32> to vector<1x8x32xf32>
    %28 = vector.broadcast %27 : vector<1x8x32xf32> to vector<4x8x32xf32>
    %29 = vector.shape_cast %28 : vector<4x8x32xf32> to vector<32x32xf32>
    %30 = arith.mulf %29, %8 : vector<32x32xf32>
    %31 = vector.shape_cast %25 : vector<8x32xf32> to vector<1x8x32xf32>
    %32 = vector.shape_cast %31 : vector<1x8x32xf32> to vector<1x8x32xf32>
    %33 = vector.broadcast %32 : vector<1x8x32xf32> to vector<4x8x32xf32>
    %34 = vector.shape_cast %33 : vector<4x8x32xf32> to vector<32x32xf32>
    %35 = arith.mulf %34, %8 : vector<32x32xf32>
    %cst_29 = arith.constant 0.353553385 : f32
    %36 = vector.broadcast %cst_29 : f32 to vector<8x32xf32>
    %37 = arith.mulf %15, %36 : vector<8x32xf32>
    %cst_30 = arith.constant dense<0.000000e+00> : vector<8x32xf32>
    %38 = tpu.matmul %37, %30, %cst_30 {dimension_numbers = #tpu.dot_dimension_numbers<[1], [1], [0], [0], [0, 0, 1, 0], [], []>} : vector<8x32xf32>, vector<32x32xf32>, vector<8x32xf32> -> vector<8x32xf32>
    %39 = vector.shape_cast %38 : vector<8x32xf32> to vector<8x4x8xf32>
    %cst_31 = arith.constant dense<0xFF800000> : vector<8x4xf32>
    %40 = vector.multi_reduction <maximumf>, %39, %cst_31 [2] : vector<8x4x8xf32> to vector<8x4xf32>
    %41 = vector.shape_cast %40 : vector<8x4xf32> to vector<8x4x1xf32>
    %42 = vector.broadcast %41 : vector<8x4x1xf32> to vector<8x4x8xf32>
    %43 = arith.subf %39, %42 : vector<8x4x8xf32>
    %44 = math.exp %43 : vector<8x4x8xf32>
    %cst_32 = arith.constant dense<0.000000e+00> : vector<8x4xf32>
    %45 = vector.multi_reduction <add>, %44, %cst_32 [2] : vector<8x4x8xf32> to vector<8x4xf32>
    %46 = vector.shape_cast %44 : vector<8x4x8xf32> to vector<8x32xf32>
    %cst_33 = arith.constant dense<0.000000e+00> : vector<8x32xf32>
    %47 = tpu.matmul %46, %35, %cst_33 {dimension_numbers = #tpu.dot_dimension_numbers<[1], [0], [0], [1], [0, 0, 1, 1], [], []>} : vector<8x32xf32>, vector<32x32xf32>, vector<8x32xf32> -> vector<8x32xf32>
    %48 = tpu.reciprocal %45 {approx = true} : vector<8x4xf32> -> vector<8x4xf32>
    %49 = vector.shape_cast %48 : vector<8x4xf32> to vector<8x4x1xf32>
    %50 = vector.shape_cast %49 : vector<8x4x1xf32> to vector<8x4x1xf32>
    %51 = vector.broadcast %50 : vector<8x4x1xf32> to vector<8x4x8xf32>
    %52 = vector.shape_cast %51 : vector<8x4x8xf32> to vector<8x32xf32>
    %53 = arith.mulf %47, %52 : vector<8x32xf32>
    %c0_34 = arith.constant 0 : index
    %c0_35 = arith.constant 0 : index
    %54 = vector.load %arg13[%c0_34, %c0_35] : memref<32x32xf32, #tpu.memory_space<vmem>>, vector<32x32xf32>
    %cst_36 = arith.constant dense<0.000000e+00> : vector<8x32xf32>
    %55 = tpu.matmul %53, %54, %cst_36 {dimension_numbers = #tpu.dot_dimension_numbers<[1], [0], [0], [1], [0, 0, 1, 1], [], []>} : vector<8x32xf32>, vector<32x32xf32>, vector<8x32xf32> -> vector<8x32xf32>
    %c0_37 = arith.constant 0 : index
    %c0_38 = arith.constant 0 : index
    %56 = vector.load %arg14[%c0_37, %c0_38] : memref<1x32xf32, #tpu.memory_space<vmem>>, vector<1x32xf32>
    %57 = vector.broadcast %56 : vector<1x32xf32> to vector<8x32xf32>
    %58 = arith.addf %55, %57 : vector<8x32xf32>
    %59 = arith.addf %1, %58 : vector<8x32xf32>
    %c0_39 = arith.constant 0 : index
    %c0_40 = arith.constant 0 : index
    %60 = vector.load %arg27[%c0_39, %c0_40] : memref<1x32xf32, #tpu.memory_space<vmem>>, vector<1x32xf32>
    %c0_41 = arith.constant 0 : index
    %c0_42 = arith.constant 0 : index
    %61 = vector.load %arg28[%c0_41, %c0_42] : memref<1x32xf32, #tpu.memory_space<vmem>>, vector<1x32xf32>
    %cst_43 = arith.constant dense<0.000000e+00> : vector<8xf32>
    %62 = vector.multi_reduction <add>, %59, %cst_43 [1] : vector<8x32xf32> to vector<8xf32>
    %63 = vector.shape_cast %62 : vector<8xf32> to vector<8x1xf32>
    %cst_44 = arith.constant 3.200000e+01 : f32
    %64 = vector.broadcast %cst_44 : f32 to vector<8x1xf32>
    %65 = arith.divf %63, %64 : vector<8x1xf32>
    %66 = vector.broadcast %65 : vector<8x1xf32> to vector<8x32xf32>
    %67 = arith.subf %59, %66 : vector<8x32xf32>
    %68 = arith.mulf %67, %67 : vector<8x32xf32>
    %cst_45 = arith.constant dense<0.000000e+00> : vector<8xf32>
    %69 = vector.multi_reduction <add>, %68, %cst_45 [1] : vector<8x32xf32> to vector<8xf32>
    %70 = vector.shape_cast %69 : vector<8xf32> to vector<8x1xf32>
    %cst_46 = arith.constant 3.200000e+01 : f32
    %71 = vector.broadcast %cst_46 : f32 to vector<8x1xf32>
    %72 = arith.divf %70, %71 : vector<8x1xf32>
    %cst_47 = arith.constant 9.99999974E-6 : f32
    %73 = vector.broadcast %cst_47 : f32 to vector<8x1xf32>
    %74 = arith.addf %72, %73 : vector<8x1xf32>
    %75 = math.rsqrt %74 : vector<8x1xf32>
    %76 = vector.broadcast %75 : vector<8x1xf32> to vector<8x32xf32>
    %77 = arith.mulf %67, %76 : vector<8x32xf32>
    %78 = vector.broadcast %60 : vector<1x32xf32> to vector<8x32xf32>
    %79 = arith.mulf %77, %78 : vector<8x32xf32>
    %80 = vector.broadcast %61 : vector<1x32xf32> to vector<8x32xf32>
    %81 = arith.addf %79, %80 : vector<8x32xf32>
    %82 = arith.addf %81, %5 : vector<8x32xf32>
    %c0_48 = arith.constant 0 : index
    %c0_49 = arith.constant 0 : index
    %83 = vector.load %arg15[%c0_48, %c0_49] : memref<32x32xf32, #tpu.memory_space<vmem>>, vector<32x32xf32>
    %cst_50 = arith.constant dense<0.000000e+00> : vector<8x32xf32>
    %84 = tpu.matmul %82, %83, %cst_50 {dimension_numbers = #tpu.dot_dimension_numbers<[1], [0], [0], [1], [0, 0, 1, 1], [], []>} : vector<8x32xf32>, vector<32x32xf32>, vector<8x32xf32> -> vector<8x32xf32>
    %c0_51 = arith.constant 0 : index
    %c0_52 = arith.constant 0 : index
    %85 = vector.load %arg16[%c0_51, %c0_52] : memref<1x32xf32, #tpu.memory_space<vmem>>, vector<1x32xf32>
    %86 = vector.broadcast %85 : vector<1x32xf32> to vector<8x32xf32>
    %87 = arith.addf %84, %86 : vector<8x32xf32>
    %88 = arith.addf %3, %7 : vector<16x32xf32>
    %c0_53 = arith.constant 0 : index
    %c0_54 = arith.constant 0 : index
    %89 = vector.load %arg17[%c0_53, %c0_54] : memref<32x32xf32, #tpu.memory_space<vmem>>, vector<32x32xf32>
    %cst_55 = arith.constant dense<0.000000e+00> : vector<16x32xf32>
    %90 = tpu.matmul %88, %89, %cst_55 {dimension_numbers = #tpu.dot_dimension_numbers<[1], [0], [0], [1], [0, 0, 1, 1], [], []>} : vector<16x32xf32>, vector<32x32xf32>, vector<16x32xf32> -> vector<16x32xf32>
    %c0_56 = arith.constant 0 : index
    %c0_57 = arith.constant 0 : index
    %91 = vector.load %arg18[%c0_56, %c0_57] : memref<1x32xf32, #tpu.memory_space<vmem>>, vector<1x32xf32>
    %92 = vector.broadcast %91 : vector<1x32xf32> to vector<16x32xf32>
    %93 = arith.addf %90, %92 : vector<16x32xf32>
    %c0_58 = arith.constant 0 : index
    %c0_59 = arith.constant 0 : index
    %94 = vector.load %arg19[%c0_58, %c0_59] : memref<32x32xf32, #tpu.memory_space<vmem>>, vector<32x32xf32>
    %cst_60 = arith.constant dense<0.000000e+00> : vector<16x32xf32>
    %95 = tpu.matmul %3, %94, %cst_60 {dimension_numbers = #tpu.dot_dimension_numbers<[1], [0], [0], [1], [0, 0, 1, 1], [], []>} : vector<16x32xf32>, vector<32x32xf32>, vector<16x32xf32> -> vector<16x32xf32>
    %c0_61 = arith.constant 0 : index
    %c0_62 = arith.constant 0 : index
    %96 = vector.load %arg20[%c0_61, %c0_62] : memref<1x32xf32, #tpu.memory_space<vmem>>, vector<1x32xf32>
    %97 = vector.broadcast %96 : vector<1x32xf32> to vector<16x32xf32>
    %98 = arith.addf %95, %97 : vector<16x32xf32>
    %99 = vector.shape_cast %93 : vector<16x32xf32> to vector<1x16x32xf32>
    %100 = vector.shape_cast %99 : vector<1x16x32xf32> to vector<1x16x32xf32>
    %101 = vector.broadcast %100 : vector<1x16x32xf32> to vector<4x16x32xf32>
    %102 = vector.shape_cast %101 : vector<4x16x32xf32> to vector<64x32xf32>
    %103 = arith.mulf %102, %9 : vector<64x32xf32>
    %104 = vector.shape_cast %98 : vector<16x32xf32> to vector<1x16x32xf32>
    %105 = vector.shape_cast %104 : vector<1x16x32xf32> to vector<1x16x32xf32>
    %106 = vector.broadcast %105 : vector<1x16x32xf32> to vector<4x16x32xf32>
    %107 = vector.shape_cast %106 : vector<4x16x32xf32> to vector<64x32xf32>
    %108 = arith.mulf %107, %9 : vector<64x32xf32>
    %cst_63 = arith.constant 0.353553385 : f32
    %109 = vector.broadcast %cst_63 : f32 to vector<8x32xf32>
    %110 = arith.mulf %87, %109 : vector<8x32xf32>
    %cst_64 = arith.constant dense<0.000000e+00> : vector<8x64xf32>
    %111 = tpu.matmul %110, %103, %cst_64 {dimension_numbers = #tpu.dot_dimension_numbers<[1], [1], [0], [0], [0, 0, 1, 0], [], []>} : vector<8x32xf32>, vector<64x32xf32>, vector<8x64xf32> -> vector<8x64xf32>
    %112 = vector.shape_cast %111 : vector<8x64xf32> to vector<8x4x16xf32>
    %cst_65 = arith.constant dense<0xFF800000> : vector<8x4xf32>
    %113 = vector.multi_reduction <maximumf>, %112, %cst_65 [2] : vector<8x4x16xf32> to vector<8x4xf32>
    %114 = vector.shape_cast %113 : vector<8x4xf32> to vector<8x4x1xf32>
    %115 = vector.broadcast %114 : vector<8x4x1xf32> to vector<8x4x16xf32>
    %116 = arith.subf %112, %115 : vector<8x4x16xf32>
    %117 = math.exp %116 : vector<8x4x16xf32>
    %cst_66 = arith.constant dense<0.000000e+00> : vector<8x4xf32>
    %118 = vector.multi_reduction <add>, %117, %cst_66 [2] : vector<8x4x16xf32> to vector<8x4xf32>
    %119 = vector.shape_cast %117 : vector<8x4x16xf32> to vector<8x64xf32>
    %cst_67 = arith.constant dense<0.000000e+00> : vector<8x32xf32>
    %120 = tpu.matmul %119, %108, %cst_67 {dimension_numbers = #tpu.dot_dimension_numbers<[1], [0], [0], [1], [0, 0, 1, 1], [], []>} : vector<8x64xf32>, vector<64x32xf32>, vector<8x32xf32> -> vector<8x32xf32>
    %121 = tpu.reciprocal %118 {approx = true} : vector<8x4xf32> -> vector<8x4xf32>
    %122 = vector.shape_cast %121 : vector<8x4xf32> to vector<8x4x1xf32>
    %123 = vector.shape_cast %122 : vector<8x4x1xf32> to vector<8x4x1xf32>
    %124 = vector.broadcast %123 : vector<8x4x1xf32> to vector<8x4x8xf32>
    %125 = vector.shape_cast %124 : vector<8x4x8xf32> to vector<8x32xf32>
    %126 = arith.mulf %120, %125 : vector<8x32xf32>
    %c0_68 = arith.constant 0 : index
    %c0_69 = arith.constant 0 : index
    %127 = vector.load %arg21[%c0_68, %c0_69] : memref<32x32xf32, #tpu.memory_space<vmem>>, vector<32x32xf32>
    %cst_70 = arith.constant dense<0.000000e+00> : vector<8x32xf32>
    %128 = tpu.matmul %126, %127, %cst_70 {dimension_numbers = #tpu.dot_dimension_numbers<[1], [0], [0], [1], [0, 0, 1, 1], [], []>} : vector<8x32xf32>, vector<32x32xf32>, vector<8x32xf32> -> vector<8x32xf32>
    %c0_71 = arith.constant 0 : index
    %c0_72 = arith.constant 0 : index
    %129 = vector.load %arg22[%c0_71, %c0_72] : memref<1x32xf32, #tpu.memory_space<vmem>>, vector<1x32xf32>
    %130 = vector.broadcast %129 : vector<1x32xf32> to vector<8x32xf32>
    %131 = arith.addf %128, %130 : vector<8x32xf32>
    %132 = arith.addf %81, %131 : vector<8x32xf32>
    %c0_73 = arith.constant 0 : index
    %c0_74 = arith.constant 0 : index
    %133 = vector.load %arg29[%c0_73, %c0_74] : memref<1x32xf32, #tpu.memory_space<vmem>>, vector<1x32xf32>
    %c0_75 = arith.constant 0 : index
    %c0_76 = arith.constant 0 : index
    %134 = vector.load %arg30[%c0_75, %c0_76] : memref<1x32xf32, #tpu.memory_space<vmem>>, vector<1x32xf32>
    %cst_77 = arith.constant dense<0.000000e+00> : vector<8xf32>
    %135 = vector.multi_reduction <add>, %132, %cst_77 [1] : vector<8x32xf32> to vector<8xf32>
    %136 = vector.shape_cast %135 : vector<8xf32> to vector<8x1xf32>
    %cst_78 = arith.constant 3.200000e+01 : f32
    %137 = vector.broadcast %cst_78 : f32 to vector<8x1xf32>
    %138 = arith.divf %136, %137 : vector<8x1xf32>
    %139 = vector.broadcast %138 : vector<8x1xf32> to vector<8x32xf32>
    %140 = arith.subf %132, %139 : vector<8x32xf32>
    %141 = arith.mulf %140, %140 : vector<8x32xf32>
    %cst_79 = arith.constant dense<0.000000e+00> : vector<8xf32>
    %142 = vector.multi_reduction <add>, %141, %cst_79 [1] : vector<8x32xf32> to vector<8xf32>
    %143 = vector.shape_cast %142 : vector<8xf32> to vector<8x1xf32>
    %cst_80 = arith.constant 3.200000e+01 : f32
    %144 = vector.broadcast %cst_80 : f32 to vector<8x1xf32>
    %145 = arith.divf %143, %144 : vector<8x1xf32>
    %cst_81 = arith.constant 9.99999974E-6 : f32
    %146 = vector.broadcast %cst_81 : f32 to vector<8x1xf32>
    %147 = arith.addf %145, %146 : vector<8x1xf32>
    %148 = math.rsqrt %147 : vector<8x1xf32>
    %149 = vector.broadcast %148 : vector<8x1xf32> to vector<8x32xf32>
    %150 = arith.mulf %140, %149 : vector<8x32xf32>
    %151 = vector.broadcast %133 : vector<1x32xf32> to vector<8x32xf32>
    %152 = arith.mulf %150, %151 : vector<8x32xf32>
    %153 = vector.broadcast %134 : vector<1x32xf32> to vector<8x32xf32>
    %154 = arith.addf %152, %153 : vector<8x32xf32>
    %c0_82 = arith.constant 0 : index
    %c0_83 = arith.constant 0 : index
    %155 = vector.load %arg23[%c0_82, %c0_83] : memref<32x64xf32, #tpu.memory_space<vmem>>, vector<32x64xf32>
    %cst_84 = arith.constant dense<0.000000e+00> : vector<8x64xf32>
    %156 = tpu.matmul %154, %155, %cst_84 {dimension_numbers = #tpu.dot_dimension_numbers<[1], [0], [0], [1], [0, 0, 1, 1], [], []>} : vector<8x32xf32>, vector<32x64xf32>, vector<8x64xf32> -> vector<8x64xf32>
    %c0_85 = arith.constant 0 : index
    %c0_86 = arith.constant 0 : index
    %157 = vector.load %arg24[%c0_85, %c0_86] : memref<1x64xf32, #tpu.memory_space<vmem>>, vector<1x64xf32>
    %158 = vector.broadcast %157 : vector<1x64xf32> to vector<8x64xf32>
    %159 = arith.addf %156, %158 : vector<8x64xf32>
    %cst_87 = arith.constant 0.000000e+00 : f32
    %160 = vector.broadcast %cst_87 : f32 to vector<8x64xf32>
    %161 = arith.maximumf %159, %160 : vector<8x64xf32>
    %c0_88 = arith.constant 0 : index
    %c0_89 = arith.constant 0 : index
    %162 = vector.load %arg25[%c0_88, %c0_89] : memref<64x32xf32, #tpu.memory_space<vmem>>, vector<64x32xf32>
    %cst_90 = arith.constant dense<0.000000e+00> : vector<8x32xf32>
    %163 = tpu.matmul %161, %162, %cst_90 {dimension_numbers = #tpu.dot_dimension_numbers<[1], [0], [0], [1], [0, 0, 1, 1], [], []>} : vector<8x64xf32>, vector<64x32xf32>, vector<8x32xf32> -> vector<8x32xf32>
    %c0_91 = arith.constant 0 : index
    %c0_92 = arith.constant 0 : index
    %164 = vector.load %arg26[%c0_91, %c0_92] : memref<1x32xf32, #tpu.memory_space<vmem>>, vector<1x32xf32>
    %165 = vector.broadcast %164 : vector<1x32xf32> to vector<8x32xf32>
    %166 = arith.addf %163, %165 : vector<8x32xf32>
    %167 = arith.addf %154, %166 : vector<8x32xf32>
    %c0_93 = arith.constant 0 : index
    %c0_94 = arith.constant 0 : index
    %168 = vector.load %arg31[%c0_93, %c0_94] : memref<1x32xf32, #tpu.memory_space<vmem>>, vector<1x32xf32>
    %c0_95 = arith.constant 0 : index
    %c0_96 = arith.constant 0 : index
    %169 = vector.load %arg32[%c0_95, %c0_96] : memref<1x32xf32, #tpu.memory_space<vmem>>, vector<1x32xf32>
    %cst_97 = arith.constant dense<0.000000e+00> : vector<8xf32>
    %170 = vector.multi_reduction <add>, %167, %cst_97 [1] : vector<8x32xf32> to vector<8xf32>
    %171 = vector.shape_cast %170 : vector<8xf32> to vector<8x1xf32>
    %cst_98 = arith.constant 3.200000e+01 : f32
    %172 = vector.broadcast %cst_98 : f32 to vector<8x1xf32>
    %173 = arith.divf %171, %172 : vector<8x1xf32>
    %174 = vector.broadcast %173 : vector<8x1xf32> to vector<8x32xf32>
    %175 = arith.subf %167, %174 : vector<8x32xf32>
    %176 = arith.mulf %175, %175 : vector<8x32xf32>
    %cst_99 = arith.constant dense<0.000000e+00> : vector<8xf32>
    %177 = vector.multi_reduction <add>, %176, %cst_99 [1] : vector<8x32xf32> to vector<8xf32>
    %178 = vector.shape_cast %177 : vector<8xf32> to vector<8x1xf32>
    %cst_100 = arith.constant 3.200000e+01 : f32
    %179 = vector.broadcast %cst_100 : f32 to vector<8x1xf32>
    %180 = arith.divf %178, %179 : vector<8x1xf32>
    %cst_101 = arith.constant 9.99999974E-6 : f32
    %181 = vector.broadcast %cst_101 : f32 to vector<8x1xf32>
    %182 = arith.addf %180, %181 : vector<8x1xf32>
    %183 = math.rsqrt %182 : vector<8x1xf32>
    %184 = vector.broadcast %183 : vector<8x1xf32> to vector<8x32xf32>
    %185 = arith.mulf %175, %184 : vector<8x32xf32>
    %186 = vector.broadcast %168 : vector<1x32xf32> to vector<8x32xf32>
    %187 = arith.mulf %185, %186 : vector<8x32xf32>
    %188 = vector.broadcast %169 : vector<1x32xf32> to vector<8x32xf32>
    %189 = arith.addf %187, %188 : vector<8x32xf32>
    %c0_102 = arith.constant 0 : index
    %c0_103 = arith.constant 0 : index
    %c0_104 = arith.constant 0 : index
    %190 = vector.load %arg33[%c0_102, %c0_103, %c0_104] : memref<1x8x32xf32, #tpu.memory_space<vmem>>, vector<1x8x32xf32>
    %191 = vector.shape_cast %190 : vector<1x8x32xf32> to vector<8x32xf32>
    %192 = vector.shape_cast %189 : vector<8x32xf32> to vector<1x8x32xf32>
    tpu.vector_store %arg33[%c0_102, %c0_103, %c0_104], %192 {strides = array<i32>} : memref<1x8x32xf32, #tpu.memory_space<vmem>>, vector<1x8x32xf32>,
    return
  }
  func.func @transform_0(%arg0: i32) -> (i32, i32, i32) {
    %c0_i32 = arith.constant 0 : i32
    %c0_i32_0 = arith.constant 0 : i32
    %c0_i32_1 = arith.constant 0 : i32
    return %arg0, %c0_i32, %c0_i32_0 : i32, i32, i32
  }
  func.func @transform_1(%arg0: i32) -> (i32, i32, i32) {
    %c0_i32 = arith.constant 0 : i32
    %c0_i32_0 = arith.constant 0 : i32
    %c0_i32_1 = arith.constant 0 : i32
    return %arg0, %c0_i32, %c0_i32_0 : i32, i32, i32
  }
  func.func @transform_2(%arg0: i32) -> (i32, i32, i32) {
    %c0_i32 = arith.constant 0 : i32
    %c0_i32_0 = arith.constant 0 : i32
    %c0_i32_1 = arith.constant 0 : i32
    return %arg0, %c0_i32, %c0_i32_0 : i32, i32, i32
  }
  func.func @transform_3(%arg0: i32) -> (i32, i32, i32) {
    %c0_i32 = arith.constant 0 : i32
    %c0_i32_0 = arith.constant 0 : i32
    %c0_i32_1 = arith.constant 0 : i32
    return %arg0, %c0_i32, %c0_i32_0 : i32, i32, i32
  }
  func.func @transform_4(%arg0: i32) -> (i32, i32) {
    %c0_i32 = arith.constant 0 : i32
    %c0_i32_0 = arith.constant 0 : i32
    %c0_i32_1 = arith.constant 0 : i32
    return %c0_i32, %c0_i32_0 : i32, i32
  }
  func.func @transform_5(%arg0: i32) -> (i32, i32) {
    %c0_i32 = arith.constant 0 : i32
    %c0_i32_0 = arith.constant 0 : i32
    %c0_i32_1 = arith.constant 0 : i32
    return %c0_i32, %c0_i32_0 : i32, i32
  }
  func.func @transform_6(%arg0: i32) -> (i32, i32) {
    %c0_i32 = arith.constant 0 : i32
    %c0_i32_0 = arith.constant 0 : i32
    %c0_i32_1 = arith.constant 0 : i32
    return %c0_i32, %c0_i32_0 : i32, i32
  }
  func.func @transform_7(%arg0: i32) -> (i32, i32) {
    %c0_i32 = arith.constant 0 : i32
    %c0_i32_0 = arith.constant 0 : i32
    %c0_i32_1 = arith.constant 0 : i32
    return %c0_i32, %c0_i32_0 : i32, i32
  }
  func.func @transform_8(%arg0: i32) -> (i32, i32) {
    %c0_i32 = arith.constant 0 : i32
    %c0_i32_0 = arith.constant 0 : i32
    %c0_i32_1 = arith.constant 0 : i32
    return %c0_i32, %c0_i32_0 : i32, i32
  }
  func.func @transform_9(%arg0: i32) -> (i32, i32) {
    %c0_i32 = arith.constant 0 : i32
    %c0_i32_0 = arith.constant 0 : i32
    %c0_i32_1 = arith.constant 0 : i32
    return %c0_i32, %c0_i32_0 : i32, i32
  }
  func.func @transform_10(%arg0: i32) -> (i32, i32) {
    %c0_i32 = arith.constant 0 : i32
    %c0_i32_0 = arith.constant 0 : i32
    %c0_i32_1 = arith.constant 0 : i32
    return %c0_i32, %c0_i32_0 : i32, i32
  }
  func.func @transform_11(%arg0: i32) -> (i32, i32) {
    %c0_i32 = arith.constant 0 : i32
    %c0_i32_0 = arith.constant 0 : i32
    %c0_i32_1 = arith.constant 0 : i32
    return %c0_i32, %c0_i32_0 : i32, i32
  }
  func.func @transform_12(%arg0: i32) -> (i32, i32) {
    %c0_i32 = arith.constant 0 : i32
    %c0_i32_0 = arith.constant 0 : i32
    %c0_i32_1 = arith.constant 0 : i32
    return %c0_i32, %c0_i32_0 : i32, i32
  }
  func.func @transform_13(%arg0: i32) -> (i32, i32) {
    %c0_i32 = arith.constant 0 : i32
    %c0_i32_0 = arith.constant 0 : i32
    %c0_i32_1 = arith.constant 0 : i32
    return %c0_i32, %c0_i32_0 : i32, i32
  }
  func.func @transform_14(%arg0: i32) -> (i32, i32) {
    %c0_i32 = arith.constant 0 : i32
    %c0_i32_0 = arith.constant 0 : i32
    %c0_i32_1 = arith.constant 0 : i32
    return %c0_i32, %c0_i32_0 : i32, i32
  }
  func.func @transform_15(%arg0: i32) -> (i32, i32) {
    %c0_i32 = arith.constant 0 : i32
    %c0_i32_0 = arith.constant 0 : i32
    %c0_i32_1 = arith.constant 0 : i32
    return %c0_i32, %c0_i32_0 : i32, i32
  }
  func.func @transform_16(%arg0: i32) -> (i32, i32) {
    %c0_i32 = arith.constant 0 : i32
    %c0_i32_0 = arith.constant 0 : i32
    %c0_i32_1 = arith.constant 0 : i32
    return %c0_i32, %c0_i32_0 : i32, i32
  }
  func.func @transform_17(%arg0: i32) -> (i32, i32) {
    %c0_i32 = arith.constant 0 : i32
    %c0_i32_0 = arith.constant 0 : i32
    %c0_i32_1 = arith.constant 0 : i32
    return %c0_i32, %c0_i32_0 : i32, i32
  }
  func.func @transform_18(%arg0: i32) -> (i32, i32) {
    %c0_i32 = arith.constant 0 : i32
    %c0_i32_0 = arith.constant 0 : i32
    %c0_i32_1 = arith.constant 0 : i32
    return %c0_i32, %c0_i32_0 : i32, i32
  }
  func.func @transform_19(%arg0: i32) -> (i32, i32) {
    %c0_i32 = arith.constant 0 : i32
    %c0_i32_0 = arith.constant 0 : i32
    %c0_i32_1 = arith.constant 0 : i32
    return %c0_i32, %c0_i32_0 : i32, i32
  }
  func.func @transform_20(%arg0: i32) -> (i32, i32) {
    %c0_i32 = arith.constant 0 : i32
    %c0_i32_0 = arith.constant 0 : i32
    %c0_i32_1 = arith.constant 0 : i32
    return %c0_i32, %c0_i32_0 : i32, i32
  }
  func.func @transform_21(%arg0: i32) -> (i32, i32) {
    %c0_i32 = arith.constant 0 : i32
    %c0_i32_0 = arith.constant 0 : i32
    %c0_i32_1 = arith.constant 0 : i32
    return %c0_i32, %c0_i32_0 : i32, i32
  }
  func.func @transform_22(%arg0: i32) -> (i32, i32) {
    %c0_i32 = arith.constant 0 : i32
    %c0_i32_0 = arith.constant 0 : i32
    %c0_i32_1 = arith.constant 0 : i32
    return %c0_i32, %c0_i32_0 : i32, i32
  }
  func.func @transform_23(%arg0: i32) -> (i32, i32) {
    %c0_i32 = arith.constant 0 : i32
    %c0_i32_0 = arith.constant 0 : i32
    %c0_i32_1 = arith.constant 0 : i32
    return %c0_i32, %c0_i32_0 : i32, i32
  }
  func.func @transform_24(%arg0: i32) -> (i32, i32) {
    %c0_i32 = arith.constant 0 : i32
    %c0_i32_0 = arith.constant 0 : i32
    %c0_i32_1 = arith.constant 0 : i32
    return %c0_i32, %c0_i32_0 : i32, i32
  }
  func.func @transform_25(%arg0: i32) -> (i32, i32) {
    %c0_i32 = arith.constant 0 : i32
    %c0_i32_0 = arith.constant 0 : i32
    %c0_i32_1 = arith.constant 0 : i32
    return %c0_i32, %c0_i32_0 : i32, i32
  }
  func.func @transform_26(%arg0: i32) -> (i32, i32) {
    %c0_i32 = arith.constant 0 : i32
    %c0_i32_0 = arith.constant 0 : i32
    %c0_i32_1 = arith.constant 0 : i32
    return %c0_i32, %c0_i32_0 : i32, i32
  }
  func.func @transform_27(%arg0: i32) -> (i32, i32) {
    %c0_i32 = arith.constant 0 : i32
    %c0_i32_0 = arith.constant 0 : i32
    %c0_i32_1 = arith.constant 0 : i32
    return %c0_i32, %c0_i32_0 : i32, i32
  }
  func.func @transform_28(%arg0: i32) -> (i32, i32) {
    %c0_i32 = arith.constant 0 : i32
    %c0_i32_0 = arith.constant 0 : i32
    %c0_i32_1 = arith.constant 0 : i32
    return %c0_i32, %c0_i32_0 : i32, i32
  }
  func.func @transform_29(%arg0: i32) -> (i32, i32) {
    %c0_i32 = arith.constant 0 : i32
    %c0_i32_0 = arith.constant 0 : i32
    %c0_i32_1 = arith.constant 0 : i32
    return %c0_i32, %c0_i32_0 : i32, i32
  }
  func.func @transform_30(%arg0: i32) -> (i32, i32) {
    %c0_i32 = arith.constant 0 : i32
    %c0_i32_0 = arith.constant 0 : i32
    %c0_i32_1 = arith.constant 0 : i32
    return %c0_i32, %c0_i32_0 : i32, i32
  }
  func.func @transform_31(%arg0: i32) -> (i32, i32) {
    %c0_i32 = arith.constant 0 : i32
    %c0_i32_0 = arith.constant 0 : i32
    %c0_i32_1 = arith.constant 0 : i32
    return %c0_i32, %c0_i32_0 : i32, i32
  }
  func.func @transform_32(%arg0: i32) -> (i32, i32, i32) {
    %c0_i32 = arith.constant 0 : i32
    %c0_i32_0 = arith.constant 0 : i32
    %c0_i32_1 = arith.constant 0 : i32
    return %arg0, %c0_i32, %c0_i32_0 : i32, i32, i32
  }
}

</mosaic_0001>

<llo_original>
// kernel: decoder_layer_forward.1
$region0: #{decoder_layer_forward.1}
  #allocation0 [shape = 'u32[]', space=smem, size = 0x4, offset = 0x4, fixed_abs, tag = 'smem constant byte address 0x4 - core index']
  #allocation1 [shape = 'u32[144,128]{1,0:T(1,128)}', space=vmem, size = 0x12000, scoped, tag = 'internal scratch']
  %s0 = inlined_call_operand.smem [shape: u32[33], index: -1, kind: input, shape index: {}]
  %s1 = sld [smem:[%s0]]
  %s2 = scalar_lea.smem %s0, 1
  %s3 = sld [smem:[%s2]]
  %s4 = scalar_lea.smem %s0, 2
  %s5 = sld [smem:[%s4]]
  %s6 = scalar_lea.smem %s0, 3
  %s7 = sld [smem:[%s6]]
  %s8 = scalar_lea.smem %s0, 4
  %s9 = sld [smem:[%s8]]
  %s10 = scalar_lea.smem %s0, 5
  %s11 = sld [smem:[%s10]]
  %s12 = scalar_lea.smem %s0, 6
  %s13 = sld [smem:[%s12]]
  %s14 = scalar_lea.smem %s0, 7
  %s15 = sld [smem:[%s14]]
  %s16 = scalar_lea.smem %s0, 8
  %s17 = sld [smem:[%s16]]
  %s18 = scalar_lea.smem %s0, 9
  %s19 = sld [smem:[%s18]]
  %s20 = scalar_lea.smem %s0, 10
  %s21 = sld [smem:[%s20]]
  %s22 = scalar_lea.smem %s0, 11
  %s23 = sld [smem:[%s22]]
  %s24 = scalar_lea.smem %s0, 12
  %s25 = sld [smem:[%s24]]
  %s26 = scalar_lea.smem %s0, 13
  %s27 = sld [smem:[%s26]]
  %s28 = scalar_lea.smem %s0, 14
  %s29 = sld [smem:[%s28]]
  %s30 = scalar_lea.smem %s0, 15
  %s31 = sld [smem:[%s30]]
  %s32 = scalar_lea.smem %s0, 16
  %s33 = sld [smem:[%s32]]
  %s34 = scalar_lea.smem %s0, 17
  %s35 = sld [smem:[%s34]]
  %s36 = scalar_lea.smem %s0, 18
  %s37 = sld [smem:[%s36]]
  %s38 = scalar_lea.smem %s0, 19
  %s39 = sld [smem:[%s38]]
  %s40 = scalar_lea.smem %s0, 20
  %s41 = sld [smem:[%s40]]
  %s42 = scalar_lea.smem %s0, 21
  %s43 = sld [smem:[%s42]]
  %s44 = scalar_lea.smem %s0, 22
  %s45 = sld [smem:[%s44]]
  %s46 = scalar_lea.smem %s0, 23
  %s47 = sld [smem:[%s46]]
  %s48 = scalar_lea.smem %s0, 24
  %s49 = sld [smem:[%s48]]
  %s50 = scalar_lea.smem %s0, 25
  %s51 = sld [smem:[%s50]]
  %s52 = scalar_lea.smem %s0, 26
  %s53 = sld [smem:[%s52]]
  %s54 = scalar_lea.smem %s0, 27
  %s55 = sld [smem:[%s54]]
  %s56 = scalar_lea.smem %s0, 28
  %s57 = sld [smem:[%s56]]
  %s58 = scalar_lea.smem %s0, 29
  %s59 = sld [smem:[%s58]]
  %s60 = scalar_lea.smem %s0, 30
  %s61 = sld [smem:[%s60]]
  %s62 = scalar_lea.smem %s0, 31
  %s63 = sld [smem:[%s62]]
  %s64 = scalar_lea.smem %s0, 32
  %s65 = sld [smem:[%s64]]
  %s66 = sld [smem:[#allocation0]]
  $region241: #{decoder_layer_forward.1} parent=0
    _
  %s68 = ssub.s32 1, %s66
  %s69 = scalar_select 0, %s68, %s66
  $region1: #{decoder_layer_forward.1} parent=0
    #allocation2 [shape = 'u8[512]{0}', space=vmem, size = 0x400, scoped, tag = 'input window, operand 9, single buffered']
    #allocation3 [shape = 's32[2]{0}', space=sflag, size = 0x8, scoped, tag = 'scoped memory for decoder_layer_forward.1']
    #allocation4 [shape = 'u8[512]{0}', space=vmem, size = 0x400, scoped, tag = 'input window, operand 11, single buffered']
    #allocation5 [shape = 's32[1]{0}', space=sflag, size = 0x4, scoped, tag = 'scoped memory for decoder_layer_forward.1']
    #allocation6 [shape = 'u8[512]{0}', space=vmem, size = 0x400, scoped, tag = 'input window, operand 13, single buffered']
    #allocation7 [shape = 'u8[16384]{0}', space=vmem, size = 0x4000, scoped, tag = 'input window, operand 14, single buffered']
    #allocation8 [shape = 's32[1]{0}', space=sflag, size = 0x4, scoped, tag = 'scoped memory for decoder_layer_forward.1']
    #allocation9 [shape = 'u8[512]{0}', space=vmem, size = 0x400, scoped, tag = 'input window, operand 15, single buffered']
    #allocation10 [shape = 'u8[16384]{0}', space=vmem, size = 0x4000, scoped, tag = 'input window, operand 16, single buffered']
    #allocation11 [shape = 's32[1]{0}', space=sflag, size = 0x4, scoped, tag = 'scoped memory for decoder_layer_forward.1']
    #allocation12 [shape = 'u8[512]{0}', space=vmem, size = 0x400, scoped, tag = 'input window, operand 17, single buffered']
    #allocation13 [shape = 'u8[16384]{0}', space=vmem, size = 0x4000, scoped, tag = 'input window, operand 18, single buffered']
    #allocation14 [shape = 's32[1]{0}', space=sflag, size = 0x4, scoped, tag = 'scoped memory for decoder_layer_forward.1']
    #allocation15 [shape = 'u8[512]{0}', space=vmem, size = 0x400, scoped, tag = 'input window, operand 19, single buffered']
    #allocation16 [shape = 'u8[16384]{0}', space=vmem, size = 0x4000, scoped, tag = 'input window, operand 20, single buffered']
    #allocation17 [shape = 's32[1]{0}', space=sflag, size = 0x4, scoped, tag = 'scoped memory for decoder_layer_forward.1']
    #allocation18 [shape = 'u8[512]{0}', space=vmem, size = 0x400, scoped, tag = 'input window, operand 21, single buffered']
    #allocation19 [shape = 'u8[16384]{0}', space=vmem, size = 0x4000, scoped, tag = 'input window, operand 22, single buffered']
    #allocation20 [shape = 's32[1]{0}', space=sflag, size = 0x4, scoped, tag = 'scoped memory for decoder_layer_forward.1']
    #allocation21 [shape = 'u8[512]{0}', space=vmem, size = 0x400, scoped, tag = 'input window, operand 23, single buffered']
    #allocation22 [shape = 'u8[512]{0}', space=vmem, size = 0x400, scoped, tag = 'input window, operand 25, single buffered']
    #allocation23 [shape = 's32[1]{0}', space=sflag, size = 0x4, scoped, tag = 'scoped memory for decoder_layer_forward.1']
    #allocation24 [shape = 'u8[512]{0}', space=vmem, size = 0x400, scoped, tag = 'input window, operand 26, single buffered']
    #allocation25 [shape = 'u8[512]{0}', space=vmem, size = 0x400, scoped, tag = 'input window, operand 27, single buffered']
    #allocation26 [shape = 's32[1]{0}', space=sflag, size = 0x4, scoped, tag = 'scoped memory for decoder_layer_forward.1']
    #allocation27 [shape = 'u8[512]{0}', space=vmem, size = 0x400, scoped, tag = 'input window, operand 28, single buffered']
    #allocation28 [shape = 'u8[512]{0}', space=vmem, size = 0x400, scoped, tag = 'input window, operand 29, single buffered']
    #allocation29 [shape = 's32[1]{0}', space=sflag, size = 0x4, scoped, tag = 'scoped memory for decoder_layer_forward.1']
    #allocation30 [shape = 'u8[512]{0}', space=vmem, size = 0x400, scoped, tag = 'input window, operand 30, single buffered']
    #allocation31 [shape = 'u8[512]{0}', space=vmem, size = 0x400, scoped, tag = 'input window, operand 31, single buffered']
    #allocation32 [shape = 's32[1]{0}', space=sflag, size = 0x4, scoped, tag = 'scoped memory for decoder_layer_forward.1']
    %70 = vsyncpa [#allocation3], 0
    %71 = vsyncpa [#allocation5], 0
    %72 = vsyncpa [#allocation8], 0
    %73 = vsyncpa [#allocation11], 0
    %74 = vsyncpa [#allocation14], 0
    %75 = vsyncpa [#allocation17], 0
    %76 = vsyncpa [#allocation20], 0
    %77 = vsyncpa [#allocation23], 0
    %78 = vsyncpa [#allocation26], 0
    %79 = vsyncpa [#allocation29], 0
    %80 = vsyncpa [#allocation32], 0
    loop: start=0, step=1, limit=4
    $region2: #{decoder_layer_forward.1} parent=1 // loop_pre_header
      _
    $region3: #{decoder_layer_forward.1} parent=1 // loop_header
      %s82 = sphi 0, %s86
      %p83 = scmp.ge.s32.totalorder %s82, 4
      %s92 = sphi 0, %s94
      %s95 = sphi 0, %s92
      %s96 = sphi 0, %s95
      %s112 = sphi 0, %s96
      %s118 = sphi 0, %s120
      %s121 = sphi 0, %s118
      %s122 = sphi 0, %s121
      %s138 = sphi 0, %s122
      %s144 = sphi 0, %s146
      %s147 = sphi 0, %s144
      %s148 = sphi 0, %s147
      %s164 = sphi 0, %s148
      %s170 = sphi 0, %s172
      %s173 = sphi 0, %s170
      %s174 = sphi 0, %s173
      %s190 = sphi 0, %s174
      %s194 = sphi 0, %s194
      %s196 = sphi 0, %s194
      %s197 = sphi 0, %s196
      %s211 = sphi 0, %s197
      %s215 = sphi 0, %s215
      %s217 = sphi 0, %s215
      %s218 = sphi 0, %s217
      %s232 = sphi 0, %s218
      %s236 = sphi 0, %s236
      %s238 = sphi 0, %s236
      %s239 = sphi 0, %s238
      %s253 = sphi 0, %s239
      %s257 = sphi 0, %s257
      %s259 = sphi 0, %s257
      %s260 = sphi 0, %s259
      %s274 = sphi 0, %s260
      %s278 = sphi 0, %s278
      %s280 = sphi 0, %s278
      %s281 = sphi 0, %s280
      %s295 = sphi 0, %s281
      %s299 = sphi 0, %s299
      %s301 = sphi 0, %s299
      %s302 = sphi 0, %s301
      %s316 = sphi 0, %s302
      %s320 = sphi 0, %s320
      %s322 = sphi 0, %s320
      %s323 = sphi 0, %s322
      %s337 = sphi 0, %s323
      %s341 = sphi 0, %s341
      %s343 = sphi 0, %s341
      %s344 = sphi 0, %s343
      %s358 = sphi 0, %s344
      %s362 = sphi 0, %s362
      %s364 = sphi 0, %s362
      %s365 = sphi 0, %s364
      %s379 = sphi 0, %s365
      %s383 = sphi 0, %s383
      %s385 = sphi 0, %s383
      %s386 = sphi 0, %s385
      %s400 = sphi 0, %s386
      %s404 = sphi 0, %s404
      %s406 = sphi 0, %s404
      %s407 = sphi 0, %s406
      %s421 = sphi 0, %s407
      %s425 = sphi 0, %s425
      %s427 = sphi 0, %s425
      %s428 = sphi 0, %s427
      %s442 = sphi 0, %s428
      %s446 = sphi 0, %s446
      %s448 = sphi 0, %s446
      %s449 = sphi 0, %s448
      %s463 = sphi 0, %s449
      %s467 = sphi 0, %s467
      %s469 = sphi 0, %s467
      %s470 = sphi 0, %s469
      %s484 = sphi 0, %s470
      %s488 = sphi 0, %s488
      %s490 = sphi 0, %s488
      %s491 = sphi 0, %s490
      %s505 = sphi 0, %s491
      %s509 = sphi 0, %s509
      %s511 = sphi 0, %s509
      %s512 = sphi 0, %s511
      %s526 = sphi 0, %s512
      %s530 = sphi 0, %s530
      %s532 = sphi 0, %s530
      %s533 = sphi 0, %s532
      %s547 = sphi 0, %s533
      %s551 = sphi 0, %s551
      %s553 = sphi 0, %s551
      %s554 = sphi 0, %s553
      %s568 = sphi 0, %s554
      %s572 = sphi 0, %s572
      %s574 = sphi 0, %s572
      %s575 = sphi 0, %s574
      %s589 = sphi 0, %s575
      %s593 = sphi 0, %s593
      %s595 = sphi 0, %s593
      %s596 = sphi 0, %s595
      %s610 = sphi 0, %s596
      %s614 = sphi 0, %s614
      %s616 = sphi 0, %s614
      %s617 = sphi 0, %s616
      %s631 = sphi 0, %s617
      %s635 = sphi 0, %s635
      %s637 = sphi 0, %s635
      %s638 = sphi 0, %s637
      %s652 = sphi 0, %s638
      %s656 = sphi 0, %s656
      %s658 = sphi 0, %s656
      %s659 = sphi 0, %s658
      %s673 = sphi 0, %s659
      %s677 = sphi 0, %s677
      %s679 = sphi 0, %s677
      %s680 = sphi 0, %s679
      %s694 = sphi 0, %s680
      %s698 = sphi 0, %s698
      %s700 = sphi 0, %s698
      %s701 = sphi 0, %s700
      %s715 = sphi 0, %s701
      %s719 = sphi 0, %s719
      %s721 = sphi 0, %s719
      %s722 = sphi 0, %s721
      %s736 = sphi 0, %s722
      %s740 = sphi 0, %s740
      %s742 = sphi 0, %s740
      %s743 = sphi 0, %s742
      %s757 = sphi 0, %s743
      %s761 = sphi 0, %s761
      %s763 = sphi 0, %s761
      %s764 = sphi 0, %s763
      %s778 = sphi 0, %s764
      %s784 = sphi 0, %s786
      %s787 = sphi 0, %s784
      %s788 = sphi 0, %s787
      %s804 = sphi 0, %s788
    $region4: #{decoder_layer_forward.1} parent=1 // loop_header_branch
      %85 = sbr.rel (%p83) target = $region8
    $region5: #{decoder_layer_forward.1} parent=1 // loop_body
      %s87 = ssub.s32 %s82, 1
      %s88 = ssub.s32 %s82, 2
      %s89 = sadd.s32 %s82, 1
      %s90 = ssub.s32 %s82, %s89
      %p91 = scmp.eq.s32.totalorder %s90, 0
      %s93 = sadd.s32 %s92, 1
      %s94 = scalar_select %p91, %s92, %s93
      %p97 = pneg %p91
      %p98 = scmp.eq.s32.totalorder %s82, 1
      %p99 = por %p97, %p98
      %p100 = scmp.ne.s32.totalorder %s92, %s95
      %p101 = scmp.eq.s32.totalorder %s82, 0
      %p102 = por %p100, %p101
      %p103 = scmp.ne.s32.totalorder %s92, %s95
      %p104 = scmp.eq.s32.totalorder %s87, 1
      %p105 = por %p103, %p104
      %p106 = scmp.ne.s32.totalorder %s95, %s96
      %p107 = scmp.eq.s32.totalorder %s87, 0
      %p108 = por %p106, %p107
      %p109 = scmp.ne.s32.totalorder %s95, %s96
      %p110 = scmp.eq.s32.totalorder %s88, 1
      %p111 = por %p109, %p110
      %p113 = scmp.ne.s32.totalorder %s96, %s112
      %p114 = scmp.eq.s32.totalorder %s88, 0
      %p115 = por %p113, %p114
      %s116 = ssub.s32 %s82, %s89
      %p117 = scmp.eq.s32.totalorder %s116, 0
      %s119 = sadd.s32 %s118, 1
      %s120 = scalar_select %p117, %s118, %s119
      %p123 = pneg %p117
      %p124 = scmp.eq.s32.totalorder %s82, 1
      %p125 = por %p123, %p124
      %p126 = scmp.ne.s32.totalorder %s118, %s121
      %p127 = scmp.eq.s32.totalorder %s82, 0
      %p128 = por %p126, %p127
      %p129 = scmp.ne.s32.totalorder %s118, %s121
      %p130 = scmp.eq.s32.totalorder %s87, 1
      %p131 = por %p129, %p130
      %p132 = scmp.ne.s32.totalorder %s121, %s122
      %p133 = scmp.eq.s32.totalorder %s87, 0
      %p134 = por %p132, %p133
      %p135 = scmp.ne.s32.totalorder %s121, %s122
      %p136 = scmp.eq.s32.totalorder %s88, 1
      %p137 = por %p135, %p136
      %p139 = scmp.ne.s32.totalorder %s122, %s138
      %p140 = scmp.eq.s32.totalorder %s88, 0
      %p141 = por %p139, %p140
      %s142 = ssub.s32 %s82, %s89
      %p143 = scmp.eq.s32.totalorder %s142, 0
      %s145 = sadd.s32 %s144, 1
      %s146 = scalar_select %p143, %s144, %s145
      %p149 = pneg %p143
      %p150 = scmp.eq.s32.totalorder %s82, 1
      %p151 = por %p149, %p150
      %p152 = scmp.ne.s32.totalorder %s144, %s147
      %p153 = scmp.eq.s32.totalorder %s82, 0
      %p154 = por %p152, %p153
      %p155 = scmp.ne.s32.totalorder %s144, %s147
      %p156 = scmp.eq.s32.totalorder %s87, 1
      %p157 = por %p155, %p156
      %p158 = scmp.ne.s32.totalorder %s147, %s148
      %p159 = scmp.eq.s32.totalorder %s87, 0
      %p160 = por %p158, %p159
      %p161 = scmp.ne.s32.totalorder %s147, %s148
      %p162 = scmp.eq.s32.totalorder %s88, 1
      %p163 = por %p161, %p162
      %p165 = scmp.ne.s32.totalorder %s148, %s164
      %p166 = scmp.eq.s32.totalorder %s88, 0
      %p167 = por %p165, %p166
      %s168 = ssub.s32 %s82, %s89
      %p169 = scmp.eq.s32.totalorder %s168, 0
      %s171 = sadd.s32 %s170, 1
      %s172 = scalar_select %p169, %s170, %s171
      %p175 = pneg %p169
      %p176 = scmp.eq.s32.totalorder %s82, 1
      %p177 = por %p175, %p176
      %p178 = scmp.ne.s32.totalorder %s170, %s173
      %p179 = scmp.eq.s32.totalorder %s82, 0
      %p180 = por %p178, %p179
      %p181 = scmp.ne.s32.totalorder %s170, %s173
      %p182 = scmp.eq.s32.totalorder %s87, 1
      %p183 = por %p181, %p182
      %p184 = scmp.ne.s32.totalorder %s173, %s174
      %p185 = scmp.eq.s32.totalorder %s87, 0
      %p186 = por %p184, %p185
      %p187 = scmp.ne.s32.totalorder %s173, %s174
      %p188 = scmp.eq.s32.totalorder %s88, 1
      %p189 = por %p187, %p188
      %p191 = scmp.ne.s32.totalorder %s174, %s190
      %p192 = scmp.eq.s32.totalorder %s88, 0
      %p193 = por %p191, %p192
      %s195 = sadd.s32 %s194, 1
      %p198 = scmp.eq.s32.totalorder %s82, 1
      %p199 = scmp.ne.s32.totalorder %s194, %s196
      %p200 = scmp.eq.s32.totalorder %s82, 0
      %p201 = por %p199, %p200
      %p202 = scmp.ne.s32.totalorder %s194, %s196
      %p203 = scmp.eq.s32.totalorder %s87, 1
      %p204 = por %p202, %p203
      %p205 = scmp.ne.s32.totalorder %s196, %s197
      %p206 = scmp.eq.s32.totalorder %s87, 0
      %p207 = por %p205, %p206
      %p208 = scmp.ne.s32.totalorder %s196, %s197
      %p209 = scmp.eq.s32.totalorder %s88, 1
      %p210 = por %p208, %p209
      %p212 = scmp.ne.s32.totalorder %s197, %s211
      %p213 = scmp.eq.s32.totalorder %s88, 0
      %p214 = por %p212, %p213
      %s216 = sadd.s32 %s215, 1
      %p219 = scmp.eq.s32.totalorder %s82, 1
      %p220 = scmp.ne.s32.totalorder %s215, %s217
      %p221 = scmp.eq.s32.totalorder %s82, 0
      %p222 = por %p220, %p221
      %p223 = scmp.ne.s32.totalorder %s215, %s217
      %p224 = scmp.eq.s32.totalorder %s87, 1
      %p225 = por %p223, %p224
      %p226 = scmp.ne.s32.totalorder %s217, %s218
      %p227 = scmp.eq.s32.totalorder %s87, 0
      %p228 = por %p226, %p227
      %p229 = scmp.ne.s32.totalorder %s217, %s218
      %p230 = scmp.eq.s32.totalorder %s88, 1
      %p231 = por %p229, %p230
      %p233 = scmp.ne.s32.totalorder %s218, %s232
      %p234 = scmp.eq.s32.totalorder %s88, 0
      %p235 = por %p233, %p234
      %s237 = sadd.s32 %s236, 1
      %p240 = scmp.eq.s32.totalorder %s82, 1
      %p241 = scmp.ne.s32.totalorder %s236, %s238
      %p242 = scmp.eq.s32.totalorder %s82, 0
      %p243 = por %p241, %p242
      %p244 = scmp.ne.s32.totalorder %s236, %s238
      %p245 = scmp.eq.s32.totalorder %s87, 1
      %p246 = por %p244, %p245
      %p247 = scmp.ne.s32.totalorder %s238, %s239
      %p248 = scmp.eq.s32.totalorder %s87, 0
      %p249 = por %p247, %p248
      %p250 = scmp.ne.s32.totalorder %s238, %s239
      %p251 = scmp.eq.s32.totalorder %s88, 1
      %p252 = por %p250, %p251
      %p254 = scmp.ne.s32.totalorder %s239, %s253
      %p255 = scmp.eq.s32.totalorder %s88, 0
      %p256 = por %p254, %p255
      %s258 = sadd.s32 %s257, 1
      %p261 = scmp.eq.s32.totalorder %s82, 1
      %p262 = scmp.ne.s32.totalorder %s257, %s259
      %p263 = scmp.eq.s32.totalorder %s82, 0
      %p264 = por %p262, %p263
      %p265 = scmp.ne.s32.totalorder %s257, %s259
      %p266 = scmp.eq.s32.totalorder %s87, 1
      %p267 = por %p265, %p266
      %p268 = scmp.ne.s32.totalorder %s259, %s260
      %p269 = scmp.eq.s32.totalorder %s87, 0
      %p270 = por %p268, %p269
      %p271 = scmp.ne.s32.totalorder %s259, %s260
      %p272 = scmp.eq.s32.totalorder %s88, 1
      %p273 = por %p271, %p272
      %p275 = scmp.ne.s32.totalorder %s260, %s274
      %p276 = scmp.eq.s32.totalorder %s88, 0
      %p277 = por %p275, %p276
      %s279 = sadd.s32 %s278, 1
      %p282 = scmp.eq.s32.totalorder %s82, 1
      %p283 = scmp.ne.s32.totalorder %s278, %s280
      %p284 = scmp.eq.s32.totalorder %s82, 0
      %p285 = por %p283, %p284
      %p286 = scmp.ne.s32.totalorder %s278, %s280
      %p287 = scmp.eq.s32.totalorder %s87, 1
      %p288 = por %p286, %p287
      %p289 = scmp.ne.s32.totalorder %s280, %s281
      %p290 = scmp.eq.s32.totalorder %s87, 0
      %p291 = por %p289, %p290
      %p292 = scmp.ne.s32.totalorder %s280, %s281
      %p293 = scmp.eq.s32.totalorder %s88, 1
      %p294 = por %p292, %p293
      %p296 = scmp.ne.s32.totalorder %s281, %s295
      %p297 = scmp.eq.s32.totalorder %s88, 0
      %p298 = por %p296, %p297
      %s300 = sadd.s32 %s299, 1
      %p303 = scmp.eq.s32.totalorder %s82, 1
      %p304 = scmp.ne.s32.totalorder %s299, %s301
      %p305 = scmp.eq.s32.totalorder %s82, 0
      %p306 = por %p304, %p305
      %p307 = scmp.ne.s32.totalorder %s299, %s301
      %p308 = scmp.eq.s32.totalorder %s87, 1
      %p309 = por %p307, %p308
      %p310 = scmp.ne.s32.totalorder %s301, %s302
      %p311 = scmp.eq.s32.totalorder %s87, 0
      %p312 = por %p310, %p311
      %p313 = scmp.ne.s32.totalorder %s301, %s302
      %p314 = scmp.eq.s32.totalorder %s88, 1
      %p315 = por %p313, %p314
      %p317 = scmp.ne.s32.totalorder %s302, %s316
      %p318 = scmp.eq.s32.totalorder %s88, 0
      %p319 = por %p317, %p318
      %s321 = sadd.s32 %s320, 1
      %p324 = scmp.eq.s32.totalorder %s82, 1
      %p325 = scmp.ne.s32.totalorder %s320, %s322
      %p326 = scmp.eq.s32.totalorder %s82, 0
      %p327 = por %p325, %p326
      %p328 = scmp.ne.s32.totalorder %s320, %s322
      %p329 = scmp.eq.s32.totalorder %s87, 1
      %p330 = por %p328, %p329
      %p331 = scmp.ne.s32.totalorder %s322, %s323
      %p332 = scmp.eq.s32.totalorder %s87, 0
      %p333 = por %p331, %p332
      %p334 = scmp.ne.s32.totalorder %s322, %s323
      %p335 = scmp.eq.s32.totalorder %s88, 1
      %p336 = por %p334, %p335
      %p338 = scmp.ne.s32.totalorder %s323, %s337
      %p339 = scmp.eq.s32.totalorder %s88, 0
      %p340 = por %p338, %p339
      %s342 = sadd.s32 %s341, 1
      %p345 = scmp.eq.s32.totalorder %s82, 1
      %p346 = scmp.ne.s32.totalorder %s341, %s343
      %p347 = scmp.eq.s32.totalorder %s82, 0
      %p348 = por %p346, %p347
      %p349 = scmp.ne.s32.totalorder %s341, %s343
      %p350 = scmp.eq.s32.totalorder %s87, 1
      %p351 = por %p349, %p350
      %p352 = scmp.ne.s32.totalorder %s343, %s344
      %p353 = scmp.eq.s32.totalorder %s87, 0
      %p354 = por %p352, %p353
      %p355 = scmp.ne.s32.totalorder %s343, %s344
      %p356 = scmp.eq.s32.totalorder %s88, 1
      %p357 = por %p355, %p356
      %p359 = scmp.ne.s32.totalorder %s344, %s358
      %p360 = scmp.eq.s32.totalorder %s88, 0
      %p361 = por %p359, %p360
      %s363 = sadd.s32 %s362, 1
      %p366 = scmp.eq.s32.totalorder %s82, 1
      %p367 = scmp.ne.s32.totalorder %s362, %s364
      %p368 = scmp.eq.s32.totalorder %s82, 0
      %p369 = por %p367, %p368
      %p370 = scmp.ne.s32.totalorder %s362, %s364
      %p371 = scmp.eq.s32.totalorder %s87, 1
      %p372 = por %p370, %p371
      %p373 = scmp.ne.s32.totalorder %s364, %s365
      %p374 = scmp.eq.s32.totalorder %s87, 0
      %p375 = por %p373, %p374
      %p376 = scmp.ne.s32.totalorder %s364, %s365
      %p377 = scmp.eq.s32.totalorder %s88, 1
      %p378 = por %p376, %p377
      %p380 = scmp.ne.s32.totalorder %s365, %s379
      %p381 = scmp.eq.s32.totalorder %s88, 0
      %p382 = por %p380, %p381
      %s384 = sadd.s32 %s383, 1
      %p387 = scmp.eq.s32.totalorder %s82, 1
      %p388 = scmp.ne.s32.totalorder %s383, %s385
      %p389 = scmp.eq.s32.totalorder %s82, 0
      %p390 = por %p388, %p389
      %p391 = scmp.ne.s32.totalorder %s383, %s385
      %p392 = scmp.eq.s32.totalorder %s87, 1
      %p393 = por %p391, %p392
      %p394 = scmp.ne.s32.totalorder %s385, %s386
      %p395 = scmp.eq.s32.totalorder %s87, 0
      %p396 = por %p394, %p395
      %p397 = scmp.ne.s32.totalorder %s385, %s386
      %p398 = scmp.eq.s32.totalorder %s88, 1
      %p399 = por %p397, %p398
      %p401 = scmp.ne.s32.totalorder %s386, %s400
      %p402 = scmp.eq.s32.totalorder %s88, 0
      %p403 = por %p401, %p402
      %s405 = sadd.s32 %s404, 1
      %p408 = scmp.eq.s32.totalorder %s82, 1
      %p409 = scmp.ne.s32.totalorder %s404, %s406
      %p410 = scmp.eq.s32.totalorder %s82, 0
      %p411 = por %p409, %p410
      %p412 = scmp.ne.s32.totalorder %s404, %s406
      %p413 = scmp.eq.s32.totalorder %s87, 1
      %p414 = por %p412, %p413
      %p415 = scmp.ne.s32.totalorder %s406, %s407
      %p416 = scmp.eq.s32.totalorder %s87, 0
      %p417 = por %p415, %p416
      %p418 = scmp.ne.s32.totalorder %s406, %s407
      %p419 = scmp.eq.s32.totalorder %s88, 1
      %p420 = por %p418, %p419
      %p422 = scmp.ne.s32.totalorder %s407, %s421
      %p423 = scmp.eq.s32.totalorder %s88, 0
      %p424 = por %p422, %p423
      %s426 = sadd.s32 %s425, 1
      %p429 = scmp.eq.s32.totalorder %s82, 1
      %p430 = scmp.ne.s32.totalorder %s425, %s427
      %p431 = scmp.eq.s32.totalorder %s82, 0
      %p432 = por %p430, %p431
      %p433 = scmp.ne.s32.totalorder %s425, %s427
      %p434 = scmp.eq.s32.totalorder %s87, 1
      %p435 = por %p433, %p434
      %p436 = scmp.ne.s32.totalorder %s427, %s428
      %p437 = scmp.eq.s32.totalorder %s87, 0
      %p438 = por %p436, %p437
      %p439 = scmp.ne.s32.totalorder %s427, %s428
      %p440 = scmp.eq.s32.totalorder %s88, 1
      %p441 = por %p439, %p440
      %p443 = scmp.ne.s32.totalorder %s428, %s442
      %p444 = scmp.eq.s32.totalorder %s88, 0
      %p445 = por %p443, %p444
      %s447 = sadd.s32 %s446, 1
      %p450 = scmp.eq.s32.totalorder %s82, 1
      %p451 = scmp.ne.s32.totalorder %s446, %s448
      %p452 = scmp.eq.s32.totalorder %s82, 0
      %p453 = por %p451, %p452
      %p454 = scmp.ne.s32.totalorder %s446, %s448
      %p455 = scmp.eq.s32.totalorder %s87, 1
      %p456 = por %p454, %p455
      %p457 = scmp.ne.s32.totalorder %s448, %s449
      %p458 = scmp.eq.s32.totalorder %s87, 0
      %p459 = por %p457, %p458
      %p460 = scmp.ne.s32.totalorder %s448, %s449
      %p461 = scmp.eq.s32.totalorder %s88, 1
      %p462 = por %p460, %p461
      %p464 = scmp.ne.s32.totalorder %s449, %s463
      %p465 = scmp.eq.s32.totalorder %s88, 0
      %p466 = por %p464, %p465
      %s468 = sadd.s32 %s467, 1
      %p471 = scmp.eq.s32.totalorder %s82, 1
      %p472 = scmp.ne.s32.totalorder %s467, %s469
      %p473 = scmp.eq.s32.totalorder %s82, 0
      %p474 = por %p472, %p473
      %p475 = scmp.ne.s32.totalorder %s467, %s469
      %p476 = scmp.eq.s32.totalorder %s87, 1
      %p477 = por %p475, %p476
      %p478 = scmp.ne.s32.totalorder %s469, %s470
      %p479 = scmp.eq.s32.totalorder %s87, 0
      %p480 = por %p478, %p479
      %p481 = scmp.ne.s32.totalorder %s469, %s470
      %p482 = scmp.eq.s32.totalorder %s88, 1
      %p483 = por %p481, %p482
      %p485 = scmp.ne.s32.totalorder %s470, %s484
      %p486 = scmp.eq.s32.totalorder %s88, 0
      %p487 = por %p485, %p486
      %s489 = sadd.s32 %s488, 1
      %p492 = scmp.eq.s32.totalorder %s82, 1
      %p493 = scmp.ne.s32.totalorder %s488, %s490
      %p494 = scmp.eq.s32.totalorder %s82, 0
      %p495 = por %p493, %p494
      %p496 = scmp.ne.s32.totalorder %s488, %s490
      %p497 = scmp.eq.s32.totalorder %s87, 1
      %p498 = por %p496, %p497
      %p499 = scmp.ne.s32.totalorder %s490, %s491
      %p500 = scmp.eq.s32.totalorder %s87, 0
      %p501 = por %p499, %p500
      %p502 = scmp.ne.s32.totalorder %s490, %s491
      %p503 = scmp.eq.s32.totalorder %s88, 1
      %p504 = por %p502, %p503
      %p506 = scmp.ne.s32.totalorder %s491, %s505
      %p507 = scmp.eq.s32.totalorder %s88, 0
      %p508 = por %p506, %p507
      %s510 = sadd.s32 %s509, 1
      %p513 = scmp.eq.s32.totalorder %s82, 1
      %p514 = scmp.ne.s32.totalorder %s509, %s511
      %p515 = scmp.eq.s32.totalorder %s82, 0
      %p516 = por %p514, %p515
      %p517 = scmp.ne.s32.totalorder %s509, %s511
      %p518 = scmp.eq.s32.totalorder %s87, 1
      %p519 = por %p517, %p518
      %p520 = scmp.ne.s32.totalorder %s511, %s512
      %p521 = scmp.eq.s32.totalorder %s87, 0
      %p522 = por %p520, %p521
      %p523 = scmp.ne.s32.totalorder %s511, %s512
      %p524 = scmp.eq.s32.totalorder %s88, 1
      %p525 = por %p523, %p524
      %p527 = scmp.ne.s32.totalorder %s512, %s526
      %p528 = scmp.eq.s32.totalorder %s88, 0
      %p529 = por %p527, %p528
      %s531 = sadd.s32 %s530, 1
      %p534 = scmp.eq.s32.totalorder %s82, 1
      %p535 = scmp.ne.s32.totalorder %s530, %s532
      %p536 = scmp.eq.s32.totalorder %s82, 0
      %p537 = por %p535, %p536
      %p538 = scmp.ne.s32.totalorder %s530, %s532
      %p539 = scmp.eq.s32.totalorder %s87, 1
      %p540 = por %p538, %p539
      %p541 = scmp.ne.s32.totalorder %s532, %s533
      %p542 = scmp.eq.s32.totalorder %s87, 0
      %p543 = por %p541, %p542
      %p544 = scmp.ne.s32.totalorder %s532, %s533
      %p545 = scmp.eq.s32.totalorder %s88, 1
      %p546 = por %p544, %p545
      %p548 = scmp.ne.s32.totalorder %s533, %s547
      %p549 = scmp.eq.s32.totalorder %s88, 0
      %p550 = por %p548, %p549
      %s552 = sadd.s32 %s551, 1
      %p555 = scmp.eq.s32.totalorder %s82, 1
      %p556 = scmp.ne.s32.totalorder %s551, %s553
      %p557 = scmp.eq.s32.totalorder %s82, 0
      %p558 = por %p556, %p557
      %p559 = scmp.ne.s32.totalorder %s551, %s553
      %p560 = scmp.eq.s32.totalorder %s87, 1
      %p561 = por %p559, %p560
      %p562 = scmp.ne.s32.totalorder %s553, %s554
      %p563 = scmp.eq.s32.totalorder %s87, 0
      %p564 = por %p562, %p563
      %p565 = scmp.ne.s32.totalorder %s553, %s554
      %p566 = scmp.eq.s32.totalorder %s88, 1
      %p567 = por %p565, %p566
      %p569 = scmp.ne.s32.totalorder %s554, %s568
      %p570 = scmp.eq.s32.totalorder %s88, 0
      %p571 = por %p569, %p570
      %s573 = sadd.s32 %s572, 1
      %p576 = scmp.eq.s32.totalorder %s82, 1
      %p577 = scmp.ne.s32.totalorder %s572, %s574
      %p578 = scmp.eq.s32.totalorder %s82, 0
      %p579 = por %p577, %p578
      %p580 = scmp.ne.s32.totalorder %s572, %s574
      %p581 = scmp.eq.s32.totalorder %s87, 1
      %p582 = por %p580, %p581
      %p583 = scmp.ne.s32.totalorder %s574, %s575
      %p584 = scmp.eq.s32.totalorder %s87, 0
      %p585 = por %p583, %p584
      %p586 = scmp.ne.s32.totalorder %s574, %s575
      %p587 = scmp.eq.s32.totalorder %s88, 1
      %p588 = por %p586, %p587
      %p590 = scmp.ne.s32.totalorder %s575, %s589
      %p591 = scmp.eq.s32.totalorder %s88, 0
      %p592 = por %p590, %p591
      %s594 = sadd.s32 %s593, 1
      %p597 = scmp.eq.s32.totalorder %s82, 1
      %p598 = scmp.ne.s32.totalorder %s593, %s595
      %p599 = scmp.eq.s32.totalorder %s82, 0
      %p600 = por %p598, %p599
      %p601 = scmp.ne.s32.totalorder %s593, %s595
      %p602 = scmp.eq.s32.totalorder %s87, 1
      %p603 = por %p601, %p602
      %p604 = scmp.ne.s32.totalorder %s595, %s596
      %p605 = scmp.eq.s32.totalorder %s87, 0
      %p606 = por %p604, %p605
      %p607 = scmp.ne.s32.totalorder %s595, %s596
      %p608 = scmp.eq.s32.totalorder %s88, 1
      %p609 = por %p607, %p608
      %p611 = scmp.ne.s32.totalorder %s596, %s610
      %p612 = scmp.eq.s32.totalorder %s88, 0
      %p613 = por %p611, %p612
      %s615 = sadd.s32 %s614, 1
      %p618 = scmp.eq.s32.totalorder %s82, 1
      %p619 = scmp.ne.s32.totalorder %s614, %s616
      %p620 = scmp.eq.s32.totalorder %s82, 0
      %p621 = por %p619, %p620
      %p622 = scmp.ne.s32.totalorder %s614, %s616
      %p623 = scmp.eq.s32.totalorder %s87, 1
      %p624 = por %p622, %p623
      %p625 = scmp.ne.s32.totalorder %s616, %s617
      %p626 = scmp.eq.s32.totalorder %s87, 0
      %p627 = por %p625, %p626
      %p628 = scmp.ne.s32.totalorder %s616, %s617
      %p629 = scmp.eq.s32.totalorder %s88, 1
      %p630 = por %p628, %p629
      %p632 = scmp.ne.s32.totalorder %s617, %s631
      %p633 = scmp.eq.s32.totalorder %s88, 0
      %p634 = por %p632, %p633
      %s636 = sadd.s32 %s635, 1
      %p639 = scmp.eq.s32.totalorder %s82, 1
      %p640 = scmp.ne.s32.totalorder %s635, %s637
      %p641 = scmp.eq.s32.totalorder %s82, 0
      %p642 = por %p640, %p641
      %p643 = scmp.ne.s32.totalorder %s635, %s637
      %p644 = scmp.eq.s32.totalorder %s87, 1
      %p645 = por %p643, %p644
      %p646 = scmp.ne.s32.totalorder %s637, %s638
      %p647 = scmp.eq.s32.totalorder %s87, 0
      %p648 = por %p646, %p647
      %p649 = scmp.ne.s32.totalorder %s637, %s638
      %p650 = scmp.eq.s32.totalorder %s88, 1
      %p651 = por %p649, %p650
      %p653 = scmp.ne.s32.totalorder %s638, %s652
      %p654 = scmp.eq.s32.totalorder %s88, 0
      %p655 = por %p653, %p654
      %s657 = sadd.s32 %s656, 1
      %p660 = scmp.eq.s32.totalorder %s82, 1
      %p661 = scmp.ne.s32.totalorder %s656, %s658
      %p662 = scmp.eq.s32.totalorder %s82, 0
      %p663 = por %p661, %p662
      %p664 = scmp.ne.s32.totalorder %s656, %s658
      %p665 = scmp.eq.s32.totalorder %s87, 1
      %p666 = por %p664, %p665
      %p667 = scmp.ne.s32.totalorder %s658, %s659
      %p668 = scmp.eq.s32.totalorder %s87, 0
      %p669 = por %p667, %p668
      %p670 = scmp.ne.s32.totalorder %s658, %s659
      %p671 = scmp.eq.s32.totalorder %s88, 1
      %p672 = por %p670, %p671
      %p674 = scmp.ne.s32.totalorder %s659, %s673
      %p675 = scmp.eq.s32.totalorder %s88, 0
      %p676 = por %p674, %p675
      %s678 = sadd.s32 %s677, 1
      %p681 = scmp.eq.s32.totalorder %s82, 1
      %p682 = scmp.ne.s32.totalorder %s677, %s679
      %p683 = scmp.eq.s32.totalorder %s82, 0
      %p684 = por %p682, %p683
      %p685 = scmp.ne.s32.totalorder %s677, %s679
      %p686 = scmp.eq.s32.totalorder %s87, 1
      %p687 = por %p685, %p686
      %p688 = scmp.ne.s32.totalorder %s679, %s680
      %p689 = scmp.eq.s32.totalorder %s87, 0
      %p690 = por %p688, %p689
      %p691 = scmp.ne.s32.totalorder %s679, %s680
      %p692 = scmp.eq.s32.totalorder %s88, 1
      %p693 = por %p691, %p692
      %p695 = scmp.ne.s32.totalorder %s680, %s694
      %p696 = scmp.eq.s32.totalorder %s88, 0
      %p697 = por %p695, %p696
      %s699 = sadd.s32 %s698, 1
      %p702 = scmp.eq.s32.totalorder %s82, 1
      %p703 = scmp.ne.s32.totalorder %s698, %s700
      %p704 = scmp.eq.s32.totalorder %s82, 0
      %p705 = por %p703, %p704
      %p706 = scmp.ne.s32.totalorder %s698, %s700
      %p707 = scmp.eq.s32.totalorder %s87, 1
      %p708 = por %p706, %p707
      %p709 = scmp.ne.s32.totalorder %s700, %s701
      %p710 = scmp.eq.s32.totalorder %s87, 0
      %p711 = por %p709, %p710
      %p712 = scmp.ne.s32.totalorder %s700, %s701
      %p713 = scmp.eq.s32.totalorder %s88, 1
      %p714 = por %p712, %p713
      %p716 = scmp.ne.s32.totalorder %s701, %s715
      %p717 = scmp.eq.s32.totalorder %s88, 0
      %p718 = por %p716, %p717
      %s720 = sadd.s32 %s719, 1
      %p723 = scmp.eq.s32.totalorder %s82, 1
      %p724 = scmp.ne.s32.totalorder %s719, %s721
      %p725 = scmp.eq.s32.totalorder %s82, 0
      %p726 = por %p724, %p725
      %p727 = scmp.ne.s32.totalorder %s719, %s721
      %p728 = scmp.eq.s32.totalorder %s87, 1
      %p729 = por %p727, %p728
      %p730 = scmp.ne.s32.totalorder %s721, %s722
      %p731 = scmp.eq.s32.totalorder %s87, 0
      %p732 = por %p730, %p731
      %p733 = scmp.ne.s32.totalorder %s721, %s722
      %p734 = scmp.eq.s32.totalorder %s88, 1
      %p735 = por %p733, %p734
      %p737 = scmp.ne.s32.totalorder %s722, %s736
      %p738 = scmp.eq.s32.totalorder %s88, 0
      %p739 = por %p737, %p738
      %s741 = sadd.s32 %s740, 1
      %p744 = scmp.eq.s32.totalorder %s82, 1
      %p745 = scmp.ne.s32.totalorder %s740, %s742
      %p746 = scmp.eq.s32.totalorder %s82, 0
      %p747 = por %p745, %p746
      %p748 = scmp.ne.s32.totalorder %s740, %s742
      %p749 = scmp.eq.s32.totalorder %s87, 1
      %p750 = por %p748, %p749
      %p751 = scmp.ne.s32.totalorder %s742, %s743
      %p752 = scmp.eq.s32.totalorder %s87, 0
      %p753 = por %p751, %p752
      %p754 = scmp.ne.s32.totalorder %s742, %s743
      %p755 = scmp.eq.s32.totalorder %s88, 1
      %p756 = por %p754, %p755
      %p758 = scmp.ne.s32.totalorder %s743, %s757
      %p759 = scmp.eq.s32.totalorder %s88, 0
      %p760 = por %p758, %p759
      %s762 = sadd.s32 %s761, 1
      %p765 = scmp.eq.s32.totalorder %s82, 1
      %p766 = scmp.ne.s32.totalorder %s761, %s763
      %p767 = scmp.eq.s32.totalorder %s82, 0
      %p768 = por %p766, %p767
      %p769 = scmp.ne.s32.totalorder %s761, %s763
      %p770 = scmp.eq.s32.totalorder %s87, 1
      %p771 = por %p769, %p770
      %p772 = scmp.ne.s32.totalorder %s763, %s764
      %p773 = scmp.eq.s32.totalorder %s87, 0
      %p774 = por %p772, %p773
      %p775 = scmp.ne.s32.totalorder %s763, %s764
      %p776 = scmp.eq.s32.totalorder %s88, 1
      %p777 = por %p775, %p776
      %p779 = scmp.ne.s32.totalorder %s764, %s778
      %p780 = scmp.eq.s32.totalorder %s88, 0
      %p781 = por %p779, %p780
      %s782 = ssub.s32 %s82, %s89
      %p783 = scmp.eq.s32.totalorder %s782, 0
      %s785 = sadd.s32 %s784, 1
      %s786 = scalar_select %p783, %s784, %s785
      %p789 = pneg %p783
      %p790 = scmp.eq.s32.totalorder %s82, 1
      %p791 = por %p789, %p790
      %p792 = scmp.ne.s32.totalorder %s784, %s787
      %p793 = scmp.eq.s32.totalorder %s82, 0
      %p794 = por %p792, %p793
      %p795 = scmp.ne.s32.totalorder %s784, %s787
      %p796 = scmp.eq.s32.totalorder %s87, 1
      %p797 = por %p795, %p796
      %p798 = scmp.ne.s32.totalorder %s787, %s788
      %p799 = scmp.eq.s32.totalorder %s87, 0
      %p800 = por %p798, %p799
      %p801 = scmp.ne.s32.totalorder %s787, %s788
      %p802 = scmp.eq.s32.totalorder %s88, 1
      %p803 = por %p801, %p802
      %p805 = scmp.ne.s32.totalorder %s788, %s804
      %p806 = scmp.eq.s32.totalorder %s88, 0
      %p807 = por %p805, %p806
      %p808 = scmp.le.s32.totalorder 1, %s82
      %p809 = scmp.lt.s32.totalorder %s82, 3
      %p810 = pnand %p808, %p809
      %p811 = pneg %p810
      // Predicated region
      $region9: #{decoder_layer_forward.1} parent=5 // pred_check
        _
      $region10: #{decoder_layer_forward.1} parent=5 // pred_check_branch
        %813 = sbr.rel (%p810) target = $region12
      $region11: #{decoder_layer_forward.1} parent=5 // pred_region
        %s814 = ssub.s32 %s82, 1
        // Predicated region
        $region13: #{decoder_layer_forward.1} parent=11 // pred_check
          %p815 = pneg %p207
        $region14: #{decoder_layer_forward.1} parent=11 // pred_check_branch
          %817 = sbr.rel (%p815) target = $region16
        $region15: #{decoder_layer_forward.1} parent=11 // pred_region
          _
        $region16: #{decoder_layer_forward.1} parent=11 // pred_fallthru
          _
        // Predicated region
        $region17: #{decoder_layer_forward.1} parent=11 // pred_check
          %p818 = pneg %p228
        $region18: #{decoder_layer_forward.1} parent=11 // pred_check_branch
          %820 = sbr.rel (%p818) target = $region20
        $region19: #{decoder_layer_forward.1} parent=11 // pred_region
          _
        $region20: #{decoder_layer_forward.1} parent=11 // pred_fallthru
          _
        // Predicated region
        $region21: #{decoder_layer_forward.1} parent=11 // pred_check
          %p821 = pneg %p249
        $region22: #{decoder_layer_forward.1} parent=11 // pred_check_branch
          %823 = sbr.rel (%p821) target = $region24
        $region23: #{decoder_layer_forward.1} parent=11 // pred_region
          _
        $region24: #{decoder_layer_forward.1} parent=11 // pred_fallthru
          _
        // Predicated region
        $region25: #{decoder_layer_forward.1} parent=11 // pred_check
          %p824 = pneg %p270
        $region26: #{decoder_layer_forward.1} parent=11 // pred_check_branch
          %826 = sbr.rel (%p824) target = $region28
        $region27: #{decoder_layer_forward.1} parent=11 // pred_region
          _
        $region28: #{decoder_layer_forward.1} parent=11 // pred_fallthru
          _
        // Predicated region
        $region29: #{decoder_layer_forward.1} parent=11 // pred_check
          %p827 = pneg %p291
        $region30: #{decoder_layer_forward.1} parent=11 // pred_check_branch
          %829 = sbr.rel (%p827) target = $region32
        $region31: #{decoder_layer_forward.1} parent=11 // pred_region
          _
        $region32: #{decoder_layer_forward.1} parent=11 // pred_fallthru
          _
        // Predicated region
        $region33: #{decoder_layer_forward.1} parent=11 // pred_check
          %p830 = pneg %p312
        $region34: #{decoder_layer_forward.1} parent=11 // pred_check_branch
          %832 = sbr.rel (%p830) target = $region36
        $region35: #{decoder_layer_forward.1} parent=11 // pred_region
          %s834 = ssub.s32 16, 16
          %835 = vsyncadd [#allocation3], %s834
          %s837 = sshll.u32 [#allocation2], 4
          %s838 = int_to_ptr.vmem [resolvable:$true] %s837
          %840 = dma.hbm_to_vmem [thread:$0]  %s19, 16, %s838, [#allocation3]
        $region36: #{decoder_layer_forward.1} parent=11 // pred_fallthru
          _
        // Predicated region
        $region37: #{decoder_layer_forward.1} parent=11 // pred_check
          %p841 = pneg %p333
        $region38: #{decoder_layer_forward.1} parent=11 // pred_check_branch
          %843 = sbr.rel (%p841) target = $region40
        $region39: #{decoder_layer_forward.1} parent=11 // pred_region
          _
        $region40: #{decoder_layer_forward.1} parent=11 // pred_fallthru
          _
        // Predicated region
        $region41: #{decoder_layer_forward.1} parent=11 // pred_check
          %p844 = pneg %p354
        $region42: #{decoder_layer_forward.1} parent=11 // pred_check_branch
          %846 = sbr.rel (%p844) target = $region44
        $region43: #{decoder_layer_forward.1} parent=11 // pred_region
          %s848 = ssub.s32 16, 16
          %849 = vsyncadd [#allocation5], %s848
          %s851 = sshll.u32 [#allocation4], 4
          %s852 = int_to_ptr.vmem [resolvable:$true] %s851
          %854 = dma.hbm_to_vmem [thread:$0]  %s23, 16, %s852, [#allocation5]
        $region44: #{decoder_layer_forward.1} parent=11 // pred_fallthru
          _
        // Predicated region
        $region45: #{decoder_layer_forward.1} parent=11 // pred_check
          %p855 = pneg %p375
        $region46: #{decoder_layer_forward.1} parent=11 // pred_check_branch
          %857 = sbr.rel (%p855) target = $region48
        $region47: #{decoder_layer_forward.1} parent=11 // pred_region
          _
        $region48: #{decoder_layer_forward.1} parent=11 // pred_fallthru
          _
        // Predicated region
        $region49: #{decoder_layer_forward.1} parent=11 // pred_check
          %p858 = pneg %p396
        $region50: #{decoder_layer_forward.1} parent=11 // pred_check_branch
          %860 = sbr.rel (%p858) target = $region52
        $region51: #{decoder_layer_forward.1} parent=11 // pred_region
          %s862 = ssub.s32 16, 16
          %863 = vsyncadd [#allocation5], %s862
          %s865 = sshll.u32 [#allocation6], 4
          %s866 = int_to_ptr.vmem [resolvable:$true] %s865
          %868 = dma.hbm_to_vmem [thread:$0]  %s27, 16, %s866, [#allocation5]
        $region52: #{decoder_layer_forward.1} parent=11 // pred_fallthru
          _
        // Predicated region
        $region53: #{decoder_layer_forward.1} parent=11 // pred_check
          %p869 = pneg %p417
        $region54: #{decoder_layer_forward.1} parent=11 // pred_check_branch
          %871 = sbr.rel (%p869) target = $region56
        $region55: #{decoder_layer_forward.1} parent=11 // pred_region
          %s873 = ssub.s32 512, 512
          %874 = vsyncadd [#allocation8], %s873
          %s875 = sshll.u32 [#allocation7], 4
          %s876 = int_to_ptr.vmem [resolvable:$true] %s875
          %881 = dma.hbm_to_vmem [thread:$0]  %s29, 512, %s876, [#allocation8], 128, 128, 8
        $region56: #{decoder_layer_forward.1} parent=11 // pred_fallthru
          _
        // Predicated region
        $region57: #{decoder_layer_forward.1} parent=11 // pred_check
          %p882 = pneg %p438
        $region58: #{decoder_layer_forward.1} parent=11 // pred_check_branch
          %884 = sbr.rel (%p882) target = $region60
        $region59: #{decoder_layer_forward.1} parent=11 // pred_region
          %s886 = ssub.s32 16, 16
          %887 = vsyncadd [#allocation8], %s886
          %s889 = sshll.u32 [#allocation9], 4
          %s890 = int_to_ptr.vmem [resolvable:$true] %s889
          %892 = dma.hbm_to_vmem [thread:$0]  %s31, 16, %s890, [#allocation8]
        $region60: #{decoder_layer_forward.1} parent=11 // pred_fallthru
          _
        // Predicated region
        $region61: #{decoder_layer_forward.1} parent=11 // pred_check
          %p893 = pneg %p459
        $region62: #{decoder_layer_forward.1} parent=11 // pred_check_branch
          %895 = sbr.rel (%p893) target = $region64
        $region63: #{decoder_layer_forward.1} parent=11 // pred_region
          %s897 = ssub.s32 512, 512
          %898 = vsyncadd [#allocation11], %s897
          %s899 = sshll.u32 [#allocation10], 4
          %s900 = int_to_ptr.vmem [resolvable:$true] %s899
          %905 = dma.hbm_to_vmem [thread:$0]  %s33, 512, %s900, [#allocation11], 128, 128, 8
        $region64: #{decoder_layer_forward.1} parent=11 // pred_fallthru
          _
        // Predicated region
        $region65: #{decoder_layer_forward.1} parent=11 // pred_check
          %p906 = pneg %p480
        $region66: #{decoder_layer_forward.1} parent=11 // pred_check_branch
          %908 = sbr.rel (%p906) target = $region68
        $region67: #{decoder_layer_forward.1} parent=11 // pred_region
          %s910 = ssub.s32 16, 16
          %911 = vsyncadd [#allocation11], %s910
          %s913 = sshll.u32 [#allocation12], 4
          %s914 = int_to_ptr.vmem [resolvable:$true] %s913
          %916 = dma.hbm_to_vmem [thread:$0]  %s35, 16, %s914, [#allocation11]
        $region68: #{decoder_layer_forward.1} parent=11 // pred_fallthru
          _
        // Predicated region
        $region69: #{decoder_layer_forward.1} parent=11 // pred_check
          %p917 = pneg %p501
        $region70: #{decoder_layer_forward.1} parent=11 // pred_check_branch
          %919 = sbr.rel (%p917) target = $region72
        $region71: #{decoder_layer_forward.1} parent=11 // pred_region
          %s921 = ssub.s32 512, 512
          %922 = vsyncadd [#allocation14], %s921
          %s923 = sshll.u32 [#allocation13], 4
          %s924 = int_to_ptr.vmem [resolvable:$true] %s923
          %929 = dma.hbm_to_vmem [thread:$0]  %s37, 512, %s924, [#allocation14], 128, 128, 8
        $region72: #{decoder_layer_forward.1} parent=11 // pred_fallthru
          _
        // Predicated region
        $region73: #{decoder_layer_forward.1} parent=11 // pred_check
          %p930 = pneg %p522
        $region74: #{decoder_layer_forward.1} parent=11 // pred_check_branch
          %932 = sbr.rel (%p930) target = $region76
        $region75: #{decoder_layer_forward.1} parent=11 // pred_region
          %s934 = ssub.s32 16, 16
          %935 = vsyncadd [#allocation14], %s934
          %s937 = sshll.u32 [#allocation15], 4
          %s938 = int_to_ptr.vmem [resolvable:$true] %s937
          %940 = dma.hbm_to_vmem [thread:$0]  %s39, 16, %s938, [#allocation14]
        $region76: #{decoder_layer_forward.1} parent=11 // pred_fallthru
          _
        // Predicated region
        $region77: #{decoder_layer_forward.1} parent=11 // pred_check
          %p941 = pneg %p543
        $region78: #{decoder_layer_forward.1} parent=11 // pred_check_branch
          %943 = sbr.rel (%p941) target = $region80
        $region79: #{decoder_layer_forward.1} parent=11 // pred_region
          %s945 = ssub.s32 512, 512
          %946 = vsyncadd [#allocation17], %s945
          %s947 = sshll.u32 [#allocation16], 4
          %s948 = int_to_ptr.vmem [resolvable:$true] %s947
          %953 = dma.hbm_to_vmem [thread:$0]  %s41, 512, %s948, [#allocation17], 128, 128, 8
        $region80: #{decoder_layer_forward.1} parent=11 // pred_fallthru
          _
        // Predicated region
        $region81: #{decoder_layer_forward.1} parent=11 // pred_check
          %p954 = pneg %p564
        $region82: #{decoder_layer_forward.1} parent=11 // pred_check_branch
          %956 = sbr.rel (%p954) target = $region84
        $region83: #{decoder_layer_forward.1} parent=11 // pred_region
          %s958 = ssub.s32 16, 16
          %959 = vsyncadd [#allocation17], %s958
          %s961 = sshll.u32 [#allocation18], 4
          %s962 = int_to_ptr.vmem [resolvable:$true] %s961
          %964 = dma.hbm_to_vmem [thread:$0]  %s43, 16, %s962, [#allocation17]
        $region84: #{decoder_layer_forward.1} parent=11 // pred_fallthru
          _
        // Predicated region
        $region85: #{decoder_layer_forward.1} parent=11 // pred_check
          %p965 = pneg %p585
        $region86: #{decoder_layer_forward.1} parent=11 // pred_check_branch
          %967 = sbr.rel (%p965) target = $region88
        $region87: #{decoder_layer_forward.1} parent=11 // pred_region
          %s969 = ssub.s32 512, 512
          %970 = vsyncadd [#allocation20], %s969
          %s971 = sshll.u32 [#allocation19], 4
          %s972 = int_to_ptr.vmem [resolvable:$true] %s971
          %977 = dma.hbm_to_vmem [thread:$0]  %s45, 512, %s972, [#allocation20], 128, 128, 8
        $region88: #{decoder_layer_forward.1} parent=11 // pred_fallthru
          _
        // Predicated region
        $region89: #{decoder_layer_forward.1} parent=11 // pred_check
          %p978 = pneg %p606
        $region90: #{decoder_layer_forward.1} parent=11 // pred_check_branch
          %980 = sbr.rel (%p978) target = $region92
        $region91: #{decoder_layer_forward.1} parent=11 // pred_region
          %s982 = ssub.s32 16, 16
          %983 = vsyncadd [#allocation20], %s982
          %s985 = sshll.u32 [#allocation21], 4
          %s986 = int_to_ptr.vmem [resolvable:$true] %s985
          %988 = dma.hbm_to_vmem [thread:$0]  %s47, 16, %s986, [#allocation20]
        $region92: #{decoder_layer_forward.1} parent=11 // pred_fallthru
          _
        // Predicated region
        $region93: #{decoder_layer_forward.1} parent=11 // pred_check
          %p989 = pneg %p627
        $region94: #{decoder_layer_forward.1} parent=11 // pred_check_branch
          %991 = sbr.rel (%p989) target = $region96
        $region95: #{decoder_layer_forward.1} parent=11 // pred_region
          _
        $region96: #{decoder_layer_forward.1} parent=11 // pred_fallthru
          _
        // Predicated region
        $region97: #{decoder_layer_forward.1} parent=11 // pred_check
          %p992 = pneg %p648
        $region98: #{decoder_layer_forward.1} parent=11 // pred_check_branch
          %994 = sbr.rel (%p992) target = $region100
        $region99: #{decoder_layer_forward.1} parent=11 // pred_region
          %s996 = ssub.s32 16, 16
          %997 = vsyncadd [#allocation23], %s996
          %s999 = sshll.u32 [#allocation22], 4
          %s1000 = int_to_ptr.vmem [resolvable:$true] %s999
          %1002 = dma.hbm_to_vmem [thread:$0]  %s51, 16, %s1000, [#allocation23]
        $region100: #{decoder_layer_forward.1} parent=11 // pred_fallthru
          _
        // Predicated region
        $region101: #{decoder_layer_forward.1} parent=11 // pred_check
          %p1003 = pneg %p669
        $region102: #{decoder_layer_forward.1} parent=11 // pred_check_branch
          %1005 = sbr.rel (%p1003) target = $region104
        $region103: #{decoder_layer_forward.1} parent=11 // pred_region
          %s1007 = ssub.s32 16, 16
          %1008 = vsyncadd [#allocation23], %s1007
          %s1010 = sshll.u32 [#allocation24], 4
          %s1011 = int_to_ptr.vmem [resolvable:$true] %s1010
          %1013 = dma.hbm_to_vmem [thread:$0]  %s53, 16, %s1011, [#allocation23]
        $region104: #{decoder_layer_forward.1} parent=11 // pred_fallthru
          _
        // Predicated region
        $region105: #{decoder_layer_forward.1} parent=11 // pred_check
          %p1014 = pneg %p690
        $region106: #{decoder_layer_forward.1} parent=11 // pred_check_branch
          %1016 = sbr.rel (%p1014) target = $region108
        $region107: #{decoder_layer_forward.1} parent=11 // pred_region
          %s1018 = ssub.s32 16, 16
          %1019 = vsyncadd [#allocation26], %s1018
          %s1021 = sshll.u32 [#allocation25], 4
          %s1022 = int_to_ptr.vmem [resolvable:$true] %s1021
          %1024 = dma.hbm_to_vmem [thread:$0]  %s55, 16, %s1022, [#allocation26]
        $region108: #{decoder_layer_forward.1} parent=11 // pred_fallthru
          _
        // Predicated region
        $region109: #{decoder_layer_forward.1} parent=11 // pred_check
          %p1025 = pneg %p711
        $region110: #{decoder_layer_forward.1} parent=11 // pred_check_branch
          %1027 = sbr.rel (%p1025) target = $region112
        $region111: #{decoder_layer_forward.1} parent=11 // pred_region
          %s1029 = ssub.s32 16, 16
          %1030 = vsyncadd [#allocation26], %s1029
          %s1032 = sshll.u32 [#allocation27], 4
          %s1033 = int_to_ptr.vmem [resolvable:$true] %s1032
          %1035 = dma.hbm_to_vmem [thread:$0]  %s57, 16, %s1033, [#allocation26]
        $region112: #{decoder_layer_forward.1} parent=11 // pred_fallthru
          _
        // Predicated region
        $region113: #{decoder_layer_forward.1} parent=11 // pred_check
          %p1036 = pneg %p732
        $region114: #{decoder_layer_forward.1} parent=11 // pred_check_branch
          %1038 = sbr.rel (%p1036) target = $region116
        $region115: #{decoder_layer_forward.1} parent=11 // pred_region
          %s1040 = ssub.s32 16, 16
          %1041 = vsyncadd [#allocation29], %s1040
          %s1043 = sshll.u32 [#allocation28], 4
          %s1044 = int_to_ptr.vmem [resolvable:$true] %s1043
          %1046 = dma.hbm_to_vmem [thread:$0]  %s59, 16, %s1044, [#allocation29]
        $region116: #{decoder_layer_forward.1} parent=11 // pred_fallthru
          _
        // Predicated region
        $region117: #{decoder_layer_forward.1} parent=11 // pred_check
          %p1047 = pneg %p753
        $region118: #{decoder_layer_forward.1} parent=11 // pred_check_branch
          %1049 = sbr.rel (%p1047) target = $region120
        $region119: #{decoder_layer_forward.1} parent=11 // pred_region
          %s1051 = ssub.s32 16, 16
          %1052 = vsyncadd [#allocation29], %s1051
          %s1054 = sshll.u32 [#allocation30], 4
          %s1055 = int_to_ptr.vmem [resolvable:$true] %s1054
          %1057 = dma.hbm_to_vmem [thread:$0]  %s61, 16, %s1055, [#allocation29]
        $region120: #{decoder_layer_forward.1} parent=11 // pred_fallthru
          _
        // Predicated region
        $region121: #{decoder_layer_forward.1} parent=11 // pred_check
          %p1058 = pneg %p774
        $region122: #{decoder_layer_forward.1} parent=11 // pred_check_branch
          %1060 = sbr.rel (%p1058) target = $region124
        $region123: #{decoder_layer_forward.1} parent=11 // pred_region
          %s1062 = ssub.s32 16, 16
          %1063 = vsyncadd [#allocation32], %s1062
          %s1065 = sshll.u32 [#allocation31], 4
          %s1066 = int_to_ptr.vmem [resolvable:$true] %s1065
          %1068 = dma.hbm_to_vmem [thread:$0]  %s63, 16, %s1066, [#allocation32]
        $region124: #{decoder_layer_forward.1} parent=11 // pred_fallthru
          _
      $region12: #{decoder_layer_forward.1} parent=5 // pred_fallthru
        _
      %p1069 = scmp.lt.s32.totalorder %s82, 2
      // Predicated region
      $region125: #{decoder_layer_forward.1} parent=5 // pred_check
        %p1070 = pneg %p1069
      $region126: #{decoder_layer_forward.1} parent=5 // pred_check_branch
        %1072 = sbr.rel (%p1070) target = $region128
      $region127: #{decoder_layer_forward.1} parent=5 // pred_region
        // Predicated region
        $region129: #{decoder_layer_forward.1} parent=127 // pred_check
          %p1073 = pneg %p102
        $region130: #{decoder_layer_forward.1} parent=127 // pred_check_branch
          %1075 = sbr.rel (%p1073) target = $region132
        $region131: #{decoder_layer_forward.1} parent=127 // pred_region
          %p1076 = scmp.lt.s32.totalorder %s82, 1
          %s1077 = scalar_select %p1076, %s82, 1
          %s1078 = smul.addr %s1077, 8
          %s1079 = scalar_lea.vmem %s1, %s1078
        $region132: #{decoder_layer_forward.1} parent=127 // pred_fallthru
          _
        // Predicated region
        $region133: #{decoder_layer_forward.1} parent=127 // pred_check
          %p1080 = pneg %p128
        $region134: #{decoder_layer_forward.1} parent=127 // pred_check_branch
          %1082 = sbr.rel (%p1080) target = $region136
        $region135: #{decoder_layer_forward.1} parent=127 // pred_region
          %p1083 = scmp.lt.s32.totalorder %s82, 1
          %s1084 = scalar_select %p1083, %s82, 1
          %s1085 = smul.addr %s1084, 2
          %s1086 = smul.addr %s1085, 8
          %s1087 = scalar_lea.vmem %s3, %s1086
        $region136: #{decoder_layer_forward.1} parent=127 // pred_fallthru
          _
        // Predicated region
        $region137: #{decoder_layer_forward.1} parent=127 // pred_check
          %p1088 = pneg %p154
        $region138: #{decoder_layer_forward.1} parent=127 // pred_check_branch
          %1090 = sbr.rel (%p1088) target = $region140
        $region139: #{decoder_layer_forward.1} parent=127 // pred_region
          %p1091 = scmp.lt.s32.totalorder %s82, 1
          %s1092 = scalar_select %p1091, %s82, 1
          %s1093 = smul.addr %s1092, 8
          %s1094 = scalar_lea.vmem %s5, %s1093
        $region140: #{decoder_layer_forward.1} parent=127 // pred_fallthru
          _
        // Predicated region
        $region141: #{decoder_layer_forward.1} parent=127 // pred_check
          %p1095 = pneg %p180
        $region142: #{decoder_layer_forward.1} parent=127 // pred_check_branch
          %1097 = sbr.rel (%p1095) target = $region144
        $region143: #{decoder_layer_forward.1} parent=127 // pred_region
          %p1098 = scmp.lt.s32.totalorder %s82, 1
          %s1099 = scalar_select %p1098, %s82, 1
          %s1100 = smul.addr %s1099, 2
          %s1101 = smul.addr %s1100, 8
          %s1102 = scalar_lea.vmem %s7, %s1101
        $region144: #{decoder_layer_forward.1} parent=127 // pred_fallthru
          _
      $region128: #{decoder_layer_forward.1} parent=5 // pred_fallthru
        _
      %p1103 = scmp.le.s32.totalorder 1, %s82
      %p1104 = scmp.lt.s32.totalorder %s82, 3
      %p1105 = pnand %p1103, %p1104
      %p1106 = pneg %p1105
      // Predicated region
      $region145: #{decoder_layer_forward.1} parent=5 // pred_check
        _
      $region146: #{decoder_layer_forward.1} parent=5 // pred_check_branch
        %1108 = sbr.rel (%p1105) target = $region148
      $region147: #{decoder_layer_forward.1} parent=5 // pred_region
        %s1109 = ssub.s32 %s82, 1
        // Predicated region
        $region149: #{decoder_layer_forward.1} parent=147 // pred_check
          %p1110 = pneg %p312
        $region150: #{decoder_layer_forward.1} parent=147 // pred_check_branch
          %1112 = sbr.rel (%p1110) target = $region152
        $region151: #{decoder_layer_forward.1} parent=147 // pred_region
          %1113 = dma.done [#allocation3], 16
        $region152: #{decoder_layer_forward.1} parent=147 // pred_fallthru
          _
        // Predicated region
        $region153: #{decoder_layer_forward.1} parent=147 // pred_check
          %p1114 = pneg %p354
        $region154: #{decoder_layer_forward.1} parent=147 // pred_check_branch
          %1116 = sbr.rel (%p1114) target = $region156
        $region155: #{decoder_layer_forward.1} parent=147 // pred_region
          %1117 = dma.done [#allocation5], 16
        $region156: #{decoder_layer_forward.1} parent=147 // pred_fallthru
          _
        // Predicated region
        $region157: #{decoder_layer_forward.1} parent=147 // pred_check
          %p1118 = pneg %p396
        $region158: #{decoder_layer_forward.1} parent=147 // pred_check_branch
          %1120 = sbr.rel (%p1118) target = $region160
        $region159: #{decoder_layer_forward.1} parent=147 // pred_region
          %1121 = dma.done [#allocation5], 16
        $region160: #{decoder_layer_forward.1} parent=147 // pred_fallthru
          _
        // Predicated region
        $region161: #{decoder_layer_forward.1} parent=147 // pred_check
          %p1122 = pneg %p417
        $region162: #{decoder_layer_forward.1} parent=147 // pred_check_branch
          %1124 = sbr.rel (%p1122) target = $region164
        $region163: #{decoder_layer_forward.1} parent=147 // pred_region
          %1125 = dma.done [#allocation8], 512
        $region164: #{decoder_layer_forward.1} parent=147 // pred_fallthru
          _
        // Predicated region
        $region165: #{decoder_layer_forward.1} parent=147 // pred_check
          %p1126 = pneg %p438
        $region166: #{decoder_layer_forward.1} parent=147 // pred_check_branch
          %1128 = sbr.rel (%p1126) target = $region168
        $region167: #{decoder_layer_forward.1} parent=147 // pred_region
          %1129 = dma.done [#allocation8], 16
        $region168: #{decoder_layer_forward.1} parent=147 // pred_fallthru
          _
        // Predicated region
        $region169: #{decoder_layer_forward.1} parent=147 // pred_check
          %p1130 = pneg %p459
        $region170: #{decoder_layer_forward.1} parent=147 // pred_check_branch
          %1132 = sbr.rel (%p1130) target = $region172
        $region171: #{decoder_layer_forward.1} parent=147 // pred_region
          %1133 = dma.done [#allocation11], 512
        $region172: #{decoder_layer_forward.1} parent=147 // pred_fallthru
          _
        // Predicated region
        $region173: #{decoder_layer_forward.1} parent=147 // pred_check
          %p1134 = pneg %p480
        $region174: #{decoder_layer_forward.1} parent=147 // pred_check_branch
          %1136 = sbr.rel (%p1134) target = $region176
        $region175: #{decoder_layer_forward.1} parent=147 // pred_region
          %1137 = dma.done [#allocation11], 16
        $region176: #{decoder_layer_forward.1} parent=147 // pred_fallthru
          _
        // Predicated region
        $region177: #{decoder_layer_forward.1} parent=147 // pred_check
          %p1138 = pneg %p501
        $region178: #{decoder_layer_forward.1} parent=147 // pred_check_branch
          %1140 = sbr.rel (%p1138) target = $region180
        $region179: #{decoder_layer_forward.1} parent=147 // pred_region
          %1141 = dma.done [#allocation14], 512
        $region180: #{decoder_layer_forward.1} parent=147 // pred_fallthru
          _
        // Predicated region
        $region181: #{decoder_layer_forward.1} parent=147 // pred_check
          %p1142 = pneg %p522
        $region182: #{decoder_layer_forward.1} parent=147 // pred_check_branch
          %1144 = sbr.rel (%p1142) target = $region184
        $region183: #{decoder_layer_forward.1} parent=147 // pred_region
          %1145 = dma.done [#allocation14], 16
        $region184: #{decoder_layer_forward.1} parent=147 // pred_fallthru
          _
        // Predicated region
        $region185: #{decoder_layer_forward.1} parent=147 // pred_check
          %p1146 = pneg %p543
        $region186: #{decoder_layer_forward.1} parent=147 // pred_check_branch
          %1148 = sbr.rel (%p1146) target = $region188
        $region187: #{decoder_layer_forward.1} parent=147 // pred_region
          %1149 = dma.done [#allocation17], 512
        $region188: #{decoder_layer_forward.1} parent=147 // pred_fallthru
          _
        // Predicated region
        $region189: #{decoder_layer_forward.1} parent=147 // pred_check
          %p1150 = pneg %p564
        $region190: #{decoder_layer_forward.1} parent=147 // pred_check_branch
          %1152 = sbr.rel (%p1150) target = $region192
        $region191: #{decoder_layer_forward.1} parent=147 // pred_region
          %1153 = dma.done [#allocation17], 16
        $region192: #{decoder_layer_forward.1} parent=147 // pred_fallthru
          _
        // Predicated region
        $region193: #{decoder_layer_forward.1} parent=147 // pred_check
          %p1154 = pneg %p585
        $region194: #{decoder_layer_forward.1} parent=147 // pred_check_branch
          %1156 = sbr.rel (%p1154) target = $region196
        $region195: #{decoder_layer_forward.1} parent=147 // pred_region
          %1157 = dma.done [#allocation20], 512
        $region196: #{decoder_layer_forward.1} parent=147 // pred_fallthru
          _
        // Predicated region
        $region197: #{decoder_layer_forward.1} parent=147 // pred_check
          %p1158 = pneg %p606
        $region198: #{decoder_layer_forward.1} parent=147 // pred_check_branch
          %1160 = sbr.rel (%p1158) target = $region200
        $region199: #{decoder_layer_forward.1} parent=147 // pred_region
          %1161 = dma.done [#allocation20], 16
        $region200: #{decoder_layer_forward.1} parent=147 // pred_fallthru
          _
        // Predicated region
        $region201: #{decoder_layer_forward.1} parent=147 // pred_check
          %p1162 = pneg %p648
        $region202: #{decoder_layer_forward.1} parent=147 // pred_check_branch
          %1164 = sbr.rel (%p1162) target = $region204
        $region203: #{decoder_layer_forward.1} parent=147 // pred_region
          %1165 = dma.done [#allocation23], 16
        $region204: #{decoder_layer_forward.1} parent=147 // pred_fallthru
          _
        // Predicated region
        $region205: #{decoder_layer_forward.1} parent=147 // pred_check
          %p1166 = pneg %p669
        $region206: #{decoder_layer_forward.1} parent=147 // pred_check_branch
          %1168 = sbr.rel (%p1166) target = $region208
        $region207: #{decoder_layer_forward.1} parent=147 // pred_region
          %1169 = dma.done [#allocation23], 16
        $region208: #{decoder_layer_forward.1} parent=147 // pred_fallthru
          _
        // Predicated region
        $region209: #{decoder_layer_forward.1} parent=147 // pred_check
          %p1170 = pneg %p690
        $region210: #{decoder_layer_forward.1} parent=147 // pred_check_branch
          %1172 = sbr.rel (%p1170) target = $region212
        $region211: #{decoder_layer_forward.1} parent=147 // pred_region
          %1173 = dma.done [#allocation26], 16
        $region212: #{decoder_layer_forward.1} parent=147 // pred_fallthru
          _
        // Predicated region
        $region213: #{decoder_layer_forward.1} parent=147 // pred_check
          %p1174 = pneg %p711
        $region214: #{decoder_layer_forward.1} parent=147 // pred_check_branch
          %1176 = sbr.rel (%p1174) target = $region216
        $region215: #{decoder_layer_forward.1} parent=147 // pred_region
          %1177 = dma.done [#allocation26], 16
        $region216: #{decoder_layer_forward.1} parent=147 // pred_fallthru
          _
        // Predicated region
        $region217: #{decoder_layer_forward.1} parent=147 // pred_check
          %p1178 = pneg %p732
        $region218: #{decoder_layer_forward.1} parent=147 // pred_check_branch
          %1180 = sbr.rel (%p1178) target = $region220
        $region219: #{decoder_layer_forward.1} parent=147 // pred_region
          %1181 = dma.done [#allocation29], 16
        $region220: #{decoder_layer_forward.1} parent=147 // pred_fallthru
          _
        // Predicated region
        $region221: #{decoder_layer_forward.1} parent=147 // pred_check
          %p1182 = pneg %p753
        $region222: #{decoder_layer_forward.1} parent=147 // pred_check_branch
          %1184 = sbr.rel (%p1182) target = $region224
        $region223: #{decoder_layer_forward.1} parent=147 // pred_region
          %1185 = dma.done [#allocation29], 16
        $region224: #{decoder_layer_forward.1} parent=147 // pred_fallthru
          _
        // Predicated region
        $region225: #{decoder_layer_forward.1} parent=147 // pred_check
          %p1186 = pneg %p774
        $region226: #{decoder_layer_forward.1} parent=147 // pred_check_branch
          %1188 = sbr.rel (%p1186) target = $region228
        $region227: #{decoder_layer_forward.1} parent=147 // pred_region
          %1189 = dma.done [#allocation32], 16
        $region228: #{decoder_layer_forward.1} parent=147 // pred_fallthru
          _
        %p1190 = scmp.lt.s32.totalorder %s87, 1
        %s1191 = scalar_select %p1190, %s87, 1
        %s1192 = smul.addr %s1191, 8
        %s1193 = scalar_lea.vmem %s1, %s1192
        %p1194 = pneg %p108
        %p1195 = pneg %p105
        %p1196 = scmp.lt.s32.totalorder %s87, 1
        %s1197 = scalar_select %p1196, %s87, 1
        %s1198 = smul.addr %s1197, 2
        %s1199 = smul.addr %s1198, 8
        %s1200 = scalar_lea.vmem %s3, %s1199
        %p1201 = pneg %p134
        %p1202 = pneg %p131
        %p1203 = scmp.lt.s32.totalorder %s87, 1
        %s1204 = scalar_select %p1203, %s87, 1
        %s1205 = smul.addr %s1204, 8
        %s1206 = scalar_lea.vmem %s5, %s1205
        %p1207 = pneg %p160
        %p1208 = pneg %p157
        %p1209 = scmp.lt.s32.totalorder %s87, 1
        %s1210 = scalar_select %p1209, %s87, 1
        %s1211 = smul.addr %s1210, 2
        %s1212 = smul.addr %s1211, 8
        %s1213 = scalar_lea.vmem %s7, %s1212
        %p1214 = pneg %p186
        %p1215 = pneg %p183
        %p1216 = pneg %p207
        %p1217 = pneg %p204
        %p1218 = pneg %p228
        %p1219 = pneg %p225
        %p1220 = pneg %p249
        %p1221 = pneg %p246
        %p1222 = pneg %p270
        %p1223 = pneg %p267
        %p1224 = pneg %p291
        %p1225 = pneg %p288
        %p1226 = pneg %p312
        %p1227 = pneg %p309
        %p1228 = pneg %p333
        %p1229 = pneg %p330
        %p1230 = pneg %p354
        %p1231 = pneg %p351
        %p1232 = pneg %p375
        %p1233 = pneg %p372
        %p1234 = pneg %p396
        %p1235 = pneg %p393
        %p1236 = pneg %p417
        %p1237 = pneg %p414
        %p1238 = pneg %p438
        %p1239 = pneg %p435
        %p1240 = pneg %p459
        %p1241 = pneg %p456
        %p1242 = pneg %p480
        %p1243 = pneg %p477
        %p1244 = pneg %p501
        %p1245 = pneg %p498
        %p1246 = pneg %p522
        %p1247 = pneg %p519
        %p1248 = pneg %p543
        %p1249 = pneg %p540
        %p1250 = pneg %p564
        %p1251 = pneg %p561
        %p1252 = pneg %p585
        %p1253 = pneg %p582
        %p1254 = pneg %p606
        %p1255 = pneg %p603
        %p1256 = pneg %p627
        %p1257 = pneg %p624
        %p1258 = pneg %p648
        %p1259 = pneg %p645
        %p1260 = pneg %p669
        %p1261 = pneg %p666
        %p1262 = pneg %p690
        %p1263 = pneg %p687
        %p1264 = pneg %p711
        %p1265 = pneg %p708
        %p1266 = pneg %p732
        %p1267 = pneg %p729
        %p1268 = pneg %p753
        %p1269 = pneg %p750
        %p1270 = pneg %p774
        %p1271 = pneg %p771
        %p1272 = pneg %p800
        %p1273 = pneg %p797
        %p1274 = scmp.lt.s32.totalorder %s87, 1
        %s1275 = scalar_select %p1274, %s87, 1
        %s1276 = smul.addr %s1275, 8
        %s1277 = scalar_lea.vmem %s65, %s1276
        %p1278 = scmp.lt.s32.totalorder %s87, 1
        %s1279 = scalar_select %p1278, %s87, 1
        %s1280 = smul.addr %s1279, 8
        %s1281 = scalar_lea.vmem %s1, %s1280
        %p1282 = scmp.lt.s32.totalorder %s87, 1
        %s1283 = scalar_select %p1282, %s87, 1
        %s1284 = smul.addr %s1283, 2
        %s1285 = smul.addr %s1284, 8
        %s1286 = scalar_lea.vmem %s3, %s1285
        %p1287 = scmp.lt.s32.totalorder %s87, 1
        %s1288 = scalar_select %p1287, %s87, 1
        %s1289 = smul.addr %s1288, 8
        %s1290 = scalar_lea.vmem %s5, %s1289
        %p1291 = scmp.lt.s32.totalorder %s87, 1
        %s1292 = scalar_select %p1291, %s87, 1
        %s1293 = smul.addr %s1292, 2
        %s1294 = smul.addr %s1293, 8
        %s1295 = scalar_lea.vmem %s7, %s1294
        %p1296 = scmp.lt.s32.totalorder %s87, 1
        %s1297 = scalar_select %p1296, %s87, 1
        %s1298 = smul.addr %s1297, 8
        %s1299 = scalar_lea.vmem %s65, %s1298
        %v1300 = vld [vmem:[%s1281] sm:$0xff]
        %v1301 = vld [vmem:[%s1286] sm:$0xff]
        %v1302 = vld [vmem:[%s1286 + $0x8] sm:$0xff]
        %v1303 = vld [vmem:[%s1290] sm:$0xff]
        %v1304 = vld [vmem:[%s1295] sm:$0xff]
        %v1305 = vld [vmem:[%s1295 + $0x8] sm:$0xff]
        %v1306 = vld [vmem:[%s9] sm:$0xff]
        %v1307 = vld [vmem:[%s9 + $0x8] sm:$0xff]
        %v1308 = vld [vmem:[%s9 + $0x10] sm:$0xff]
        %v1309 = vld [vmem:[%s9 + $0x18] sm:$0xff]
        %v1310 = vld [vmem:[%s11] sm:$0xff]
        %v1311 = vld [vmem:[%s11 + $0x8] sm:$0xff]
        %v1312 = vld [vmem:[%s11 + $0x10] sm:$0xff]
        %v1313 = vld [vmem:[%s11 + $0x18] sm:$0xff]
        %v1314 = vld [vmem:[%s11 + $0x20] sm:$0xff]
        %v1315 = vld [vmem:[%s11 + $0x28] sm:$0xff]
        %v1316 = vld [vmem:[%s11 + $0x30] sm:$0xff]
        %v1317 = vld [vmem:[%s11 + $0x38] sm:$0xff]
        %v1318 = vadd.f32 %v1300, %v1303
        %v1319 = vld [vmem:[%s13] sm:$0xff]
        %v1320 = vld [vmem:[%s13 + $0x8] sm:$0xff]
        %v1321 = vld [vmem:[%s13 + $0x10] sm:$0xff]
        %v1322 = vld [vmem:[%s13 + $0x18] sm:$0xff]
        %v1323 = vld [vmem:[%s15] sm:$0x1]
        %v1325 = vlaneseq
        %v1326 = vshrl.u32 %v1325, 7
        %v1327 = vsub.s32 0, %v1326
        %v1328 = vrot.slane %v1323, %v1327
        %vm1330 = vcmask 261120
        %v1332 = vsel %vm1330, %v1318, 0
        %1334 = vmatprep.subr.mxu0 0.0
        %1335 = vmatpush1.msra.mxu0 0.0
        %1336 = vmatprep.subr.mxu0 0.0
        %1337 = vmatpush1.msra.mxu0 0.0
        %1338 = vmatprep.subr.mxu0 0.0
        %1339 = vmatpush1.msra.mxu0 0.0
        %1340 = vmatprep.subr.mxu0 0.0
        %1341 = vmatpush1.msra.mxu0 0.0
        %1342 = vmatprep.subr.mxu0 0.0
        %1343 = vmatpush1.msra.mxu0 0.0
        %1344 = vmatprep.subr.mxu0 0.0
        %1345 = vmatpush1.msra.mxu0 0.0
        %1346 = vmatprep.subr.mxu0 0.0
        %1347 = vmatpush1.msra.mxu0 0.0
        %1348 = vmatprep.subr.mxu0 0.0
        %1349 = vmatpush1.msra.mxu0 0.0
        %1350 = vmatprep.subr.mxu0 0.0
        %1351 = vmatpush1.msra.mxu0 0.0
        %1352 = vmatprep.subr.mxu0 0.0
        %1353 = vmatpush1.msra.mxu0 0.0
        %1354 = vmatprep.subr.mxu0 0.0
        %1355 = vmatpush1.msra.mxu0 0.0
        %1356 = vmatprep.subr.mxu0 0.0
        %1357 = vmatpush1.msra.mxu0 0.0
        %1358 = vmatprep.subr.mxu0 0.0
        %1359 = vmatpush1.msra.mxu0 %v1322
        %1360 = vmatprep.subr.mxu0 0.0
        %1361 = vmatpush1.msra.mxu0 %v1321
        %1362 = vmatprep.subr.mxu0 0.0
        %1363 = vmatpush1.msra.mxu0 %v1320
        %1364 = vmatprep.subr.mxu0 0.0
        %1365 = vmatpush1.msra.mxu0 %v1319
        %1366 = vmatprep.subr.mxu0 0.0
        %1367 = vmatpush2.msra.mxu0 0.0
        %1368 = vmatprep.subr.mxu0 0.0
        %1369 = vmatpush2.msra.mxu0 0.0
        %1370 = vmatprep.subr.mxu0 0.0
        %1371 = vmatpush2.msra.mxu0 0.0
        %1372 = vmatprep.subr.mxu0 0.0
        %1373 = vmatpush2.msra.mxu0 0.0
        %1374 = vmatprep.subr.mxu0 0.0
        %1375 = vmatpush2.msra.mxu0 0.0
        %1376 = vmatprep.subr.mxu0 0.0
        %1377 = vmatpush2.msra.mxu0 0.0
        %1378 = vmatprep.subr.mxu0 0.0
        %1379 = vmatpush2.msra.mxu0 0.0
        %1380 = vmatprep.subr.mxu0 0.0
        %1381 = vmatpush2.msra.mxu0 0.0
        %1382 = vmatprep.subr.mxu0 0.0
        %1383 = vmatpush2.msra.mxu0 0.0
        %1384 = vmatprep.subr.mxu0 0.0
        %1385 = vmatpush2.msra.mxu0 0.0
        %1386 = vmatprep.subr.mxu0 0.0
        %1387 = vmatpush2.msra.mxu0 0.0
        %1388 = vmatprep.subr.mxu0 0.0
        %1389 = vmatpush2.msra.mxu0 0.0
        %1390 = vmatprep.subr.mxu0 0.0
        %1391 = vmatpush2.msra.mxu0 0.0
        %1392 = vmatprep.subr.mxu0 0.0
        %1393 = vmatpush2.msra.mxu0 0.0
        %1394 = vmatprep.subr.mxu0 0.0
        %1395 = vmatpush2.msra.mxu0 0.0
        %1396 = vmatprep.subr.mxu0 0.0
        %1397 = vmatpush2.msra.mxu0 0.0
        %1398 = vmatprep.mubr.f32.mxu0 0.0
        %1399 = vmatmul.mubr.f32.gmra.mxu0 %v1332
        %v1400 = vpop.f32.mrf.mxu0
        %v1401 = vadd.f32 %v1328, %v1400
        %v1402 = vpop.f32.mrf.mxu0
        %1403 = vdwg.mxu0
        %v1404 = vld [vmem:[%s17] sm:$0xff]
        %v1405 = vld [vmem:[%s17 + $0x8] sm:$0xff]
        %v1406 = vld [vmem:[%s17 + $0x10] sm:$0xff]
        %v1407 = vld [vmem:[%s17 + $0x18] sm:$0xff]
        %v1408 = vld [vmem:[#allocation2] sm:$0x1]
        %v1410 = vlaneseq
        %v1411 = vshrl.u32 %v1410, 7
        %v1412 = vsub.s32 0, %v1411
        %v1413 = vrot.slane %v1408, %v1412
        %1415 = vmatprep.subr.mxu0 0.0
        %1416 = vmatpush1.msra.mxu0 0.0
        %1417 = vmatprep.subr.mxu0 0.0
        %1418 = vmatpush1.msra.mxu0 0.0
        %1419 = vmatprep.subr.mxu0 0.0
        %1420 = vmatpush1.msra.mxu0 0.0
        %1421 = vmatprep.subr.mxu0 0.0
        %1422 = vmatpush1.msra.mxu0 0.0
        %1423 = vmatprep.subr.mxu0 0.0
        %1424 = vmatpush1.msra.mxu0 0.0
        %1425 = vmatprep.subr.mxu0 0.0
        %1426 = vmatpush1.msra.mxu0 0.0
        %1427 = vmatprep.subr.mxu0 0.0
        %1428 = vmatpush1.msra.mxu0 0.0
        %1429 = vmatprep.subr.mxu0 0.0
        %1430 = vmatpush1.msra.mxu0 0.0
        %1431 = vmatprep.subr.mxu0 0.0
        %1432 = vmatpush1.msra.mxu0 0.0
        %1433 = vmatprep.subr.mxu0 0.0
        %1434 = vmatpush1.msra.mxu0 0.0
        %1435 = vmatprep.subr.mxu0 0.0
        %1436 = vmatpush1.msra.mxu0 0.0
        %1437 = vmatprep.subr.mxu0 0.0
        %1438 = vmatpush1.msra.mxu0 0.0
        %1439 = vmatprep.subr.mxu0 0.0
        %1440 = vmatpush1.msra.mxu0 %v1407
        %1441 = vmatprep.subr.mxu0 0.0
        %1442 = vmatpush1.msra.mxu0 %v1406
        %1443 = vmatprep.subr.mxu0 0.0
        %1444 = vmatpush1.msra.mxu0 %v1405
        %1445 = vmatprep.subr.mxu0 0.0
        %1446 = vmatpush1.msra.mxu0 %v1404
        %1447 = vmatprep.subr.mxu0 0.0
        %1448 = vmatpush2.msra.mxu0 0.0
        %1449 = vmatprep.subr.mxu0 0.0
        %1450 = vmatpush2.msra.mxu0 0.0
        %1451 = vmatprep.subr.mxu0 0.0
        %1452 = vmatpush2.msra.mxu0 0.0
        %1453 = vmatprep.subr.mxu0 0.0
        %1454 = vmatpush2.msra.mxu0 0.0
        %1455 = vmatprep.subr.mxu0 0.0
        %1456 = vmatpush2.msra.mxu0 0.0
        %1457 = vmatprep.subr.mxu0 0.0
        %1458 = vmatpush2.msra.mxu0 0.0
        %1459 = vmatprep.subr.mxu0 0.0
        %1460 = vmatpush2.msra.mxu0 0.0
        %1461 = vmatprep.subr.mxu0 0.0
        %1462 = vmatpush2.msra.mxu0 0.0
        %1463 = vmatprep.subr.mxu0 0.0
        %1464 = vmatpush2.msra.mxu0 0.0
        %1465 = vmatprep.subr.mxu0 0.0
        %1466 = vmatpush2.msra.mxu0 0.0
        %1467 = vmatprep.subr.mxu0 0.0
        %1468 = vmatpush2.msra.mxu0 0.0
        %1469 = vmatprep.subr.mxu0 0.0
        %1470 = vmatpush2.msra.mxu0 0.0
        %1471 = vmatprep.subr.mxu0 0.0
        %1472 = vmatpush2.msra.mxu0 0.0
        %1473 = vmatprep.subr.mxu0 0.0
        %1474 = vmatpush2.msra.mxu0 0.0
        %1475 = vmatprep.subr.mxu0 0.0
        %1476 = vmatpush2.msra.mxu0 0.0
        %1477 = vmatprep.subr.mxu0 0.0
        %1478 = vmatpush2.msra.mxu0 0.0
        %1479 = vmatprep.mubr.f32.mxu0 0.0
        %1480 = vmatmul.mubr.f32.gmra.mxu0 %v1332
        %v1481 = vpop.f32.mrf.mxu0
        %v1482 = vadd.f32 %v1413, %v1481
        %v1483 = vpop.f32.mrf.mxu0
        %1484 = vdwg.mxu0
        %v1485 = vld [vmem:[%s21] sm:$0xff]
        %v1486 = vld [vmem:[%s21 + $0x8] sm:$0xff]
        %v1487 = vld [vmem:[%s21 + $0x10] sm:$0xff]
        %v1488 = vld [vmem:[%s21 + $0x18] sm:$0xff]
        %v1489 = vld [vmem:[#allocation4] sm:$0x1]
        %v1491 = vlaneseq
        %v1492 = vshrl.u32 %v1491, 7
        %v1493 = vsub.s32 0, %v1492
        %v1494 = vrot.slane %v1489, %v1493
        %v1497 = vsel %vm1330, %v1300, 0
        %1499 = vmatprep.subr.mxu0 0.0
        %1500 = vmatpush1.msra.mxu0 0.0
        %1501 = vmatprep.subr.mxu0 0.0
        %1502 = vmatpush1.msra.mxu0 0.0
        %1503 = vmatprep.subr.mxu0 0.0
        %1504 = vmatpush1.msra.mxu0 0.0
        %1505 = vmatprep.subr.mxu0 0.0
        %1506 = vmatpush1.msra.mxu0 0.0
        %1507 = vmatprep.subr.mxu0 0.0
        %1508 = vmatpush1.msra.mxu0 0.0
        %1509 = vmatprep.subr.mxu0 0.0
        %1510 = vmatpush1.msra.mxu0 0.0
        %1511 = vmatprep.subr.mxu0 0.0
        %1512 = vmatpush1.msra.mxu0 0.0
        %1513 = vmatprep.subr.mxu0 0.0
        %1514 = vmatpush1.msra.mxu0 0.0
        %1515 = vmatprep.subr.mxu0 0.0
        %1516 = vmatpush1.msra.mxu0 0.0
        %1517 = vmatprep.subr.mxu0 0.0
        %1518 = vmatpush1.msra.mxu0 0.0
        %1519 = vmatprep.subr.mxu0 0.0
        %1520 = vmatpush1.msra.mxu0 0.0
        %1521 = vmatprep.subr.mxu0 0.0
        %1522 = vmatpush1.msra.mxu0 0.0
        %1523 = vmatprep.subr.mxu0 0.0
        %1524 = vmatpush1.msra.mxu0 %v1488
        %1525 = vmatprep.subr.mxu0 0.0
        %1526 = vmatpush1.msra.mxu0 %v1487
        %1527 = vmatprep.subr.mxu0 0.0
        %1528 = vmatpush1.msra.mxu0 %v1486
        %1529 = vmatprep.subr.mxu0 0.0
        %1530 = vmatpush1.msra.mxu0 %v1485
        %1531 = vmatprep.subr.mxu0 0.0
        %1532 = vmatpush2.msra.mxu0 0.0
        %1533 = vmatprep.subr.mxu0 0.0
        %1534 = vmatpush2.msra.mxu0 0.0
        %1535 = vmatprep.subr.mxu0 0.0
        %1536 = vmatpush2.msra.mxu0 0.0
        %1537 = vmatprep.subr.mxu0 0.0
        %1538 = vmatpush2.msra.mxu0 0.0
        %1539 = vmatprep.subr.mxu0 0.0
        %1540 = vmatpush2.msra.mxu0 0.0
        %1541 = vmatprep.subr.mxu0 0.0
        %1542 = vmatpush2.msra.mxu0 0.0
        %1543 = vmatprep.subr.mxu0 0.0
        %1544 = vmatpush2.msra.mxu0 0.0
        %1545 = vmatprep.subr.mxu0 0.0
        %1546 = vmatpush2.msra.mxu0 0.0
        %1547 = vmatprep.subr.mxu0 0.0
        %1548 = vmatpush2.msra.mxu0 0.0
        %1549 = vmatprep.subr.mxu0 0.0
        %1550 = vmatpush2.msra.mxu0 0.0
        %1551 = vmatprep.subr.mxu0 0.0
        %1552 = vmatpush2.msra.mxu0 0.0
        %1553 = vmatprep.subr.mxu0 0.0
        %1554 = vmatpush2.msra.mxu0 0.0
        %1555 = vmatprep.subr.mxu0 0.0
        %1556 = vmatpush2.msra.mxu0 0.0
        %1557 = vmatprep.subr.mxu0 0.0
        %1558 = vmatpush2.msra.mxu0 0.0
        %1559 = vmatprep.subr.mxu0 0.0
        %1560 = vmatpush2.msra.mxu0 0.0
        %1561 = vmatprep.subr.mxu0 0.0
        %1562 = vmatpush2.msra.mxu0 0.0
        %1563 = vmatprep.mubr.f32.mxu0 0.0
        %1564 = vmatmul.mubr.f32.gmra.mxu0 %v1497
        %v1565 = vpop.f32.mrf.mxu0
        %v1566 = vadd.f32 %v1494, %v1565
        %v1567 = vpop.f32.mrf.mxu0
        %1568 = vdwg.mxu0
        %v1569 = vmul.f32 %v1482, %v1306
        %v1570 = vmul.f32 %v1482, %v1307
        %v1571 = vmul.f32 %v1482, %v1308
        %v1572 = vmul.f32 %v1482, %v1309
        %v1573 = vmul.f32 %v1566, %v1306
        %v1574 = vmul.f32 %v1566, %v1307
        %v1575 = vmul.f32 %v1566, %v1308
        %v1576 = vmul.f32 %v1566, %v1309
        %v1577 = vmul.f32 %v1401, 0.35355338
        %v1579 = vsel %vm1330, %v1577, 0
        %v1582 = vsel %vm1330, %v1569, 0
        %v1585 = vsel %vm1330, %v1570, 0
        %v1588 = vsel %vm1330, %v1571, 0
        %v1591 = vsel %vm1330, %v1572, 0
        %1593 = vmatprep.subr.mxu0 0.0
        %1594 = vmatpush1.xpose.msra.mxu0 0.0
        %1595 = vmatprep.subr.mxu0 0.0
        %1596 = vmatpush1.xpose.msra.mxu0 0.0
        %1597 = vmatprep.subr.mxu0 0.0
        %1598 = vmatpush1.xpose.msra.mxu0 0.0
        %1599 = vmatprep.subr.mxu0 0.0
        %1600 = vmatpush1.xpose.msra.mxu0 0.0
        %1601 = vmatprep.subr.mxu0 0.0
        %1602 = vmatpush1.xpose.msra.mxu0 0.0
        %1603 = vmatprep.subr.mxu0 0.0
        %1604 = vmatpush1.xpose.msra.mxu0 0.0
        %1605 = vmatprep.subr.mxu0 0.0
        %1606 = vmatpush1.xpose.msra.mxu0 0.0
        %1607 = vmatprep.subr.mxu0 0.0
        %1608 = vmatpush1.xpose.msra.mxu0 0.0
        %1609 = vmatprep.subr.mxu0 0.0
        %1610 = vmatpush1.xpose.msra.mxu0 0.0
        %1611 = vmatprep.subr.mxu0 0.0
        %1612 = vmatpush1.xpose.msra.mxu0 0.0
        %1613 = vmatprep.subr.mxu0 0.0
        %1614 = vmatpush1.xpose.msra.mxu0 0.0
        %1615 = vmatprep.subr.mxu0 0.0
        %1616 = vmatpush1.xpose.msra.mxu0 0.0
        %1617 = vmatprep.subr.mxu0 0.0
        %1618 = vmatpush1.xpose.msra.mxu0 %v1591
        %1619 = vmatprep.subr.mxu0 0.0
        %1620 = vmatpush1.xpose.msra.mxu0 %v1588
        %1621 = vmatprep.subr.mxu0 0.0
        %1622 = vmatpush1.xpose.msra.mxu0 %v1585
        %1623 = vmatprep.subr.mxu0 0.0
        %1624 = vmatpush1.xpose.msra.mxu0 %v1582
        %1625 = vmatprep.subr.mxu0 0.0
        %1626 = vmatpush2.xpose.msra.mxu0 0.0
        %1627 = vmatprep.subr.mxu0 0.0
        %1628 = vmatpush2.xpose.msra.mxu0 0.0
        %1629 = vmatprep.subr.mxu0 0.0
        %1630 = vmatpush2.xpose.msra.mxu0 0.0
        %1631 = vmatprep.subr.mxu0 0.0
        %1632 = vmatpush2.xpose.msra.mxu0 0.0
        %1633 = vmatprep.subr.mxu0 0.0
        %1634 = vmatpush2.xpose.msra.mxu0 0.0
        %1635 = vmatprep.subr.mxu0 0.0
        %1636 = vmatpush2.xpose.msra.mxu0 0.0
        %1637 = vmatprep.subr.mxu0 0.0
        %1638 = vmatpush2.xpose.msra.mxu0 0.0
        %1639 = vmatprep.subr.mxu0 0.0
        %1640 = vmatpush2.xpose.msra.mxu0 0.0
        %1641 = vmatprep.subr.mxu0 0.0
        %1642 = vmatpush2.xpose.msra.mxu0 0.0
        %1643 = vmatprep.subr.mxu0 0.0
        %1644 = vmatpush2.xpose.msra.mxu0 0.0
        %1645 = vmatprep.subr.mxu0 0.0
        %1646 = vmatpush2.xpose.msra.mxu0 0.0
        %1647 = vmatprep.subr.mxu0 0.0
        %1648 = vmatpush2.xpose.msra.mxu0 0.0
        %1649 = vmatprep.subr.mxu0 0.0
        %1650 = vmatpush2.xpose.msra.mxu0 0.0
        %1651 = vmatprep.subr.mxu0 0.0
        %1652 = vmatpush2.xpose.msra.mxu0 0.0
        %1653 = vmatprep.subr.mxu0 0.0
        %1654 = vmatpush2.xpose.msra.mxu0 0.0
        %1655 = vmatprep.subr.mxu0 0.0
        %1656 = vmatpush2.xpose.msra.mxu0 0.0
        %1657 = vmatprep.mubr.f32.mxu0 0.0
        %1658 = vmatmul.mubr.f32.gmra.mxu0 %v1579
        %v1659 = vpop.f32.mrf.mxu0
        %v1660 = vadd.f32 0.0, %v1659
        %v1661 = vpop.f32.mrf.mxu0
        %1662 = vdwg.mxu0
        %1664 = vrot.lane.b32.xlu0 %v1660, 120
        %v1665 = vpop.permute.xlu0 %1664
        %1667 = vrot.lane.b32.xlu0 %v1660, 112
        %v1668 = vpop.permute.xlu0 %1667
        %1670 = vrot.lane.b32.xlu0 %v1660, 104
        %v1671 = vpop.permute.xlu0 %1670
        %v1673 = vcombine.low %v1660, %v1668
        %v1674 = vcombine.high %v1660, %v1668
        %v1676 = vunpack.c.l.s4 1983009808
        %v1677 = vunpack.c.0.s8 %v1676
        %v1678 = vlaneseq
        %v1679 = vshrl.u32 %v1678, 7
        %v1680 = vsub.s32 %v1677, %v1679
        %v1681 = vrot.slane %v1673, %v1680
        %v1683 = vunpack.c.l.s4 1983009808
        %v1684 = vunpack.c.0.s8 %v1683
        %v1685 = vlaneseq
        %v1686 = vshrl.u32 %v1685, 7
        %v1687 = vsub.s32 %v1684, %v1686
        %v1688 = vrot.slane %v1674, %v1687
        %v1689 = vcombine.low %v1665, %v1671
        %v1690 = vcombine.high %v1665, %v1671
        %v1692 = vunpack.c.l.s4 1983009808
        %v1693 = vunpack.c.0.s8 %v1692
        %v1694 = vlaneseq
        %v1695 = vshrl.u32 %v1694, 7
        %v1696 = vsub.s32 %v1693, %v1695
        %v1697 = vrot.slane %v1689, %v1696
        %v1699 = vunpack.c.l.s4 1983009808
        %v1700 = vunpack.c.0.s8 %v1699
        %v1701 = vlaneseq
        %v1702 = vshrl.u32 %v1701, 7
        %v1703 = vsub.s32 %v1700, %v1702
        %v1704 = vrot.slane %v1690, %v1703
        %v1705 = vcombine.low %v1681, %v1697
        %v1706 = vcombine.high %v1681, %v1697
        %v1708 = vunpack.c.l.s4 1934713408
        %v1709 = vunpack.c.0.s8 %v1708
        %v1710 = vlaneseq
        %v1711 = vshrl.u32 %v1710, 7
        %v1712 = vsub.s32 %v1709, %v1711
        %v1713 = vrot.slane %v1705, %v1712
        %v1715 = vunpack.c.l.s4 1934713408
        %v1716 = vunpack.c.0.s8 %v1715
        %v1717 = vlaneseq
        %v1718 = vshrl.u32 %v1717, 7
        %v1719 = vsub.s32 %v1716, %v1718
        %v1720 = vrot.slane %v1706, %v1719
        %v1721 = vcombine.low %v1688, %v1704
        %v1722 = vcombine.high %v1688, %v1704
        %v1724 = vunpack.c.l.s4 1934713408
        %v1725 = vunpack.c.0.s8 %v1724
        %v1726 = vlaneseq
        %v1727 = vshrl.u32 %v1726, 7
        %v1728 = vsub.s32 %v1725, %v1727
        %v1729 = vrot.slane %v1721, %v1728
        %v1731 = vunpack.c.l.s4 1934713408
        %v1732 = vunpack.c.0.s8 %v1731
        %v1733 = vlaneseq
        %v1734 = vshrl.u32 %v1733, 7
        %v1735 = vsub.s32 %v1732, %v1734
        %v1736 = vrot.slane %v1722, %v1735
        %v1737 = vcombine.high %v1713, 0.0
        %v1738 = vcombine.high %v1720, 0.0
        %v1739 = vcombine.high %v1729, 0.0
        %v1740 = vcombine.high %v1736, 0.0
        %vm1741 = vcmask 60416
        %v1742 = vsel %vm1741, %v1713, -inf
        %1743 = vmax.xlane.f32.xlu0 %v1742
        %v1744 = vpop.xlane.xlu0 %1743
        %v1745 = vsel %vm1741, %v1737, -inf
        %1746 = vmax.xlane.f32.xlu0 %v1745
        %v1747 = vpop.xlane.xlu0 %1746
        %v1748 = vsel %vm1741, %v1720, -inf
        %1749 = vmax.xlane.f32.xlu0 %v1748
        %v1750 = vpop.xlane.xlu0 %1749
        %v1751 = vsel %vm1741, %v1738, -inf
        %1752 = vmax.xlane.f32.xlu0 %v1751
        %v1753 = vpop.xlane.xlu0 %1752
        %v1754 = vsel %vm1741, %v1729, -inf
        %1755 = vmax.xlane.f32.xlu0 %v1754
        %v1756 = vpop.xlane.xlu0 %1755
        %v1757 = vsel %vm1741, %v1739, -inf
        %1758 = vmax.xlane.f32.xlu0 %v1757
        %v1759 = vpop.xlane.xlu0 %1758
        %v1760 = vsel %vm1741, %v1736, -inf
        %1761 = vmax.xlane.f32.xlu0 %v1760
        %v1762 = vpop.xlane.xlu0 %1761
        %v1763 = vsel %vm1741, %v1740, -inf
        %1764 = vmax.xlane.f32.xlu0 %v1763
        %v1765 = vpop.xlane.xlu0 %1764
        %v1766 = vsub.f32 %v1713, %v1744
        %v1767 = vsub.f32 %v1737, %v1747
        %v1768 = vsub.f32 %v1720, %v1750
        %v1769 = vsub.f32 %v1738, %v1753
        %v1770 = vsub.f32 %v1729, %v1756
        %v1771 = vsub.f32 %v1739, %v1759
        %v1772 = vsub.f32 %v1736, %v1762
        %v1773 = vsub.f32 %v1740, %v1765
        %v1774 = vmul.f32 %v1766, 1.442695
        %v1775 = vpow.pop %v1774
        %v1776 = vmul.f32 %v1767, 1.442695
        %v1777 = vpow.pop %v1776
        %v1778 = vmul.f32 %v1768, 1.442695
        %v1779 = vpow.pop %v1778
        %v1780 = vmul.f32 %v1769, 1.442695
        %v1781 = vpow.pop %v1780
        %v1782 = vmul.f32 %v1770, 1.442695
        %v1783 = vpow.pop %v1782
        %v1784 = vmul.f32 %v1771, 1.442695
        %v1785 = vpow.pop %v1784
        %v1786 = vmul.f32 %v1772, 1.442695
        %v1787 = vpow.pop %v1786
        %v1788 = vmul.f32 %v1773, 1.442695
        %v1789 = vpow.pop %v1788
        %v1790 = vsel %vm1741, %v1775, 0.0
        %1791 = vadd.xlane.f32.xlu0 %v1790
        %v1792 = vpop.xlane.xlu0 %1791
        %v1793 = vsel %vm1741, %v1777, 0.0
        %1794 = vadd.xlane.f32.xlu0 %v1793
        %v1795 = vpop.xlane.xlu0 %1794
        %v1796 = vsel %vm1741, %v1779, 0.0
        %1797 = vadd.xlane.f32.xlu0 %v1796
        %v1798 = vpop.xlane.xlu0 %1797
        %v1799 = vsel %vm1741, %v1781, 0.0
        %1800 = vadd.xlane.f32.xlu0 %v1799
        %v1801 = vpop.xlane.xlu0 %1800
        %v1802 = vsel %vm1741, %v1783, 0.0
        %1803 = vadd.xlane.f32.xlu0 %v1802
        %v1804 = vpop.xlane.xlu0 %1803
        %v1805 = vsel %vm1741, %v1785, 0.0
        %1806 = vadd.xlane.f32.xlu0 %v1805
        %v1807 = vpop.xlane.xlu0 %1806
        %v1808 = vsel %vm1741, %v1787, 0.0
        %1809 = vadd.xlane.f32.xlu0 %v1808
        %v1810 = vpop.xlane.xlu0 %1809
        %v1811 = vsel %vm1741, %v1789, 0.0
        %1812 = vadd.xlane.f32.xlu0 %v1811
        %v1813 = vpop.xlane.xlu0 %1812
        %v1814 = vcombine.low %v1775, %v1779
        %v1816 = vunpack.c.l.s4 1983009808
        %v1817 = vunpack.c.0.s8 %v1816
        %v1818 = vlaneseq
        %v1819 = vshrl.u32 %v1818, 7
        %v1820 = vsub.s32 %v1817, %v1819
        %v1821 = vrot.slane %v1814, %v1820
        %v1822 = vcombine.low %v1777, %v1781
        %v1824 = vunpack.c.l.s4 1983009808
        %v1825 = vunpack.c.0.s8 %v1824
        %v1826 = vlaneseq
        %v1827 = vshrl.u32 %v1826, 7
        %v1828 = vsub.s32 %v1825, %v1827
        %v1829 = vrot.slane %v1822, %v1828
        %v1830 = vcombine.low %v1783, %v1787
        %v1832 = vunpack.c.l.s4 1983009808
        %v1833 = vunpack.c.0.s8 %v1832
        %v1834 = vlaneseq
        %v1835 = vshrl.u32 %v1834, 7
        %v1836 = vsub.s32 %v1833, %v1835
        %v1837 = vrot.slane %v1830, %v1836
        %v1838 = vcombine.low %v1785, %v1789
        %v1840 = vunpack.c.l.s4 1983009808
        %v1841 = vunpack.c.0.s8 %v1840
        %v1842 = vlaneseq
        %v1843 = vshrl.u32 %v1842, 7
        %v1844 = vsub.s32 %v1841, %v1843
        %v1845 = vrot.slane %v1838, %v1844
        %v1846 = vcombine.low %v1821, %v1829
        %v1847 = vcombine.high %v1821, %v1829
        %v1849 = vunpack.c.l.s4 1934713408
        %v1850 = vunpack.c.0.s8 %v1849
        %v1851 = vlaneseq
        %v1852 = vshrl.u32 %v1851, 7
        %v1853 = vsub.s32 %v1850, %v1852
        %v1854 = vrot.slane %v1846, %v1853
        %v1856 = vunpack.c.l.s4 1934713408
        %v1857 = vunpack.c.0.s8 %v1856
        %v1858 = vlaneseq
        %v1859 = vshrl.u32 %v1858, 7
        %v1860 = vsub.s32 %v1857, %v1859
        %v1861 = vrot.slane %v1847, %v1860
        %v1862 = vcombine.low %v1837, %v1845
        %v1863 = vcombine.high %v1837, %v1845
        %v1865 = vunpack.c.l.s4 1934713408
        %v1866 = vunpack.c.0.s8 %v1865
        %v1867 = vlaneseq
        %v1868 = vshrl.u32 %v1867, 7
        %v1869 = vsub.s32 %v1866, %v1868
        %v1870 = vrot.slane %v1862, %v1869
        %v1872 = vunpack.c.l.s4 1934713408
        %v1873 = vunpack.c.0.s8 %v1872
        %v1874 = vlaneseq
        %v1875 = vshrl.u32 %v1874, 7
        %v1876 = vsub.s32 %v1873, %v1875
        %v1877 = vrot.slane %v1863, %v1876
        %v1878 = vcombine.low %v1854, %v1870
        %v1879 = vcombine.high %v1854, %v1870
        %v1880 = vcombine.low %v1861, %v1877
        %v1881 = vcombine.high %v1861, %v1877
        %1883 = vrot.lane.b32.xlu0 %v1879, 8
        %v1884 = vpop.permute.xlu0 %1883
        %1887 = vrot.lane.b32.xlu0 %v1880, 16
        %v1888 = vpop.permute.xlu0 %1887
        %1891 = vrot.lane.b32.xlu0 %v1881, 24
        %v1892 = vpop.permute.xlu0 %1891
        %vm1894 = vcmask 64512
        %v1895 = vsel %vm1894, %v1878, %v1884
        %vm1896 = vcmask 130048
        %v1897 = vsel %vm1896, %v1895, %v1888
        %vm1898 = vcmask 195584
        %v1899 = vsel %vm1898, %v1897, %v1892
        %v1901 = vsel %vm1330, %v1899, 0
        %1903 = vmatprep.subr.mxu0 0.0
        %1904 = vmatpush1.msra.mxu0 0.0
        %1905 = vmatprep.subr.mxu0 0.0
        %1906 = vmatpush1.msra.mxu0 0.0
        %1907 = vmatprep.subr.mxu0 0.0
        %1908 = vmatpush1.msra.mxu0 0.0
        %1909 = vmatprep.subr.mxu0 0.0
        %1910 = vmatpush1.msra.mxu0 0.0
        %1911 = vmatprep.subr.mxu0 0.0
        %1912 = vmatpush1.msra.mxu0 0.0
        %1913 = vmatprep.subr.mxu0 0.0
        %1914 = vmatpush1.msra.mxu0 0.0
        %1915 = vmatprep.subr.mxu0 0.0
        %1916 = vmatpush1.msra.mxu0 0.0
        %1917 = vmatprep.subr.mxu0 0.0
        %1918 = vmatpush1.msra.mxu0 0.0
        %1919 = vmatprep.subr.mxu0 0.0
        %1920 = vmatpush1.msra.mxu0 0.0
        %1921 = vmatprep.subr.mxu0 0.0
        %1922 = vmatpush1.msra.mxu0 0.0
        %1923 = vmatprep.subr.mxu0 0.0
        %1924 = vmatpush1.msra.mxu0 0.0
        %1925 = vmatprep.subr.mxu0 0.0
        %1926 = vmatpush1.msra.mxu0 0.0
        %1927 = vmatprep.subr.mxu0 0.0
        %1928 = vmatpush1.msra.mxu0 %v1576
        %1929 = vmatprep.subr.mxu0 0.0
        %1930 = vmatpush1.msra.mxu0 %v1575
        %1931 = vmatprep.subr.mxu0 0.0
        %1932 = vmatpush1.msra.mxu0 %v1574
        %1933 = vmatprep.subr.mxu0 0.0
        %1934 = vmatpush1.msra.mxu0 %v1573
        %1935 = vmatprep.subr.mxu0 0.0
        %1936 = vmatpush2.msra.mxu0 0.0
        %1937 = vmatprep.subr.mxu0 0.0
        %1938 = vmatpush2.msra.mxu0 0.0
        %1939 = vmatprep.subr.mxu0 0.0
        %1940 = vmatpush2.msra.mxu0 0.0
        %1941 = vmatprep.subr.mxu0 0.0
        %1942 = vmatpush2.msra.mxu0 0.0
        %1943 = vmatprep.subr.mxu0 0.0
        %1944 = vmatpush2.msra.mxu0 0.0
        %1945 = vmatprep.subr.mxu0 0.0
        %1946 = vmatpush2.msra.mxu0 0.0
        %1947 = vmatprep.subr.mxu0 0.0
        %1948 = vmatpush2.msra.mxu0 0.0
        %1949 = vmatprep.subr.mxu0 0.0
        %1950 = vmatpush2.msra.mxu0 0.0
        %1951 = vmatprep.subr.mxu0 0.0
        %1952 = vmatpush2.msra.mxu0 0.0
        %1953 = vmatprep.subr.mxu0 0.0
        %1954 = vmatpush2.msra.mxu0 0.0
        %1955 = vmatprep.subr.mxu0 0.0
        %1956 = vmatpush2.msra.mxu0 0.0
        %1957 = vmatprep.subr.mxu0 0.0
        %1958 = vmatpush2.msra.mxu0 0.0
        %1959 = vmatprep.subr.mxu0 0.0
        %1960 = vmatpush2.msra.mxu0 0.0
        %1961 = vmatprep.subr.mxu0 0.0
        %1962 = vmatpush2.msra.mxu0 0.0
        %1963 = vmatprep.subr.mxu0 0.0
        %1964 = vmatpush2.msra.mxu0 0.0
        %1965 = vmatprep.subr.mxu0 0.0
        %1966 = vmatpush2.msra.mxu0 0.0
        %1967 = vmatprep.mubr.f32.mxu0 0.0
        %1968 = vmatmul.mubr.f32.gmra.mxu0 %v1901
        %v1969 = vpop.f32.mrf.mxu0
        %v1970 = vadd.f32 0.0, %v1969
        %v1971 = vpop.f32.mrf.mxu0
        %1972 = vdwg.mxu0
        %v1973 = vrcp.pop %v1792
        %v1974 = vrcp.pop %v1795
        %v1975 = vrcp.pop %v1798
        %v1976 = vrcp.pop %v1801
        %v1977 = vrcp.pop %v1804
        %v1978 = vrcp.pop %v1807
        %v1979 = vrcp.pop %v1810
        %v1980 = vrcp.pop %v1813
        %v1981 = vcombine.low %v1973, %v1975
        %v1983 = vunpack.c.l.s4 1983009808
        %v1984 = vunpack.c.0.s8 %v1983
        %v1985 = vlaneseq
        %v1986 = vshrl.u32 %v1985, 7
        %v1987 = vsub.s32 %v1984, %v1986
        %v1988 = vrot.slane %v1981, %v1987
        %v1989 = vcombine.low %v1974, %v1976
        %v1991 = vunpack.c.l.s4 1983009808
        %v1992 = vunpack.c.0.s8 %v1991
        %v1993 = vlaneseq
        %v1994 = vshrl.u32 %v1993, 7
        %v1995 = vsub.s32 %v1992, %v1994
        %v1996 = vrot.slane %v1989, %v1995
        %v1997 = vcombine.low %v1977, %v1979
        %v1999 = vunpack.c.l.s4 1983009808
        %v2000 = vunpack.c.0.s8 %v1999
        %v2001 = vlaneseq
        %v2002 = vshrl.u32 %v2001, 7
        %v2003 = vsub.s32 %v2000, %v2002
        %v2004 = vrot.slane %v1997, %v2003
        %v2005 = vcombine.low %v1978, %v1980
        %v2007 = vunpack.c.l.s4 1983009808
        %v2008 = vunpack.c.0.s8 %v2007
        %v2009 = vlaneseq
        %v2010 = vshrl.u32 %v2009, 7
        %v2011 = vsub.s32 %v2008, %v2010
        %v2012 = vrot.slane %v2005, %v2011
        %v2013 = vcombine.low %v1988, %v1996
        %v2014 = vcombine.high %v1988, %v1996
        %v2016 = vunpack.c.l.s4 1934713408
        %v2017 = vunpack.c.0.s8 %v2016
        %v2018 = vlaneseq
        %v2019 = vshrl.u32 %v2018, 7
        %v2020 = vsub.s32 %v2017, %v2019
        %v2021 = vrot.slane %v2013, %v2020
        %v2023 = vunpack.c.l.s4 1934713408
        %v2024 = vunpack.c.0.s8 %v2023
        %v2025 = vlaneseq
        %v2026 = vshrl.u32 %v2025, 7
        %v2027 = vsub.s32 %v2024, %v2026
        %v2028 = vrot.slane %v2014, %v2027
        %v2029 = vcombine.low %v2004, %v2012
        %v2030 = vcombine.high %v2004, %v2012
        %v2032 = vunpack.c.l.s4 1934713408
        %v2033 = vunpack.c.0.s8 %v2032
        %v2034 = vlaneseq
        %v2035 = vshrl.u32 %v2034, 7
        %v2036 = vsub.s32 %v2033, %v2035
        %v2037 = vrot.slane %v2029, %v2036
        %v2039 = vunpack.c.l.s4 1934713408
        %v2040 = vunpack.c.0.s8 %v2039
        %v2041 = vlaneseq
        %v2042 = vshrl.u32 %v2041, 7
        %v2043 = vsub.s32 %v2040, %v2042
        %v2044 = vrot.slane %v2030, %v2043
        %v2045 = vcombine.low %v2021, %v2037
        %v2046 = vcombine.high %v2021, %v2037
        %v2047 = vcombine.low %v2028, %v2044
        %v2048 = vcombine.high %v2028, %v2044
        %2050 = vrot.lane.b32.xlu0 %v2046, 8
        %v2051 = vpop.permute.xlu0 %2050
        %2054 = vrot.lane.b32.xlu0 %v2047, 16
        %v2055 = vpop.permute.xlu0 %2054
        %2058 = vrot.lane.b32.xlu0 %v2048, 24
        %v2059 = vpop.permute.xlu0 %2058
        %v2061 = vsel %vm1894, %v2045, %v2051
        %v2062 = vsel %vm1896, %v2061, %v2055
        %v2063 = vsel %vm1898, %v2062, %v2059
        %v2064 = vmul.f32 %v1970, %v2063
        %v2065 = vld [vmem:[%s25] sm:$0xff]
        %v2066 = vld [vmem:[%s25 + $0x8] sm:$0xff]
        %v2067 = vld [vmem:[%s25 + $0x10] sm:$0xff]
        %v2068 = vld [vmem:[%s25 + $0x18] sm:$0xff]
        %v2069 = vld [vmem:[#allocation6] sm:$0x1]
        %v2071 = vlaneseq
        %v2072 = vshrl.u32 %v2071, 7
        %v2073 = vsub.s32 0, %v2072
        %v2074 = vrot.slane %v2069, %v2073
        %v2077 = vsel %vm1330, %v2064, 0
        %2079 = vmatprep.subr.mxu0 0.0
        %2080 = vmatpush1.msra.mxu0 0.0
        %2081 = vmatprep.subr.mxu0 0.0
        %2082 = vmatpush1.msra.mxu0 0.0
        %2083 = vmatprep.subr.mxu0 0.0
        %2084 = vmatpush1.msra.mxu0 0.0
        %2085 = vmatprep.subr.mxu0 0.0
        %2086 = vmatpush1.msra.mxu0 0.0
        %2087 = vmatprep.subr.mxu0 0.0
        %2088 = vmatpush1.msra.mxu0 0.0
        %2089 = vmatprep.subr.mxu0 0.0
        %2090 = vmatpush1.msra.mxu0 0.0
        %2091 = vmatprep.subr.mxu0 0.0
        %2092 = vmatpush1.msra.mxu0 0.0
        %2093 = vmatprep.subr.mxu0 0.0
        %2094 = vmatpush1.msra.mxu0 0.0
        %2095 = vmatprep.subr.mxu0 0.0
        %2096 = vmatpush1.msra.mxu0 0.0
        %2097 = vmatprep.subr.mxu0 0.0
        %2098 = vmatpush1.msra.mxu0 0.0
        %2099 = vmatprep.subr.mxu0 0.0
        %2100 = vmatpush1.msra.mxu0 0.0
        %2101 = vmatprep.subr.mxu0 0.0
        %2102 = vmatpush1.msra.mxu0 0.0
        %2103 = vmatprep.subr.mxu0 0.0
        %2104 = vmatpush1.msra.mxu0 %v2068
        %2105 = vmatprep.subr.mxu0 0.0
        %2106 = vmatpush1.msra.mxu0 %v2067
        %2107 = vmatprep.subr.mxu0 0.0
        %2108 = vmatpush1.msra.mxu0 %v2066
        %2109 = vmatprep.subr.mxu0 0.0
        %2110 = vmatpush1.msra.mxu0 %v2065
        %2111 = vmatprep.subr.mxu0 0.0
        %2112 = vmatpush2.msra.mxu0 0.0
        %2113 = vmatprep.subr.mxu0 0.0
        %2114 = vmatpush2.msra.mxu0 0.0
        %2115 = vmatprep.subr.mxu0 0.0
        %2116 = vmatpush2.msra.mxu0 0.0
        %2117 = vmatprep.subr.mxu0 0.0
        %2118 = vmatpush2.msra.mxu0 0.0
        %2119 = vmatprep.subr.mxu0 0.0
        %2120 = vmatpush2.msra.mxu0 0.0
        %2121 = vmatprep.subr.mxu0 0.0
        %2122 = vmatpush2.msra.mxu0 0.0
        %2123 = vmatprep.subr.mxu0 0.0
        %2124 = vmatpush2.msra.mxu0 0.0
        %2125 = vmatprep.subr.mxu0 0.0
        %2126 = vmatpush2.msra.mxu0 0.0
        %2127 = vmatprep.subr.mxu0 0.0
        %2128 = vmatpush2.msra.mxu0 0.0
        %2129 = vmatprep.subr.mxu0 0.0
        %2130 = vmatpush2.msra.mxu0 0.0
        %2131 = vmatprep.subr.mxu0 0.0
        %2132 = vmatpush2.msra.mxu0 0.0
        %2133 = vmatprep.subr.mxu0 0.0
        %2134 = vmatpush2.msra.mxu0 0.0
        %2135 = vmatprep.subr.mxu0 0.0
        %2136 = vmatpush2.msra.mxu0 0.0
        %2137 = vmatprep.subr.mxu0 0.0
        %2138 = vmatpush2.msra.mxu0 0.0
        %2139 = vmatprep.subr.mxu0 0.0
        %2140 = vmatpush2.msra.mxu0 0.0
        %2141 = vmatprep.subr.mxu0 0.0
        %2142 = vmatpush2.msra.mxu0 0.0
        %2143 = vmatprep.mubr.f32.mxu0 0.0
        %2144 = vmatmul.mubr.f32.gmra.mxu0 %v2077
        %v2145 = vpop.f32.mrf.mxu0
        %v2146 = vadd.f32 %v2074, %v2145
        %v2147 = vpop.f32.mrf.mxu0
        %2148 = vdwg.mxu0
        %v2149 = vadd.f32 %v1300, %v2146
        %v2150 = vld [vmem:[#allocation24] sm:$0x1]
        %v2151 = vld [vmem:[#allocation25] sm:$0x1]
        %v2152 = vsel %vm1330, %v2149, 0.0
        %2153 = vadd.xlane.f32.xlu0 %v2152
        %v2154 = vpop.xlane.xlu0 %2153
        %v2155 = vrcp.pop 32.0
        %v2156 = vmul.f32 %v2154, %v2155
        %v2157 = vsub.f32 %v2149, %v2156
        %v2158 = vmul.f32 %v2157, %v2157
        %v2159 = vsel %vm1330, %v2158, 0.0
        %2160 = vadd.xlane.f32.xlu0 %v2159
        %v2161 = vpop.xlane.xlu0 %2160
        %v2162 = vmul.f32 %v2161, %v2155
        %v2163 = vadd.f32 %v2162, 1e-05
        %v2164 = vrsqrt.pop %v2163
        %v2165 = vmul.f32 %v2157, %v2164
        %v2167 = vlaneseq
        %v2168 = vshrl.u32 %v2167, 7
        %v2169 = vsub.s32 0, %v2168
        %v2170 = vrot.slane %v2150, %v2169
        %v2172 = vmul.f32 %v2165, %v2170
        %v2174 = vlaneseq
        %v2175 = vshrl.u32 %v2174, 7
        %v2176 = vsub.s32 0, %v2175
        %v2177 = vrot.slane %v2151, %v2176
        %v2179 = vadd.f32 %v2172, %v2177
        %v2180 = vadd.f32 %v2179, %v1303
        %v2181 = vld [vmem:[#allocation7] sm:$0xff]
        %v2182 = vld [vmem:[#allocation7 + $0x8] sm:$0xff]
        %v2183 = vld [vmem:[#allocation7 + $0x10] sm:$0xff]
        %v2184 = vld [vmem:[#allocation7 + $0x18] sm:$0xff]
        %v2185 = vld [vmem:[#allocation9] sm:$0x1]
        %v2187 = vlaneseq
        %v2188 = vshrl.u32 %v2187, 7
        %v2189 = vsub.s32 0, %v2188
        %v2190 = vrot.slane %v2185, %v2189
        %v2193 = vsel %vm1330, %v2180, 0
        %2195 = vmatprep.subr.mxu0 0.0
        %2196 = vmatpush1.msra.mxu0 0.0
        %2197 = vmatprep.subr.mxu0 0.0
        %2198 = vmatpush1.msra.mxu0 0.0
        %2199 = vmatprep.subr.mxu0 0.0
        %2200 = vmatpush1.msra.mxu0 0.0
        %2201 = vmatprep.subr.mxu0 0.0
        %2202 = vmatpush1.msra.mxu0 0.0
        %2203 = vmatprep.subr.mxu0 0.0
        %2204 = vmatpush1.msra.mxu0 0.0
        %2205 = vmatprep.subr.mxu0 0.0
        %2206 = vmatpush1.msra.mxu0 0.0
        %2207 = vmatprep.subr.mxu0 0.0
        %2208 = vmatpush1.msra.mxu0 0.0
        %2209 = vmatprep.subr.mxu0 0.0
        %2210 = vmatpush1.msra.mxu0 0.0
        %2211 = vmatprep.subr.mxu0 0.0
        %2212 = vmatpush1.msra.mxu0 0.0
        %2213 = vmatprep.subr.mxu0 0.0
        %2214 = vmatpush1.msra.mxu0 0.0
        %2215 = vmatprep.subr.mxu0 0.0
        %2216 = vmatpush1.msra.mxu0 0.0
        %2217 = vmatprep.subr.mxu0 0.0
        %2218 = vmatpush1.msra.mxu0 0.0
        %2219 = vmatprep.subr.mxu0 0.0
        %2220 = vmatpush1.msra.mxu0 %v2184
        %2221 = vmatprep.subr.mxu0 0.0
        %2222 = vmatpush1.msra.mxu0 %v2183
        %2223 = vmatprep.subr.mxu0 0.0
        %2224 = vmatpush1.msra.mxu0 %v2182
        %2225 = vmatprep.subr.mxu0 0.0
        %2226 = vmatpush1.msra.mxu0 %v2181
        %2227 = vmatprep.subr.mxu0 0.0
        %2228 = vmatpush2.msra.mxu0 0.0
        %2229 = vmatprep.subr.mxu0 0.0
        %2230 = vmatpush2.msra.mxu0 0.0
        %2231 = vmatprep.subr.mxu0 0.0
        %2232 = vmatpush2.msra.mxu0 0.0
        %2233 = vmatprep.subr.mxu0 0.0
        %2234 = vmatpush2.msra.mxu0 0.0
        %2235 = vmatprep.subr.mxu0 0.0
        %2236 = vmatpush2.msra.mxu0 0.0
        %2237 = vmatprep.subr.mxu0 0.0
        %2238 = vmatpush2.msra.mxu0 0.0
        %2239 = vmatprep.subr.mxu0 0.0
        %2240 = vmatpush2.msra.mxu0 0.0
        %2241 = vmatprep.subr.mxu0 0.0
        %2242 = vmatpush2.msra.mxu0 0.0
        %2243 = vmatprep.subr.mxu0 0.0
        %2244 = vmatpush2.msra.mxu0 0.0
        %2245 = vmatprep.subr.mxu0 0.0
        %2246 = vmatpush2.msra.mxu0 0.0
        %2247 = vmatprep.subr.mxu0 0.0
        %2248 = vmatpush2.msra.mxu0 0.0
        %2249 = vmatprep.subr.mxu0 0.0
        %2250 = vmatpush2.msra.mxu0 0.0
        %2251 = vmatprep.subr.mxu0 0.0
        %2252 = vmatpush2.msra.mxu0 0.0
        %2253 = vmatprep.subr.mxu0 0.0
        %2254 = vmatpush2.msra.mxu0 0.0
        %2255 = vmatprep.subr.mxu0 0.0
        %2256 = vmatpush2.msra.mxu0 0.0
        %2257 = vmatprep.subr.mxu0 0.0
        %2258 = vmatpush2.msra.mxu0 0.0
        %2259 = vmatprep.mubr.f32.mxu0 0.0
        %2260 = vmatmul.mubr.f32.gmra.mxu0 %v2193
        %v2261 = vpop.f32.mrf.mxu0
        %v2262 = vadd.f32 %v2190, %v2261
        %v2263 = vpop.f32.mrf.mxu0
        %2264 = vdwg.mxu0
        %v2265 = vadd.f32 %v1301, %v1304
        %v2266 = vadd.f32 %v1302, %v1305
        %v2267 = vld [vmem:[#allocation10] sm:$0xff]
        %v2268 = vld [vmem:[#allocation10 + $0x8] sm:$0xff]
        %v2269 = vld [vmem:[#allocation10 + $0x10] sm:$0xff]
        %v2270 = vld [vmem:[#allocation10 + $0x18] sm:$0xff]
        %v2271 = vld [vmem:[#allocation12] sm:$0x1]
        %v2273 = vlaneseq
        %v2274 = vshrl.u32 %v2273, 7
        %v2275 = vsub.s32 0, %v2274
        %v2276 = vrot.slane %v2271, %v2275
        %v2279 = vsel %vm1330, %v2265, 0
        %v2282 = vsel %vm1330, %v2266, 0
        %2284 = vmatprep.subr.mxu0 0.0
        %2285 = vmatpush1.msra.mxu0 0.0
        %2286 = vmatprep.subr.mxu0 0.0
        %2287 = vmatpush1.msra.mxu0 0.0
        %2288 = vmatprep.subr.mxu0 0.0
        %2289 = vmatpush1.msra.mxu0 0.0
        %2290 = vmatprep.subr.mxu0 0.0
        %2291 = vmatpush1.msra.mxu0 0.0
        %2292 = vmatprep.subr.mxu0 0.0
        %2293 = vmatpush1.msra.mxu0 0.0
        %2294 = vmatprep.subr.mxu0 0.0
        %2295 = vmatpush1.msra.mxu0 0.0
        %2296 = vmatprep.subr.mxu0 0.0
        %2297 = vmatpush1.msra.mxu0 0.0
        %2298 = vmatprep.subr.mxu0 0.0
        %2299 = vmatpush1.msra.mxu0 0.0
        %2300 = vmatprep.subr.mxu0 0.0
        %2301 = vmatpush1.msra.mxu0 0.0
        %2302 = vmatprep.subr.mxu0 0.0
        %2303 = vmatpush1.msra.mxu0 0.0
        %2304 = vmatprep.subr.mxu0 0.0
        %2305 = vmatpush1.msra.mxu0 0.0
        %2306 = vmatprep.subr.mxu0 0.0
        %2307 = vmatpush1.msra.mxu0 0.0
        %2308 = vmatprep.subr.mxu0 0.0
        %2309 = vmatpush1.msra.mxu0 %v2270
        %2310 = vmatprep.subr.mxu0 0.0
        %2311 = vmatpush1.msra.mxu0 %v2269
        %2312 = vmatprep.subr.mxu0 0.0
        %2313 = vmatpush1.msra.mxu0 %v2268
        %2314 = vmatprep.subr.mxu0 0.0
        %2315 = vmatpush1.msra.mxu0 %v2267
        %2316 = vmatprep.subr.mxu0 0.0
        %2317 = vmatpush2.msra.mxu0 0.0
        %2318 = vmatprep.subr.mxu0 0.0
        %2319 = vmatpush2.msra.mxu0 0.0
        %2320 = vmatprep.subr.mxu0 0.0
        %2321 = vmatpush2.msra.mxu0 0.0
        %2322 = vmatprep.subr.mxu0 0.0
        %2323 = vmatpush2.msra.mxu0 0.0
        %2324 = vmatprep.subr.mxu0 0.0
        %2325 = vmatpush2.msra.mxu0 0.0
        %2326 = vmatprep.subr.mxu0 0.0
        %2327 = vmatpush2.msra.mxu0 0.0
        %2328 = vmatprep.subr.mxu0 0.0
        %2329 = vmatpush2.msra.mxu0 0.0
        %2330 = vmatprep.subr.mxu0 0.0
        %2331 = vmatpush2.msra.mxu0 0.0
        %2332 = vmatprep.subr.mxu0 0.0
        %2333 = vmatpush2.msra.mxu0 0.0
        %2334 = vmatprep.subr.mxu0 0.0
        %2335 = vmatpush2.msra.mxu0 0.0
        %2336 = vmatprep.subr.mxu0 0.0
        %2337 = vmatpush2.msra.mxu0 0.0
        %2338 = vmatprep.subr.mxu0 0.0
        %2339 = vmatpush2.msra.mxu0 0.0
        %2340 = vmatprep.subr.mxu0 0.0
        %2341 = vmatpush2.msra.mxu0 0.0
        %2342 = vmatprep.subr.mxu0 0.0
        %2343 = vmatpush2.msra.mxu0 0.0
        %2344 = vmatprep.subr.mxu0 0.0
        %2345 = vmatpush2.msra.mxu0 0.0
        %2346 = vmatprep.subr.mxu0 0.0
        %2347 = vmatpush2.msra.mxu0 0.0
        %2348 = vmatprep.mubr.f32.mxu0 0.0
        %2349 = vmatmul.mubr.f32.gmra.mxu0 %v2279
        %v2350 = vpop.f32.mrf.mxu0
        %v2351 = vadd.f32 %v2276, %v2350
        %v2352 = vpop.f32.mrf.mxu0
        %2353 = vmatprep.mubr.f32.mxu0 0.0
        %2354 = vmatmul.mubr.f32.gmra.mxu0 %v2282
        %v2355 = vpop.f32.mrf.mxu0
        %v2356 = vadd.f32 %v2276, %v2355
        %v2357 = vpop.f32.mrf.mxu0
        %2358 = vdwg.mxu0
        %v2359 = vld [vmem:[#allocation13] sm:$0xff]
        %v2360 = vld [vmem:[#allocation13 + $0x8] sm:$0xff]
        %v2361 = vld [vmem:[#allocation13 + $0x10] sm:$0xff]
        %v2362 = vld [vmem:[#allocation13 + $0x18] sm:$0xff]
        %v2363 = vld [vmem:[#allocation15] sm:$0x1]
        %v2365 = vlaneseq
        %v2366 = vshrl.u32 %v2365, 7
        %v2367 = vsub.s32 0, %v2366
        %v2368 = vrot.slane %v2363, %v2367
        %v2371 = vsel %vm1330, %v1301, 0
        %v2374 = vsel %vm1330, %v1302, 0
        %2376 = vmatprep.subr.mxu0 0.0
        %2377 = vmatpush1.msra.mxu0 0.0
        %2378 = vmatprep.subr.mxu0 0.0
        %2379 = vmatpush1.msra.mxu0 0.0
        %2380 = vmatprep.subr.mxu0 0.0
        %2381 = vmatpush1.msra.mxu0 0.0
        %2382 = vmatprep.subr.mxu0 0.0
        %2383 = vmatpush1.msra.mxu0 0.0
        %2384 = vmatprep.subr.mxu0 0.0
        %2385 = vmatpush1.msra.mxu0 0.0
        %2386 = vmatprep.subr.mxu0 0.0
        %2387 = vmatpush1.msra.mxu0 0.0
        %2388 = vmatprep.subr.mxu0 0.0
        %2389 = vmatpush1.msra.mxu0 0.0
        %2390 = vmatprep.subr.mxu0 0.0
        %2391 = vmatpush1.msra.mxu0 0.0
        %2392 = vmatprep.subr.mxu0 0.0
        %2393 = vmatpush1.msra.mxu0 0.0
        %2394 = vmatprep.subr.mxu0 0.0
        %2395 = vmatpush1.msra.mxu0 0.0
        %2396 = vmatprep.subr.mxu0 0.0
        %2397 = vmatpush1.msra.mxu0 0.0
        %2398 = vmatprep.subr.mxu0 0.0
        %2399 = vmatpush1.msra.mxu0 0.0
        %2400 = vmatprep.subr.mxu0 0.0
        %2401 = vmatpush1.msra.mxu0 %v2362
        %2402 = vmatprep.subr.mxu0 0.0
        %2403 = vmatpush1.msra.mxu0 %v2361
        %2404 = vmatprep.subr.mxu0 0.0
        %2405 = vmatpush1.msra.mxu0 %v2360
        %2406 = vmatprep.subr.mxu0 0.0
        %2407 = vmatpush1.msra.mxu0 %v2359
        %2408 = vmatprep.subr.mxu0 0.0
        %2409 = vmatpush2.msra.mxu0 0.0
        %2410 = vmatprep.subr.mxu0 0.0
        %2411 = vmatpush2.msra.mxu0 0.0
        %2412 = vmatprep.subr.mxu0 0.0
        %2413 = vmatpush2.msra.mxu0 0.0
        %2414 = vmatprep.subr.mxu0 0.0
        %2415 = vmatpush2.msra.mxu0 0.0
        %2416 = vmatprep.subr.mxu0 0.0
        %2417 = vmatpush2.msra.mxu0 0.0
        %2418 = vmatprep.subr.mxu0 0.0
        %2419 = vmatpush2.msra.mxu0 0.0
        %2420 = vmatprep.subr.mxu0 0.0
        %2421 = vmatpush2.msra.mxu0 0.0
        %2422 = vmatprep.subr.mxu0 0.0
        %2423 = vmatpush2.msra.mxu0 0.0
        %2424 = vmatprep.subr.mxu0 0.0
        %2425 = vmatpush2.msra.mxu0 0.0
        %2426 = vmatprep.subr.mxu0 0.0
        %2427 = vmatpush2.msra.mxu0 0.0
        %2428 = vmatprep.subr.mxu0 0.0
        %2429 = vmatpush2.msra.mxu0 0.0
        %2430 = vmatprep.subr.mxu0 0.0
        %2431 = vmatpush2.msra.mxu0 0.0
        %2432 = vmatprep.subr.mxu0 0.0
        %2433 = vmatpush2.msra.mxu0 0.0
        %2434 = vmatprep.subr.mxu0 0.0
        %2435 = vmatpush2.msra.mxu0 0.0
        %2436 = vmatprep.subr.mxu0 0.0
        %2437 = vmatpush2.msra.mxu0 0.0
        %2438 = vmatprep.subr.mxu0 0.0
        %2439 = vmatpush2.msra.mxu0 0.0
        %2440 = vmatprep.mubr.f32.mxu0 0.0
        %2441 = vmatmul.mubr.f32.gmra.mxu0 %v2371
        %v2442 = vpop.f32.mrf.mxu0
        %v2443 = vadd.f32 %v2368, %v2442
        %v2444 = vpop.f32.mrf.mxu0
        %2445 = vmatprep.mubr.f32.mxu0 0.0
        %2446 = vmatmul.mubr.f32.gmra.mxu0 %v2374
        %v2447 = vpop.f32.mrf.mxu0
        %v2448 = vadd.f32 %v2368, %v2447
        %v2449 = vpop.f32.mrf.mxu0
        %2450 = vdwg.mxu0
        %v2451 = vmul.f32 %v2351, %v1310
        %v2452 = vmul.f32 %v2356, %v1311
        %v2453 = vmul.f32 %v2351, %v1312
        %v2454 = vmul.f32 %v2356, %v1313
        %v2455 = vmul.f32 %v2351, %v1314
        %v2456 = vmul.f32 %v2356, %v1315
        %v2457 = vmul.f32 %v2351, %v1316
        %v2458 = vmul.f32 %v2356, %v1317
        %v2459 = vmul.f32 %v2443, %v1310
        %v2460 = vmul.f32 %v2448, %v1311
        %v2461 = vmul.f32 %v2443, %v1312
        %v2462 = vmul.f32 %v2448, %v1313
        %v2463 = vmul.f32 %v2443, %v1314
        %v2464 = vmul.f32 %v2448, %v1315
        %v2465 = vmul.f32 %v2443, %v1316
        %v2466 = vmul.f32 %v2448, %v1317
        %v2467 = vmul.f32 %v2262, 0.35355338
        %v2469 = vsel %vm1330, %v2467, 0
        %v2472 = vsel %vm1330, %v2451, 0
        %v2475 = vsel %vm1330, %v2452, 0
        %v2478 = vsel %vm1330, %v2453, 0
        %v2481 = vsel %vm1330, %v2454, 0
        %v2484 = vsel %vm1330, %v2455, 0
        %v2487 = vsel %vm1330, %v2456, 0
        %v2490 = vsel %vm1330, %v2457, 0
        %v2493 = vsel %vm1330, %v2458, 0
        %2495 = vmatprep.subr.mxu0 0.0
        %2496 = vmatpush1.xpose.msra.mxu0 0.0
        %2497 = vmatprep.subr.mxu0 0.0
        %2498 = vmatpush1.xpose.msra.mxu0 0.0
        %2499 = vmatprep.subr.mxu0 0.0
        %2500 = vmatpush1.xpose.msra.mxu0 0.0
        %2501 = vmatprep.subr.mxu0 0.0
        %2502 = vmatpush1.xpose.msra.mxu0 0.0
        %2503 = vmatprep.subr.mxu0 0.0
        %2504 = vmatpush1.xpose.msra.mxu0 0.0
        %2505 = vmatprep.subr.mxu0 0.0
        %2506 = vmatpush1.xpose.msra.mxu0 0.0
        %2507 = vmatprep.subr.mxu0 0.0
        %2508 = vmatpush1.xpose.msra.mxu0 0.0
        %2509 = vmatprep.subr.mxu0 0.0
        %2510 = vmatpush1.xpose.msra.mxu0 0.0
        %2511 = vmatprep.subr.mxu0 0.0
        %2512 = vmatpush1.xpose.msra.mxu0 %v2493
        %2513 = vmatprep.subr.mxu0 0.0
        %2514 = vmatpush1.xpose.msra.mxu0 %v2490
        %2515 = vmatprep.subr.mxu0 0.0
        %2516 = vmatpush1.xpose.msra.mxu0 %v2487
        %2517 = vmatprep.subr.mxu0 0.0
        %2518 = vmatpush1.xpose.msra.mxu0 %v2484
        %2519 = vmatprep.subr.mxu0 0.0
        %2520 = vmatpush1.xpose.msra.mxu0 %v2481
        %2521 = vmatprep.subr.mxu0 0.0
        %2522 = vmatpush1.xpose.msra.mxu0 %v2478
        %2523 = vmatprep.subr.mxu0 0.0
        %2524 = vmatpush1.xpose.msra.mxu0 %v2475
        %2525 = vmatprep.subr.mxu0 0.0
        %2526 = vmatpush1.xpose.msra.mxu0 %v2472
        %2527 = vmatprep.subr.mxu0 0.0
        %2528 = vmatpush2.xpose.msra.mxu0 0.0
        %2529 = vmatprep.subr.mxu0 0.0
        %2530 = vmatpush2.xpose.msra.mxu0 0.0
        %2531 = vmatprep.subr.mxu0 0.0
        %2532 = vmatpush2.xpose.msra.mxu0 0.0
        %2533 = vmatprep.subr.mxu0 0.0
        %2534 = vmatpush2.xpose.msra.mxu0 0.0
        %2535 = vmatprep.subr.mxu0 0.0
        %2536 = vmatpush2.xpose.msra.mxu0 0.0
        %2537 = vmatprep.subr.mxu0 0.0
        %2538 = vmatpush2.xpose.msra.mxu0 0.0
        %2539 = vmatprep.subr.mxu0 0.0
        %2540 = vmatpush2.xpose.msra.mxu0 0.0
        %2541 = vmatprep.subr.mxu0 0.0
        %2542 = vmatpush2.xpose.msra.mxu0 0.0
        %2543 = vmatprep.subr.mxu0 0.0
        %2544 = vmatpush2.xpose.msra.mxu0 0.0
        %2545 = vmatprep.subr.mxu0 0.0
        %2546 = vmatpush2.xpose.msra.mxu0 0.0
        %2547 = vmatprep.subr.mxu0 0.0
        %2548 = vmatpush2.xpose.msra.mxu0 0.0
        %2549 = vmatprep.subr.mxu0 0.0
        %2550 = vmatpush2.xpose.msra.mxu0 0.0
        %2551 = vmatprep.subr.mxu0 0.0
        %2552 = vmatpush2.xpose.msra.mxu0 0.0
        %2553 = vmatprep.subr.mxu0 0.0
        %2554 = vmatpush2.xpose.msra.mxu0 0.0
        %2555 = vmatprep.subr.mxu0 0.0
        %2556 = vmatpush2.xpose.msra.mxu0 0.0
        %2557 = vmatprep.subr.mxu0 0.0
        %2558 = vmatpush2.xpose.msra.mxu0 0.0
        %2559 = vmatprep.mubr.f32.mxu0 0.0
        %2560 = vmatmul.mubr.f32.gmra.mxu0 %v2469
        %v2561 = vpop.f32.mrf.mxu0
        %v2562 = vadd.f32 0.0, %v2561
        %v2563 = vpop.f32.mrf.mxu0
        %2564 = vdwg.mxu0
        %2566 = vrot.lane.b32.xlu0 %v2562, 112
        %v2567 = vpop.permute.xlu0 %2566
        %2569 = vrot.lane.b32.xlu0 %v2562, 96
        %v2570 = vpop.permute.xlu0 %2569
        %2572 = vrot.lane.b32.xlu0 %v2562, 80
        %v2573 = vpop.permute.xlu0 %2572
        %v2575 = vcombine.low %v2562, %v2570
        %v2576 = vcombine.high %v2562, %v2570
        %v2578 = vunpack.c.l.s4 1983009808
        %v2579 = vunpack.c.0.s8 %v2578
        %v2580 = vlaneseq
        %v2581 = vshrl.u32 %v2580, 7
        %v2582 = vsub.s32 %v2579, %v2581
        %v2583 = vrot.slane %v2575, %v2582
        %v2585 = vunpack.c.l.s4 1983009808
        %v2586 = vunpack.c.0.s8 %v2585
        %v2587 = vlaneseq
        %v2588 = vshrl.u32 %v2587, 7
        %v2589 = vsub.s32 %v2586, %v2588
        %v2590 = vrot.slane %v2576, %v2589
        %v2591 = vcombine.low %v2567, %v2573
        %v2592 = vcombine.high %v2567, %v2573
        %v2594 = vunpack.c.l.s4 1983009808
        %v2595 = vunpack.c.0.s8 %v2594
        %v2596 = vlaneseq
        %v2597 = vshrl.u32 %v2596, 7
        %v2598 = vsub.s32 %v2595, %v2597
        %v2599 = vrot.slane %v2591, %v2598
        %v2601 = vunpack.c.l.s4 1983009808
        %v2602 = vunpack.c.0.s8 %v2601
        %v2603 = vlaneseq
        %v2604 = vshrl.u32 %v2603, 7
        %v2605 = vsub.s32 %v2602, %v2604
        %v2606 = vrot.slane %v2592, %v2605
        %v2607 = vcombine.low %v2583, %v2599
        %v2608 = vcombine.high %v2583, %v2599
        %v2610 = vunpack.c.l.s4 1934713408
        %v2611 = vunpack.c.0.s8 %v2610
        %v2612 = vlaneseq
        %v2613 = vshrl.u32 %v2612, 7
        %v2614 = vsub.s32 %v2611, %v2613
        %v2615 = vrot.slane %v2607, %v2614
        %v2617 = vunpack.c.l.s4 1934713408
        %v2618 = vunpack.c.0.s8 %v2617
        %v2619 = vlaneseq
        %v2620 = vshrl.u32 %v2619, 7
        %v2621 = vsub.s32 %v2618, %v2620
        %v2622 = vrot.slane %v2608, %v2621
        %v2623 = vcombine.low %v2590, %v2606
        %v2624 = vcombine.high %v2590, %v2606
        %v2626 = vunpack.c.l.s4 1934713408
        %v2627 = vunpack.c.0.s8 %v2626
        %v2628 = vlaneseq
        %v2629 = vshrl.u32 %v2628, 7
        %v2630 = vsub.s32 %v2627, %v2629
        %v2631 = vrot.slane %v2623, %v2630
        %v2633 = vunpack.c.l.s4 1934713408
        %v2634 = vunpack.c.0.s8 %v2633
        %v2635 = vlaneseq
        %v2636 = vshrl.u32 %v2635, 7
        %v2637 = vsub.s32 %v2634, %v2636
        %v2638 = vrot.slane %v2624, %v2637
        %v2639 = vcombine.high %v2615, 0.0
        %v2640 = vcombine.high %v2622, 0.0
        %v2641 = vcombine.high %v2631, 0.0
        %v2642 = vcombine.high %v2638, 0.0
        %vm2643 = vcmask 125952
        %v2644 = vsel %vm2643, %v2615, -inf
        %2645 = vmax.xlane.f32.xlu0 %v2644
        %v2646 = vpop.xlane.xlu0 %2645
        %v2647 = vsel %vm2643, %v2639, -inf
        %2648 = vmax.xlane.f32.xlu0 %v2647
        %v2649 = vpop.xlane.xlu0 %2648
        %v2650 = vsel %vm2643, %v2622, -inf
        %2651 = vmax.xlane.f32.xlu0 %v2650
        %v2652 = vpop.xlane.xlu0 %2651
        %v2653 = vsel %vm2643, %v2640, -inf
        %2654 = vmax.xlane.f32.xlu0 %v2653
        %v2655 = vpop.xlane.xlu0 %2654
        %v2656 = vsel %vm2643, %v2631, -inf
        %2657 = vmax.xlane.f32.xlu0 %v2656
        %v2658 = vpop.xlane.xlu0 %2657
        %v2659 = vsel %vm2643, %v2641, -inf
        %2660 = vmax.xlane.f32.xlu0 %v2659
        %v2661 = vpop.xlane.xlu0 %2660
        %v2662 = vsel %vm2643, %v2638, -inf
        %2663 = vmax.xlane.f32.xlu0 %v2662
        %v2664 = vpop.xlane.xlu0 %2663
        %v2665 = vsel %vm2643, %v2642, -inf
        %2666 = vmax.xlane.f32.xlu0 %v2665
        %v2667 = vpop.xlane.xlu0 %2666
        %v2668 = vsub.f32 %v2615, %v2646
        %v2669 = vsub.f32 %v2639, %v2649
        %v2670 = vsub.f32 %v2622, %v2652
        %v2671 = vsub.f32 %v2640, %v2655
        %v2672 = vsub.f32 %v2631, %v2658
        %v2673 = vsub.f32 %v2641, %v2661
        %v2674 = vsub.f32 %v2638, %v2664
        %v2675 = vsub.f32 %v2642, %v2667
        %v2676 = vmul.f32 %v2668, 1.442695
        %v2677 = vpow.pop %v2676
        %v2678 = vmul.f32 %v2669, 1.442695
        %v2679 = vpow.pop %v2678
        %v2680 = vmul.f32 %v2670, 1.442695
        %v2681 = vpow.pop %v2680
        %v2682 = vmul.f32 %v2671, 1.442695
        %v2683 = vpow.pop %v2682
        %v2684 = vmul.f32 %v2672, 1.442695
        %v2685 = vpow.pop %v2684
        %v2686 = vmul.f32 %v2673, 1.442695
        %v2687 = vpow.pop %v2686
        %v2688 = vmul.f32 %v2674, 1.442695
        %v2689 = vpow.pop %v2688
        %v2690 = vmul.f32 %v2675, 1.442695
        %v2691 = vpow.pop %v2690
        %v2692 = vsel %vm2643, %v2677, 0.0
        %2693 = vadd.xlane.f32.xlu0 %v2692
        %v2694 = vpop.xlane.xlu0 %2693
        %v2695 = vsel %vm2643, %v2679, 0.0
        %2696 = vadd.xlane.f32.xlu0 %v2695
        %v2697 = vpop.xlane.xlu0 %2696
        %v2698 = vsel %vm2643, %v2681, 0.0
        %2699 = vadd.xlane.f32.xlu0 %v2698
        %v2700 = vpop.xlane.xlu0 %2699
        %v2701 = vsel %vm2643, %v2683, 0.0
        %2702 = vadd.xlane.f32.xlu0 %v2701
        %v2703 = vpop.xlane.xlu0 %2702
        %v2704 = vsel %vm2643, %v2685, 0.0
        %2705 = vadd.xlane.f32.xlu0 %v2704
        %v2706 = vpop.xlane.xlu0 %2705
        %v2707 = vsel %vm2643, %v2687, 0.0
        %2708 = vadd.xlane.f32.xlu0 %v2707
        %v2709 = vpop.xlane.xlu0 %2708
        %v2710 = vsel %vm2643, %v2689, 0.0
        %2711 = vadd.xlane.f32.xlu0 %v2710
        %v2712 = vpop.xlane.xlu0 %2711
        %v2713 = vsel %vm2643, %v2691, 0.0
        %2714 = vadd.xlane.f32.xlu0 %v2713
        %v2715 = vpop.xlane.xlu0 %2714
        %v2716 = vcombine.low %v2677, %v2681
        %v2718 = vunpack.c.l.s4 1983009808
        %v2719 = vunpack.c.0.s8 %v2718
        %v2720 = vlaneseq
        %v2721 = vshrl.u32 %v2720, 7
        %v2722 = vsub.s32 %v2719, %v2721
        %v2723 = vrot.slane %v2716, %v2722
        %v2724 = vcombine.low %v2679, %v2683
        %v2726 = vunpack.c.l.s4 1983009808
        %v2727 = vunpack.c.0.s8 %v2726
        %v2728 = vlaneseq
        %v2729 = vshrl.u32 %v2728, 7
        %v2730 = vsub.s32 %v2727, %v2729
        %v2731 = vrot.slane %v2724, %v2730
        %v2732 = vcombine.low %v2685, %v2689
        %v2734 = vunpack.c.l.s4 1983009808
        %v2735 = vunpack.c.0.s8 %v2734
        %v2736 = vlaneseq
        %v2737 = vshrl.u32 %v2736, 7
        %v2738 = vsub.s32 %v2735, %v2737
        %v2739 = vrot.slane %v2732, %v2738
        %v2740 = vcombine.low %v2687, %v2691
        %v2742 = vunpack.c.l.s4 1983009808
        %v2743 = vunpack.c.0.s8 %v2742
        %v2744 = vlaneseq
        %v2745 = vshrl.u32 %v2744, 7
        %v2746 = vsub.s32 %v2743, %v2745
        %v2747 = vrot.slane %v2740, %v2746
        %v2748 = vcombine.low %v2723, %v2731
        %v2749 = vcombine.high %v2723, %v2731
        %v2751 = vunpack.c.l.s4 1934713408
        %v2752 = vunpack.c.0.s8 %v2751
        %v2753 = vlaneseq
        %v2754 = vshrl.u32 %v2753, 7
        %v2755 = vsub.s32 %v2752, %v2754
        %v2756 = vrot.slane %v2748, %v2755
        %v2758 = vunpack.c.l.s4 1934713408
        %v2759 = vunpack.c.0.s8 %v2758
        %v2760 = vlaneseq
        %v2761 = vshrl.u32 %v2760, 7
        %v2762 = vsub.s32 %v2759, %v2761
        %v2763 = vrot.slane %v2749, %v2762
        %v2764 = vcombine.low %v2739, %v2747
        %v2765 = vcombine.high %v2739, %v2747
        %v2767 = vunpack.c.l.s4 1934713408
        %v2768 = vunpack.c.0.s8 %v2767
        %v2769 = vlaneseq
        %v2770 = vshrl.u32 %v2769, 7
        %v2771 = vsub.s32 %v2768, %v2770
        %v2772 = vrot.slane %v2764, %v2771
        %v2774 = vunpack.c.l.s4 1934713408
        %v2775 = vunpack.c.0.s8 %v2774
        %v2776 = vlaneseq
        %v2777 = vshrl.u32 %v2776, 7
        %v2778 = vsub.s32 %v2775, %v2777
        %v2779 = vrot.slane %v2765, %v2778
        %v2780 = vcombine.low %v2756, %v2772
        %v2781 = vcombine.high %v2756, %v2772
        %v2782 = vcombine.low %v2763, %v2779
        %v2783 = vcombine.high %v2763, %v2779
        %2785 = vrot.lane.b32.xlu0 %v2781, 16
        %v2786 = vpop.permute.xlu0 %2785
        %2789 = vrot.lane.b32.xlu0 %v2782, 32
        %v2790 = vpop.permute.xlu0 %2789
        %2793 = vrot.lane.b32.xlu0 %v2783, 48
        %v2794 = vpop.permute.xlu0 %2793
        %v2796 = vsel %vm1896, %v2780, %v2786
        %v2797 = vsel %vm1330, %v2796, %v2790
        %vm2798 = vcmask 392192
        %v2799 = vsel %vm2798, %v2797, %v2794
        %vm2800 = vcmask 523264
        %v2802 = vsel %vm2800, %v2799, 0
        %2804 = vmatprep.subr.mxu0 0.0
        %2805 = vmatpush1.msra.mxu0 0.0
        %2806 = vmatprep.subr.mxu0 0.0
        %2807 = vmatpush1.msra.mxu0 0.0
        %2808 = vmatprep.subr.mxu0 0.0
        %2809 = vmatpush1.msra.mxu0 0.0
        %2810 = vmatprep.subr.mxu0 0.0
        %2811 = vmatpush1.msra.mxu0 0.0
        %2812 = vmatprep.subr.mxu0 0.0
        %2813 = vmatpush1.msra.mxu0 0.0
        %2814 = vmatprep.subr.mxu0 0.0
        %2815 = vmatpush1.msra.mxu0 0.0
        %2816 = vmatprep.subr.mxu0 0.0
        %2817 = vmatpush1.msra.mxu0 0.0
        %2818 = vmatprep.subr.mxu0 0.0
        %2819 = vmatpush1.msra.mxu0 0.0
        %2820 = vmatprep.subr.mxu0 0.0
        %2821 = vmatpush1.msra.mxu0 %v2466
        %2822 = vmatprep.subr.mxu0 0.0
        %2823 = vmatpush1.msra.mxu0 %v2465
        %2824 = vmatprep.subr.mxu0 0.0
        %2825 = vmatpush1.msra.mxu0 %v2464
        %2826 = vmatprep.subr.mxu0 0.0
        %2827 = vmatpush1.msra.mxu0 %v2463
        %2828 = vmatprep.subr.mxu0 0.0
        %2829 = vmatpush1.msra.mxu0 %v2462
        %2830 = vmatprep.subr.mxu0 0.0
        %2831 = vmatpush1.msra.mxu0 %v2461
        %2832 = vmatprep.subr.mxu0 0.0
        %2833 = vmatpush1.msra.mxu0 %v2460
        %2834 = vmatprep.subr.mxu0 0.0
        %2835 = vmatpush1.msra.mxu0 %v2459
        %2836 = vmatprep.subr.mxu0 0.0
        %2837 = vmatpush2.msra.mxu0 0.0
        %2838 = vmatprep.subr.mxu0 0.0
        %2839 = vmatpush2.msra.mxu0 0.0
        %2840 = vmatprep.subr.mxu0 0.0
        %2841 = vmatpush2.msra.mxu0 0.0
        %2842 = vmatprep.subr.mxu0 0.0
        %2843 = vmatpush2.msra.mxu0 0.0
        %2844 = vmatprep.subr.mxu0 0.0
        %2845 = vmatpush2.msra.mxu0 0.0
        %2846 = vmatprep.subr.mxu0 0.0
        %2847 = vmatpush2.msra.mxu0 0.0
        %2848 = vmatprep.subr.mxu0 0.0
        %2849 = vmatpush2.msra.mxu0 0.0
        %2850 = vmatprep.subr.mxu0 0.0
        %2851 = vmatpush2.msra.mxu0 0.0
        %2852 = vmatprep.subr.mxu0 0.0
        %2853 = vmatpush2.msra.mxu0 0.0
        %2854 = vmatprep.subr.mxu0 0.0
        %2855 = vmatpush2.msra.mxu0 0.0
        %2856 = vmatprep.subr.mxu0 0.0
        %2857 = vmatpush2.msra.mxu0 0.0
        %2858 = vmatprep.subr.mxu0 0.0
        %2859 = vmatpush2.msra.mxu0 0.0
        %2860 = vmatprep.subr.mxu0 0.0
        %2861 = vmatpush2.msra.mxu0 0.0
        %2862 = vmatprep.subr.mxu0 0.0
        %2863 = vmatpush2.msra.mxu0 0.0
        %2864 = vmatprep.subr.mxu0 0.0
        %2865 = vmatpush2.msra.mxu0 0.0
        %2866 = vmatprep.subr.mxu0 0.0
        %2867 = vmatpush2.msra.mxu0 0.0
        %2868 = vmatprep.mubr.f32.mxu0 0.0
        %2869 = vmatmul.mubr.f32.gmra.mxu0 %v2802
        %v2870 = vpop.f32.mrf.mxu0
        %v2871 = vadd.f32 0.0, %v2870
        %v2872 = vpop.f32.mrf.mxu0
        %2873 = vdwg.mxu0
        %v2874 = vrcp.pop %v2694
        %v2875 = vrcp.pop %v2697
        %v2876 = vrcp.pop %v2700
        %v2877 = vrcp.pop %v2703
        %v2878 = vrcp.pop %v2706
        %v2879 = vrcp.pop %v2709
        %v2880 = vrcp.pop %v2712
        %v2881 = vrcp.pop %v2715
        %v2882 = vcombine.low %v2874, %v2876
        %v2884 = vunpack.c.l.s4 1983009808
        %v2885 = vunpack.c.0.s8 %v2884
        %v2886 = vlaneseq
        %v2887 = vshrl.u32 %v2886, 7
        %v2888 = vsub.s32 %v2885, %v2887
        %v2889 = vrot.slane %v2882, %v2888
        %v2890 = vcombine.low %v2875, %v2877
        %v2892 = vunpack.c.l.s4 1983009808
        %v2893 = vunpack.c.0.s8 %v2892
        %v2894 = vlaneseq
        %v2895 = vshrl.u32 %v2894, 7
        %v2896 = vsub.s32 %v2893, %v2895
        %v2897 = vrot.slane %v2890, %v2896
        %v2898 = vcombine.low %v2878, %v2880
        %v2900 = vunpack.c.l.s4 1983009808
        %v2901 = vunpack.c.0.s8 %v2900
        %v2902 = vlaneseq
        %v2903 = vshrl.u32 %v2902, 7
        %v2904 = vsub.s32 %v2901, %v2903
        %v2905 = vrot.slane %v2898, %v2904
        %v2906 = vcombine.low %v2879, %v2881
        %v2908 = vunpack.c.l.s4 1983009808
        %v2909 = vunpack.c.0.s8 %v2908
        %v2910 = vlaneseq
        %v2911 = vshrl.u32 %v2910, 7
        %v2912 = vsub.s32 %v2909, %v2911
        %v2913 = vrot.slane %v2906, %v2912
        %v2914 = vcombine.low %v2889, %v2897
        %v2915 = vcombine.high %v2889, %v2897
        %v2917 = vunpack.c.l.s4 1934713408
        %v2918 = vunpack.c.0.s8 %v2917
        %v2919 = vlaneseq
        %v2920 = vshrl.u32 %v2919, 7
        %v2921 = vsub.s32 %v2918, %v2920
        %v2922 = vrot.slane %v2914, %v2921
        %v2924 = vunpack.c.l.s4 1934713408
        %v2925 = vunpack.c.0.s8 %v2924
        %v2926 = vlaneseq
        %v2927 = vshrl.u32 %v2926, 7
        %v2928 = vsub.s32 %v2925, %v2927
        %v2929 = vrot.slane %v2915, %v2928
        %v2930 = vcombine.low %v2905, %v2913
        %v2931 = vcombine.high %v2905, %v2913
        %v2933 = vunpack.c.l.s4 1934713408
        %v2934 = vunpack.c.0.s8 %v2933
        %v2935 = vlaneseq
        %v2936 = vshrl.u32 %v2935, 7
        %v2937 = vsub.s32 %v2934, %v2936
        %v2938 = vrot.slane %v2930, %v2937
        %v2940 = vunpack.c.l.s4 1934713408
        %v2941 = vunpack.c.0.s8 %v2940
        %v2942 = vlaneseq
        %v2943 = vshrl.u32 %v2942, 7
        %v2944 = vsub.s32 %v2941, %v2943
        %v2945 = vrot.slane %v2931, %v2944
        %v2946 = vcombine.low %v2922, %v2938
        %v2947 = vcombine.high %v2922, %v2938
        %v2948 = vcombine.low %v2929, %v2945
        %v2949 = vcombine.high %v2929, %v2945
        %2951 = vrot.lane.b32.xlu0 %v2947, 8
        %v2952 = vpop.permute.xlu0 %2951
        %2955 = vrot.lane.b32.xlu0 %v2948, 16
        %v2956 = vpop.permute.xlu0 %2955
        %2959 = vrot.lane.b32.xlu0 %v2949, 24
        %v2960 = vpop.permute.xlu0 %2959
        %v2962 = vsel %vm1894, %v2946, %v2952
        %v2963 = vsel %vm1896, %v2962, %v2956
        %v2964 = vsel %vm1898, %v2963, %v2960
        %v2965 = vmul.f32 %v2871, %v2964
        %v2966 = vld [vmem:[#allocation16] sm:$0xff]
        %v2967 = vld [vmem:[#allocation16 + $0x8] sm:$0xff]
        %v2968 = vld [vmem:[#allocation16 + $0x10] sm:$0xff]
        %v2969 = vld [vmem:[#allocation16 + $0x18] sm:$0xff]
        %v2970 = vld [vmem:[#allocation18] sm:$0x1]
        %v2972 = vlaneseq
        %v2973 = vshrl.u32 %v2972, 7
        %v2974 = vsub.s32 0, %v2973
        %v2975 = vrot.slane %v2970, %v2974
        %v2978 = vsel %vm1330, %v2965, 0
        %2980 = vmatprep.subr.mxu0 0.0
        %2981 = vmatpush1.msra.mxu0 0.0
        %2982 = vmatprep.subr.mxu0 0.0
        %2983 = vmatpush1.msra.mxu0 0.0
        %2984 = vmatprep.subr.mxu0 0.0
        %2985 = vmatpush1.msra.mxu0 0.0
        %2986 = vmatprep.subr.mxu0 0.0
        %2987 = vmatpush1.msra.mxu0 0.0
        %2988 = vmatprep.subr.mxu0 0.0
        %2989 = vmatpush1.msra.mxu0 0.0
        %2990 = vmatprep.subr.mxu0 0.0
        %2991 = vmatpush1.msra.mxu0 0.0
        %2992 = vmatprep.subr.mxu0 0.0
        %2993 = vmatpush1.msra.mxu0 0.0
        %2994 = vmatprep.subr.mxu0 0.0
        %2995 = vmatpush1.msra.mxu0 0.0
        %2996 = vmatprep.subr.mxu0 0.0
        %2997 = vmatpush1.msra.mxu0 0.0
        %2998 = vmatprep.subr.mxu0 0.0
        %2999 = vmatpush1.msra.mxu0 0.0
        %3000 = vmatprep.subr.mxu0 0.0
        %3001 = vmatpush1.msra.mxu0 0.0
        %3002 = vmatprep.subr.mxu0 0.0
        %3003 = vmatpush1.msra.mxu0 0.0
        %3004 = vmatprep.subr.mxu0 0.0
        %3005 = vmatpush1.msra.mxu0 %v2969
        %3006 = vmatprep.subr.mxu0 0.0
        %3007 = vmatpush1.msra.mxu0 %v2968
        %3008 = vmatprep.subr.mxu0 0.0
        %3009 = vmatpush1.msra.mxu0 %v2967
        %3010 = vmatprep.subr.mxu0 0.0
        %3011 = vmatpush1.msra.mxu0 %v2966
        %3012 = vmatprep.subr.mxu0 0.0
        %3013 = vmatpush2.msra.mxu0 0.0
        %3014 = vmatprep.subr.mxu0 0.0
        %3015 = vmatpush2.msra.mxu0 0.0
        %3016 = vmatprep.subr.mxu0 0.0
        %3017 = vmatpush2.msra.mxu0 0.0
        %3018 = vmatprep.subr.mxu0 0.0
        %3019 = vmatpush2.msra.mxu0 0.0
        %3020 = vmatprep.subr.mxu0 0.0
        %3021 = vmatpush2.msra.mxu0 0.0
        %3022 = vmatprep.subr.mxu0 0.0
        %3023 = vmatpush2.msra.mxu0 0.0
        %3024 = vmatprep.subr.mxu0 0.0
        %3025 = vmatpush2.msra.mxu0 0.0
        %3026 = vmatprep.subr.mxu0 0.0
        %3027 = vmatpush2.msra.mxu0 0.0
        %3028 = vmatprep.subr.mxu0 0.0
        %3029 = vmatpush2.msra.mxu0 0.0
        %3030 = vmatprep.subr.mxu0 0.0
        %3031 = vmatpush2.msra.mxu0 0.0
        %3032 = vmatprep.subr.mxu0 0.0
        %3033 = vmatpush2.msra.mxu0 0.0
        %3034 = vmatprep.subr.mxu0 0.0
        %3035 = vmatpush2.msra.mxu0 0.0
        %3036 = vmatprep.subr.mxu0 0.0
        %3037 = vmatpush2.msra.mxu0 0.0
        %3038 = vmatprep.subr.mxu0 0.0
        %3039 = vmatpush2.msra.mxu0 0.0
        %3040 = vmatprep.subr.mxu0 0.0
        %3041 = vmatpush2.msra.mxu0 0.0
        %3042 = vmatprep.subr.mxu0 0.0
        %3043 = vmatpush2.msra.mxu0 0.0
        %3044 = vmatprep.mubr.f32.mxu0 0.0
        %3045 = vmatmul.mubr.f32.gmra.mxu0 %v2978
        %v3046 = vpop.f32.mrf.mxu0
        %v3047 = vadd.f32 %v2975, %v3046
        %v3048 = vpop.f32.mrf.mxu0
        %3049 = vdwg.mxu0
        %v3050 = vadd.f32 %v2179, %v3047
        %v3051 = vld [vmem:[#allocation27] sm:$0x1]
        %v3052 = vld [vmem:[#allocation28] sm:$0x1]
        %v3053 = vsel %vm1330, %v3050, 0.0
        %3054 = vadd.xlane.f32.xlu0 %v3053
        %v3055 = vpop.xlane.xlu0 %3054
        %v3056 = vmul.f32 %v3055, %v2155
        %v3057 = vsub.f32 %v3050, %v3056
        %v3058 = vmul.f32 %v3057, %v3057
        %v3059 = vsel %vm1330, %v3058, 0.0
        %3060 = vadd.xlane.f32.xlu0 %v3059
        %v3061 = vpop.xlane.xlu0 %3060
        %v3062 = vmul.f32 %v3061, %v2155
        %v3063 = vadd.f32 %v3062, 1e-05
        %v3064 = vrsqrt.pop %v3063
        %v3065 = vmul.f32 %v3057, %v3064
        %v3067 = vlaneseq
        %v3068 = vshrl.u32 %v3067, 7
        %v3069 = vsub.s32 0, %v3068
        %v3070 = vrot.slane %v3051, %v3069
        %v3072 = vmul.f32 %v3065, %v3070
        %v3074 = vlaneseq
        %v3075 = vshrl.u32 %v3074, 7
        %v3076 = vsub.s32 0, %v3075
        %v3077 = vrot.slane %v3052, %v3076
        %v3079 = vadd.f32 %v3072, %v3077
        %v3080 = vld [vmem:[#allocation19] sm:$0xff]
        %v3081 = vld [vmem:[#allocation19 + $0x8] sm:$0xff]
        %v3082 = vld [vmem:[#allocation19 + $0x10] sm:$0xff]
        %v3083 = vld [vmem:[#allocation19 + $0x18] sm:$0xff]
        %v3084 = vld [vmem:[#allocation21] sm:$0x1]
        %v3086 = vlaneseq
        %v3087 = vshrl.u32 %v3086, 7
        %v3088 = vsub.s32 0, %v3087
        %v3089 = vrot.slane %v3084, %v3088
        %v3092 = vsel %vm1330, %v3079, 0
        %3094 = vmatprep.subr.mxu0 0.0
        %3095 = vmatpush1.msra.mxu0 0.0
        %3096 = vmatprep.subr.mxu0 0.0
        %3097 = vmatpush1.msra.mxu0 0.0
        %3098 = vmatprep.subr.mxu0 0.0
        %3099 = vmatpush1.msra.mxu0 0.0
        %3100 = vmatprep.subr.mxu0 0.0
        %3101 = vmatpush1.msra.mxu0 0.0
        %3102 = vmatprep.subr.mxu0 0.0
        %3103 = vmatpush1.msra.mxu0 0.0
        %3104 = vmatprep.subr.mxu0 0.0
        %3105 = vmatpush1.msra.mxu0 0.0
        %3106 = vmatprep.subr.mxu0 0.0
        %3107 = vmatpush1.msra.mxu0 0.0
        %3108 = vmatprep.subr.mxu0 0.0
        %3109 = vmatpush1.msra.mxu0 0.0
        %3110 = vmatprep.subr.mxu0 0.0
        %3111 = vmatpush1.msra.mxu0 0.0
        %3112 = vmatprep.subr.mxu0 0.0
        %3113 = vmatpush1.msra.mxu0 0.0
        %3114 = vmatprep.subr.mxu0 0.0
        %3115 = vmatpush1.msra.mxu0 0.0
        %3116 = vmatprep.subr.mxu0 0.0
        %3117 = vmatpush1.msra.mxu0 0.0
        %3118 = vmatprep.subr.mxu0 0.0
        %3119 = vmatpush1.msra.mxu0 %v3083
        %3120 = vmatprep.subr.mxu0 0.0
        %3121 = vmatpush1.msra.mxu0 %v3082
        %3122 = vmatprep.subr.mxu0 0.0
        %3123 = vmatpush1.msra.mxu0 %v3081
        %3124 = vmatprep.subr.mxu0 0.0
        %3125 = vmatpush1.msra.mxu0 %v3080
        %3126 = vmatprep.subr.mxu0 0.0
        %3127 = vmatpush2.msra.mxu0 0.0
        %3128 = vmatprep.subr.mxu0 0.0
        %3129 = vmatpush2.msra.mxu0 0.0
        %3130 = vmatprep.subr.mxu0 0.0
        %3131 = vmatpush2.msra.mxu0 0.0
        %3132 = vmatprep.subr.mxu0 0.0
        %3133 = vmatpush2.msra.mxu0 0.0
        %3134 = vmatprep.subr.mxu0 0.0
        %3135 = vmatpush2.msra.mxu0 0.0
        %3136 = vmatprep.subr.mxu0 0.0
        %3137 = vmatpush2.msra.mxu0 0.0
        %3138 = vmatprep.subr.mxu0 0.0
        %3139 = vmatpush2.msra.mxu0 0.0
        %3140 = vmatprep.subr.mxu0 0.0
        %3141 = vmatpush2.msra.mxu0 0.0
        %3142 = vmatprep.subr.mxu0 0.0
        %3143 = vmatpush2.msra.mxu0 0.0
        %3144 = vmatprep.subr.mxu0 0.0
        %3145 = vmatpush2.msra.mxu0 0.0
        %3146 = vmatprep.subr.mxu0 0.0
        %3147 = vmatpush2.msra.mxu0 0.0
        %3148 = vmatprep.subr.mxu0 0.0
        %3149 = vmatpush2.msra.mxu0 0.0
        %3150 = vmatprep.subr.mxu0 0.0
        %3151 = vmatpush2.msra.mxu0 0.0
        %3152 = vmatprep.subr.mxu0 0.0
        %3153 = vmatpush2.msra.mxu0 0.0
        %3154 = vmatprep.subr.mxu0 0.0
        %3155 = vmatpush2.msra.mxu0 0.0
        %3156 = vmatprep.subr.mxu0 0.0
        %3157 = vmatpush2.msra.mxu0 0.0
        %3158 = vmatprep.mubr.f32.mxu0 0.0
        %3159 = vmatmul.mubr.f32.gmra.mxu0 %v3092
        %v3160 = vpop.f32.mrf.mxu0
        %v3161 = vadd.f32 %v3089, %v3160
        %v3162 = vpop.f32.mrf.mxu0
        %3163 = vdwg.mxu0
        %v3164 = vmax.f32 %v3161, 0.0
        %v3165 = vld [vmem:[%s49] sm:$0xff]
        %v3166 = vld [vmem:[%s49 + $0x8] sm:$0xff]
        %v3167 = vld [vmem:[%s49 + $0x10] sm:$0xff]
        %v3168 = vld [vmem:[%s49 + $0x18] sm:$0xff]
        %v3169 = vld [vmem:[%s49 + $0x20] sm:$0xff]
        %v3170 = vld [vmem:[%s49 + $0x28] sm:$0xff]
        %v3171 = vld [vmem:[%s49 + $0x30] sm:$0xff]
        %v3172 = vld [vmem:[%s49 + $0x38] sm:$0xff]
        %v3173 = vld [vmem:[#allocation22] sm:$0x1]
        %v3175 = vlaneseq
        %v3176 = vshrl.u32 %v3175, 7
        %v3177 = vsub.s32 0, %v3176
        %v3178 = vrot.slane %v3173, %v3177
        %v3181 = vsel %vm2800, %v3164, 0
        %3183 = vmatprep.subr.mxu0 0.0
        %3184 = vmatpush1.msra.mxu0 0.0
        %3185 = vmatprep.subr.mxu0 0.0
        %3186 = vmatpush1.msra.mxu0 0.0
        %3187 = vmatprep.subr.mxu0 0.0
        %3188 = vmatpush1.msra.mxu0 0.0
        %3189 = vmatprep.subr.mxu0 0.0
        %3190 = vmatpush1.msra.mxu0 0.0
        %3191 = vmatprep.subr.mxu0 0.0
        %3192 = vmatpush1.msra.mxu0 0.0
        %3193 = vmatprep.subr.mxu0 0.0
        %3194 = vmatpush1.msra.mxu0 0.0
        %3195 = vmatprep.subr.mxu0 0.0
        %3196 = vmatpush1.msra.mxu0 0.0
        %3197 = vmatprep.subr.mxu0 0.0
        %3198 = vmatpush1.msra.mxu0 0.0
        %3199 = vmatprep.subr.mxu0 0.0
        %3200 = vmatpush1.msra.mxu0 %v3172
        %3201 = vmatprep.subr.mxu0 0.0
        %3202 = vmatpush1.msra.mxu0 %v3171
        %3203 = vmatprep.subr.mxu0 0.0
        %3204 = vmatpush1.msra.mxu0 %v3170
        %3205 = vmatprep.subr.mxu0 0.0
        %3206 = vmatpush1.msra.mxu0 %v3169
        %3207 = vmatprep.subr.mxu0 0.0
        %3208 = vmatpush1.msra.mxu0 %v3168
        %3209 = vmatprep.subr.mxu0 0.0
        %3210 = vmatpush1.msra.mxu0 %v3167
        %3211 = vmatprep.subr.mxu0 0.0
        %3212 = vmatpush1.msra.mxu0 %v3166
        %3213 = vmatprep.subr.mxu0 0.0
        %3214 = vmatpush1.msra.mxu0 %v3165
        %3215 = vmatprep.subr.mxu0 0.0
        %3216 = vmatpush2.msra.mxu0 0.0
        %3217 = vmatprep.subr.mxu0 0.0
        %3218 = vmatpush2.msra.mxu0 0.0
        %3219 = vmatprep.subr.mxu0 0.0
        %3220 = vmatpush2.msra.mxu0 0.0
        %3221 = vmatprep.subr.mxu0 0.0
        %3222 = vmatpush2.msra.mxu0 0.0
        %3223 = vmatprep.subr.mxu0 0.0
        %3224 = vmatpush2.msra.mxu0 0.0
        %3225 = vmatprep.subr.mxu0 0.0
        %3226 = vmatpush2.msra.mxu0 0.0
        %3227 = vmatprep.subr.mxu0 0.0
        %3228 = vmatpush2.msra.mxu0 0.0
        %3229 = vmatprep.subr.mxu0 0.0
        %3230 = vmatpush2.msra.mxu0 0.0
        %3231 = vmatprep.subr.mxu0 0.0
        %3232 = vmatpush2.msra.mxu0 0.0
        %3233 = vmatprep.subr.mxu0 0.0
        %3234 = vmatpush2.msra.mxu0 0.0
        %3235 = vmatprep.subr.mxu0 0.0
        %3236 = vmatpush2.msra.mxu0 0.0
        %3237 = vmatprep.subr.mxu0 0.0
        %3238 = vmatpush2.msra.mxu0 0.0
        %3239 = vmatprep.subr.mxu0 0.0
        %3240 = vmatpush2.msra.mxu0 0.0
        %3241 = vmatprep.subr.mxu0 0.0
        %3242 = vmatpush2.msra.mxu0 0.0
        %3243 = vmatprep.subr.mxu0 0.0
        %3244 = vmatpush2.msra.mxu0 0.0
        %3245 = vmatprep.subr.mxu0 0.0
        %3246 = vmatpush2.msra.mxu0 0.0
        %3247 = vmatprep.mubr.f32.mxu0 0.0
        %3248 = vmatmul.mubr.f32.gmra.mxu0 %v3181
        %v3249 = vpop.f32.mrf.mxu0
        %v3250 = vadd.f32 %v3178, %v3249
        %v3251 = vpop.f32.mrf.mxu0
        %3252 = vdwg.mxu0
        %v3253 = vadd.f32 %v3079, %v3250
        %v3254 = vld [vmem:[#allocation30] sm:$0x1]
        %v3255 = vld [vmem:[#allocation31] sm:$0x1]
        %v3256 = vsel %vm1330, %v3253, 0.0
        %3257 = vadd.xlane.f32.xlu0 %v3256
        %v3258 = vpop.xlane.xlu0 %3257
        %v3259 = vmul.f32 %v3258, %v2155
        %v3260 = vsub.f32 %v3253, %v3259
        %v3261 = vmul.f32 %v3260, %v3260
        %v3262 = vsel %vm1330, %v3261, 0.0
        %3263 = vadd.xlane.f32.xlu0 %v3262
        %v3264 = vpop.xlane.xlu0 %3263
        %v3265 = vmul.f32 %v3264, %v2155
        %v3266 = vadd.f32 %v3265, 1e-05
        %v3267 = vrsqrt.pop %v3266
        %v3268 = vmul.f32 %v3260, %v3267
        %v3270 = vlaneseq
        %v3271 = vshrl.u32 %v3270, 7
        %v3272 = vsub.s32 0, %v3271
        %v3273 = vrot.slane %v3254, %v3272
        %v3275 = vmul.f32 %v3268, %v3273
        %v3277 = vlaneseq
        %v3278 = vshrl.u32 %v3277, 7
        %v3279 = vsub.s32 0, %v3278
        %v3280 = vrot.slane %v3255, %v3279
        %v3282 = vadd.f32 %v3275, %v3280
        %3283 = vst.msk [vmem:[%s1299] sm:$0xff] %vm1330, %v3282
        %p3284 = scmp.lt.s32.totalorder %s87, 1
        %s3285 = scalar_select %p3284, %s87, 1
        %s3286 = smul.addr %s3285, 8
        %s3287 = scalar_lea.vmem %s65, %s3286
        // Predicated region
        $region229: #{decoder_layer_forward.1} parent=147 // pred_check
          %p3288 = pneg %p797
        $region230: #{decoder_layer_forward.1} parent=147 // pred_check_branch
          %3290 = sbr.rel (%p3288) target = $region232
        $region231: #{decoder_layer_forward.1} parent=147 // pred_region
          _
        $region232: #{decoder_layer_forward.1} parent=147 // pred_fallthru
          _
      $region148: #{decoder_layer_forward.1} parent=5 // pred_fallthru
        _
      %p3291 = scmp.le.s32.totalorder 2, %s82
      // Predicated region
      $region233: #{decoder_layer_forward.1} parent=5 // pred_check
        %p3292 = pneg %p3291
      $region234: #{decoder_layer_forward.1} parent=5 // pred_check_branch
        %3294 = sbr.rel (%p3292) target = $region236
      $region235: #{decoder_layer_forward.1} parent=5 // pred_region
        %s3295 = ssub.s32 %s82, 2
        // Predicated region
        $region237: #{decoder_layer_forward.1} parent=235 // pred_check
          %p3296 = pneg %p803
        $region238: #{decoder_layer_forward.1} parent=235 // pred_check_branch
          %3298 = sbr.rel (%p3296) target = $region240
        $region239: #{decoder_layer_forward.1} parent=235 // pred_region
          %p3299 = scmp.lt.s32.totalorder %s88, 1
          %s3300 = scalar_select %p3299, %s88, 1
          %s3301 = smul.addr %s3300, 8
          %s3302 = scalar_lea.vmem %s65, %s3301
        $region240: #{decoder_layer_forward.1} parent=235 // pred_fallthru
          _
      $region236: #{decoder_layer_forward.1} parent=5 // pred_fallthru
        _
    $region6: #{decoder_layer_forward.1} parent=1 // loop_footer
      %s86 = sadd.s32 1, %s82
    $region7: #{decoder_layer_forward.1} parent=1 // loop_footer_branch
      %81 = sbr.rel target = $region3
    $region8: #{decoder_layer_forward.1} parent=1 // loop_exit
      _
    %3303 = vsyncpa [#allocation3], 1
    %s3304 = scalar_lea.sflag [#allocation3], 1
    %3305 = vsyncpa %s3304, 1
    %3306 = vsyncpa [#allocation5], 1
    %3307 = vsyncpa [#allocation8], 1
    %3308 = vsyncpa [#allocation11], 1
    %3309 = vsyncpa [#allocation14], 1
    %3310 = vsyncpa [#allocation17], 1
    %3311 = vsyncpa [#allocation20], 1
    %3312 = vsyncpa [#allocation23], 1
    %3313 = vsyncpa [#allocation26], 1
    %3314 = vsyncpa [#allocation29], 1
    %3315 = vsyncpa [#allocation32], 1

</llo_original>
